<compile_context>
chip_gen: v7x
topology: tpu7x:2x2x1
jax: 0.10.0
libtpu: 0.0.40
codegen_flags: <defaults>
</compile_context>

<pallas_src>
import functools

import jax
import jax.numpy as jnp
from jax.experimental import pallas as pl
from jax.experimental.pallas import tpu as pltpu


def _erf(x):
    # Abramowitz & Stegun 7.1.26 rational approximation, |err| <= 1.5e-7
    # (uses only exp/mul/add -> always lowers on Mosaic).
    a1, a2, a3, a4, a5 = (0.254829592, -0.284496736, 1.421413741,
                          -1.453152027, 1.061405429)
    p = 0.3275911
    sgn = jnp.where(x >= 0.0, 1.0, -1.0)
    ax = jnp.abs(x)
    t = 1.0 / (1.0 + p * ax)
    poly = ((((a5 * t + a4) * t + a3) * t + a2) * t + a1) * t
    return sgn * (1.0 - poly * jnp.exp(-ax * ax))


def _gelu_exact(x):
    # PyTorch nn.GELU() default: 0.5*x*(1+erf(x/sqrt(2)))
    return 0.5 * x * (1.0 + _erf(x * 0.7071067811865476))


def block_kernel(x_ref, ln1w_ref, ln1b_ref, wqkv_ref, bqkv_ref,
                 wproj_ref, bproj_ref, ln2w_ref, ln2b_ref,
                 w1_ref, b1_ref, w2_ref, b2_ref, out_ref,
                 *, num_heads, head_dim, bb, seq):
    eps = 1e-6
    dim = num_heads * head_dim
    rows = bb * seq
    scale = 1.0 / (head_dim ** 0.5)

    # Fold the batch chunk into the row dim for all dense projections.
    x = x_ref[...].reshape(rows, dim)                    # (R, D) f32

    def layernorm(v, w, b):
        mu = jnp.mean(v, axis=-1, keepdims=True)
        var = jnp.mean(jnp.square(v - mu), axis=-1, keepdims=True)
        return (v - mu) * jax.lax.rsqrt(var + eps) * w + b

    # ---------------- attention branch ----------------
    h = layernorm(x, ln1w_ref[...], ln1b_ref[...])       # f32
    qkv = jnp.dot(h.astype(jnp.bfloat16), wqkv_ref[...],
                  preferred_element_type=jnp.float32) + bqkv_ref[...]  # (R,3D)
    # Fold softmax scale into q before the bf16 cast (cheaper than scaling NxN).
    q = (qkv[:, 0:dim] * scale).astype(jnp.bfloat16).reshape(bb, seq, dim)
    k = qkv[:, dim:2 * dim].astype(jnp.bfloat16).reshape(bb, seq, dim)
    v = qkv[:, 2 * dim:3 * dim].astype(jnp.bfloat16).reshape(bb, seq, dim)

    # Batched (leading batch dim) attention per head; per-head results stay in
    # registers and are joined with a lane-axis concatenate (no VMEM scratch).
    head_outs = []
    for hh in range(num_heads):
        lo = hh * head_dim
        hi = lo + head_dim
        qh, kh, vh = q[:, :, lo:hi], k[:, :, lo:hi], v[:, :, lo:hi]  # (bb,N,hd)
        s = jnp.einsum('bqd,bkd->bqk', qh, kh,
                       preferred_element_type=jnp.float32)           # (bb,N,N)
        s = s - jnp.max(s, axis=-1, keepdims=True)
        p = jnp.exp(s)
        p = p * pl.reciprocal(jnp.sum(p, axis=-1, keepdims=True), approx=True)
        head_outs.append(jnp.einsum('bqk,bkd->bqd', p.astype(jnp.bfloat16), vh,
                                    preferred_element_type=jnp.float32))
    attn = jnp.concatenate(head_outs, axis=-1).reshape(rows, dim)     # (R, D)

    attn = jnp.dot(attn.astype(jnp.bfloat16), wproj_ref[...],
                   preferred_element_type=jnp.float32) + bproj_ref[...]
    x = x + attn

    # ---------------- MLP branch ----------------
    h2 = layernorm(x, ln2w_ref[...], ln2b_ref[...])
    m = jnp.dot(h2.astype(jnp.bfloat16), w1_ref[...],
                preferred_element_type=jnp.float32) + b1_ref[...]
    m = _gelu_exact(m)                                   # f32 elementwise
    m = jnp.dot(m.astype(jnp.bfloat16), w2_ref[...],
                preferred_element_type=jnp.float32) + b2_ref[...]
    out_ref[...] = (x + m).reshape(bb, seq, dim)


def block_forward(x, params, num_heads, batches_per_block=None):
    B, N, D = x.shape
    hidden = params["w1_t"].shape[1]
    head_dim = D // num_heads

    # Keep 2 grid points when possible (v7x has 2 TensorCores); the remaining
    # batches are folded into the row dimension of each block (bigger MXU M).
    if batches_per_block is None:
        num_blocks = 2 if (B >= 2 and B % 2 == 0) else 1
    else:
        num_blocks = max(1, B // batches_per_block)
    assert B % num_blocks == 0, "B must divide evenly into batch chunks"
    bb = B // num_blocks

    kernel = functools.partial(block_kernel, num_heads=num_heads,
                               head_dim=head_dim, bb=bb, seq=N)

    # Weights / biases: whole-array resident in VMEM (single copy; their values
    # never change across the batch grid so no pipelining is needed).
    def wspec():
        return pl.BlockSpec(memory_space=pltpu.MemorySpace.VMEM)

    in_specs = [
        pl.BlockSpec((bb, N, D), lambda i: (i, 0, 0)),     # x (batch chunk)
        wspec(), wspec(),                                  # LN1 weight / bias
        wspec(), wspec(),                                  # qkv (in,out), bias
        wspec(), wspec(),                                  # proj (in,out), bias
        wspec(), wspec(),                                  # LN2 weight / bias
        wspec(), wspec(),                                  # fc1 (in,out), bias
        wspec(), wspec(),                                  # fc2 (in,out), bias
    ]
    out_spec = pl.BlockSpec((bb, N, D), lambda i: (i, 0, 0))

    # VMEM budget: bf16 weights (single copy) + f32 biases + double-buffered
    # x/out blocks + register/VMEM intermediates, with 2x headroom. Cap at
    # ~80% of the generation's physical VMEM (leaves room for Mosaic internal
    # scratch); never below 32 MiB (v5e's scoped default is only 16 MiB).
    bf16, f32 = 2, 4
    R = bb * N
    weight_bytes = (D * 3 * D + D * D + D * hidden + hidden * D) * bf16
    bias_bytes = (3 * D + 6 * D + hidden) * f32
    io_bytes = 4 * R * D * f32
    act_bytes = (R * 3 * D + 2 * bb * N * N + 2 * R * hidden + 8 * R * D) * f32
    est = weight_bytes + bias_bytes + io_bytes + act_bytes
    try:
        phys = pltpu.get_tpu_info().vmem_capacity_bytes
    except Exception:
        phys = 64 * 1024 * 1024
    cap = max(32 * 1024 * 1024, int(phys * 0.8))
    vmem_limit = int(min(cap, max(32 * 1024 * 1024, 2 * est)))

    return pl.pallas_call(
        kernel,
        out_shape=jax.ShapeDtypeStruct((B, N, D), x.dtype),
        grid=(num_blocks,),
        in_specs=in_specs,
        out_specs=out_spec,
        compiler_params=pltpu.CompilerParams(
            dimension_semantics=("parallel",),
            vmem_limit_bytes=vmem_limit),
    )(x, params["ln1_w"], params["ln1_b"],
      params["wqkv_t"], params["bqkv"],
      params["wproj_t"], params["bproj"],
      params["ln2_w"], params["ln2_b"],
      params["w1_t"], params["b1"],
      params["w2_t"], params["b2"])


def init_params(key, dim, mlp_hidden):
    ks = jax.random.split(key, 8)
    s = 0.02
    # torch Linear weights are (out, in); transpose to (in, out) for the kernel.
    wqkv = jax.random.normal(ks[0], (3 * dim, dim), jnp.float32) * s
    bqkv = jax.random.normal(ks[1], (3 * dim,), jnp.float32) * s
    wproj = jax.random.normal(ks[2], (dim, dim), jnp.float32) * s
    bproj = jax.random.normal(ks[3], (dim,), jnp.float32) * s
    w1 = jax.random.normal(ks[4], (mlp_hidden, dim), jnp.float32) * s
    b1 = jax.random.normal(ks[5], (mlp_hidden,), jnp.float32) * s
    w2 = jax.random.normal(ks[6], (dim, mlp_hidden), jnp.float32) * s
    b2 = jax.random.normal(ks[7], (dim,), jnp.float32) * s
    return dict(
        ln1_w=jnp.ones((1, dim), jnp.float32),
        ln1_b=jnp.zeros((1, dim), jnp.float32),
        ln2_w=jnp.ones((1, dim), jnp.float32),
        ln2_b=jnp.zeros((1, dim), jnp.float32),
        # Matmul weights stored bf16 (MXU-native); f32 accumulation in-kernel.
        wqkv_t=wqkv.T.astype(jnp.bfloat16), bqkv=bqkv.reshape(1, -1),
        wproj_t=wproj.T.astype(jnp.bfloat16), bproj=bproj.reshape(1, -1),
        w1_t=w1.T.astype(jnp.bfloat16), b1=b1.reshape(1, -1),
        w2_t=w2.T.astype(jnp.bfloat16), b2=b2.reshape(1, -1),
    )


def reference_block(x, params, num_heads):
    # Pure-JAX f32 reference matching the PyTorch Block semantics (same
    # bf16-quantized weights as the kernel, math done in f32).
    B, N, D = x.shape
    hd = D // num_heads

    def ln(v, w, b):
        mu = jnp.mean(v, axis=-1, keepdims=True)
        var = jnp.mean(jnp.square(v - mu), axis=-1, keepdims=True)
        return (v - mu) / jnp.sqrt(var + 1e-6) * w + b

    wqkv = params["wqkv_t"].astype(jnp.float32)
    wproj = params["wproj_t"].astype(jnp.float32)
    w1 = params["w1_t"].astype(jnp.float32)
    w2 = params["w2_t"].astype(jnp.float32)

    h = ln(x, params["ln1_w"][0], params["ln1_b"][0])
    qkv = h @ wqkv + params["bqkv"][0]
    q, k, v = jnp.split(qkv, 3, axis=-1)
    q = q.reshape(B, N, num_heads, hd).transpose(0, 2, 1, 3)
    k = k.reshape(B, N, num_heads, hd).transpose(0, 2, 1, 3)
    v = v.reshape(B, N, num_heads, hd).transpose(0, 2, 1, 3)
    s = jnp.einsum("bhqd,bhkd->bhqk", q, k) / jnp.sqrt(hd)
    p = jax.nn.softmax(s, axis=-1)
    a = jnp.einsum("bhqk,bhkd->bhqd", p, v).transpose(0, 2, 1, 3).reshape(B, N, D)
    a = a @ wproj + params["bproj"][0]
    x = x + a
    h2 = ln(x, params["ln2_w"][0], params["ln2_b"][0])
    m = h2 @ w1 + params["b1"][0]
    m = jax.nn.gelu(m, approximate=False)
    m = m @ w2 + params["b2"][0]
    return x + m


if __name__ == "__main__":
    # Small but lane-friendly shapes: head_dim = 128 (lane-aligned head slices),
    # batch folds into rows (2 grid chunks x 2 batches -> 32-row matmuls).
    B, N, D = 4, 16, 256
    NUM_HEADS = 2
    MLP_HIDDEN = 512

    key = jax.random.PRNGKey(0)
    kx, kp = jax.random.split(key)
    x = jax.random.normal(kx, (B, N, D), jnp.float32)
    params = init_params(kp, D, MLP_HIDDEN)

    out = block_forward(x, params, NUM_HEADS)
    out = jax.block_until_ready(out)

    ref = reference_block(x, params, NUM_HEADS)
    assert out.shape == (B, N, D)
    err = jnp.max(jnp.abs(out - ref))
    # bf16 matmul operands + approx reciprocal -> compare at loosened tolerance.
    assert jnp.allclose(out, ref, atol=1e-2, rtol=1e-2), f"max abs err {err}"
    print("KERNEL_OK")
</pallas_src>

<mosaic_0001>
module attributes {stable_mosaic.version = 11 : i64} {
  func.func @block_kernel(%arg0: i32, %arg1: memref<2x16x256xf32, #tpu.memory_space<vmem>>, %arg2: memref<1x256xf32, #tpu.memory_space<vmem>>, %arg3: memref<1x256xf32, #tpu.memory_space<vmem>>, %arg4: memref<256x768xbf16, #tpu.memory_space<vmem>>, %arg5: memref<1x768xf32, #tpu.memory_space<vmem>>, %arg6: memref<256x256xbf16, #tpu.memory_space<vmem>>, %arg7: memref<1x256xf32, #tpu.memory_space<vmem>>, %arg8: memref<1x256xf32, #tpu.memory_space<vmem>>, %arg9: memref<1x256xf32, #tpu.memory_space<vmem>>, %arg10: memref<256x512xbf16, #tpu.memory_space<vmem>>, %arg11: memref<1x512xf32, #tpu.memory_space<vmem>>, %arg12: memref<512x256xbf16, #tpu.memory_space<vmem>>, %arg13: memref<1x256xf32, #tpu.memory_space<vmem>>, %arg14: memref<2x16x256xf32, #tpu.memory_space<vmem>>) attributes {dimension_semantics = [#tpu.dimension_semantics<parallel>], iteration_bounds = array<i64: 2>, scalar_prefetch = 0 : i64, scratch_operands = 0 : i64, tpu.core_type = #tpu.core_type<tc>, window_params = [{transform_indices = @transform_0, window_bounds = array<i64: 2, 16, 256>}, {pipeline_mode = #tpu.pipeline_mode<synchronous>, transform_indices = @transform_1, window_bounds = array<i64: 1, 256>}, {pipeline_mode = #tpu.pipeline_mode<synchronous>, transform_indices = @transform_2, window_bounds = array<i64: 1, 256>}, {pipeline_mode = #tpu.pipeline_mode<synchronous>, transform_indices = @transform_3, window_bounds = array<i64: 256, 768>}, {pipeline_mode = #tpu.pipeline_mode<synchronous>, transform_indices = @transform_4, window_bounds = array<i64: 1, 768>}, {pipeline_mode = #tpu.pipeline_mode<synchronous>, transform_indices = @transform_5, window_bounds = array<i64: 256, 256>}, {pipeline_mode = #tpu.pipeline_mode<synchronous>, transform_indices = @transform_6, window_bounds = array<i64: 1, 256>}, {pipeline_mode = #tpu.pipeline_mode<synchronous>, transform_indices = @transform_7, window_bounds = array<i64: 1, 256>}, {pipeline_mode = #tpu.pipeline_mode<synchronous>, transform_indices = @transform_8, window_bounds = array<i64: 1, 256>}, {pipeline_mode = #tpu.pipeline_mode<synchronous>, transform_indices = @transform_9, window_bounds = array<i64: 256, 512>}, {pipeline_mode = #tpu.pipeline_mode<synchronous>, transform_indices = @transform_10, window_bounds = array<i64: 1, 512>}, {pipeline_mode = #tpu.pipeline_mode<synchronous>, transform_indices = @transform_11, window_bounds = array<i64: 512, 256>}, {pipeline_mode = #tpu.pipeline_mode<synchronous>, transform_indices = @transform_12, window_bounds = array<i64: 1, 256>}, {transform_indices = @transform_13, window_bounds = array<i64: 2, 16, 256>}]} {
    %c0 = arith.constant 0 : index
    %c0_0 = arith.constant 0 : index
    %c0_1 = arith.constant 0 : index
    %0 = vector.load %arg1[%c0, %c0_0, %c0_1] : memref<2x16x256xf32, #tpu.memory_space<vmem>>, vector<2x16x256xf32>
    %1 = vector.shape_cast %0 : vector<2x16x256xf32> to vector<32x256xf32>
    %c0_2 = arith.constant 0 : index
    %c0_3 = arith.constant 0 : index
    %2 = vector.load %arg2[%c0_2, %c0_3] : memref<1x256xf32, #tpu.memory_space<vmem>>, vector<1x256xf32>
    %c0_4 = arith.constant 0 : index
    %c0_5 = arith.constant 0 : index
    %3 = vector.load %arg3[%c0_4, %c0_5] : memref<1x256xf32, #tpu.memory_space<vmem>>, vector<1x256xf32>
    %cst = arith.constant dense<0.000000e+00> : vector<32xf32>
    %4 = vector.multi_reduction <add>, %1, %cst [1] : vector<32x256xf32> to vector<32xf32>
    %5 = vector.shape_cast %4 : vector<32xf32> to vector<32x1xf32>
    %cst_6 = arith.constant 2.560000e+02 : f32
    %6 = vector.broadcast %cst_6 : f32 to vector<32x1xf32>
    %7 = arith.divf %5, %6 : vector<32x1xf32>
    %8 = vector.broadcast %7 : vector<32x1xf32> to vector<32x256xf32>
    %9 = arith.subf %1, %8 : vector<32x256xf32>
    %10 = arith.mulf %9, %9 : vector<32x256xf32>
    %cst_7 = arith.constant dense<0.000000e+00> : vector<32xf32>
    %11 = vector.multi_reduction <add>, %10, %cst_7 [1] : vector<32x256xf32> to vector<32xf32>
    %12 = vector.shape_cast %11 : vector<32xf32> to vector<32x1xf32>
    %cst_8 = arith.constant 2.560000e+02 : f32
    %13 = vector.broadcast %cst_8 : f32 to vector<32x1xf32>
    %14 = arith.divf %12, %13 : vector<32x1xf32>
    %15 = vector.broadcast %7 : vector<32x1xf32> to vector<32x256xf32>
    %16 = arith.subf %1, %15 : vector<32x256xf32>
    %cst_9 = arith.constant 9.99999997E-7 : f32
    %17 = vector.broadcast %cst_9 : f32 to vector<32x1xf32>
    %18 = arith.addf %14, %17 : vector<32x1xf32>
    %19 = math.rsqrt %18 : vector<32x1xf32>
    %20 = vector.broadcast %19 : vector<32x1xf32> to vector<32x256xf32>
    %21 = arith.mulf %16, %20 : vector<32x256xf32>
    %22 = vector.broadcast %2 : vector<1x256xf32> to vector<32x256xf32>
    %23 = arith.mulf %21, %22 : vector<32x256xf32>
    %24 = vector.broadcast %3 : vector<1x256xf32> to vector<32x256xf32>
    %25 = arith.addf %23, %24 : vector<32x256xf32>
    %26 = arith.truncf %25 : vector<32x256xf32> to vector<32x256xbf16>
    %c0_10 = arith.constant 0 : index
    %c0_11 = arith.constant 0 : index
    %27 = vector.load %arg4[%c0_10, %c0_11] : memref<256x768xbf16, #tpu.memory_space<vmem>>, vector<256x768xbf16>
    %cst_12 = arith.constant dense<0.000000e+00> : vector<32x768xf32>
    %28 = tpu.matmul %26, %27, %cst_12 {dimension_numbers = #tpu.dot_dimension_numbers<[1], [0], [0], [1], [0, 0, 1, 1], [], []>} : vector<32x256xbf16>, vector<256x768xbf16>, vector<32x768xf32> -> vector<32x768xf32>
    %c0_13 = arith.constant 0 : index
    %c0_14 = arith.constant 0 : index
    %29 = vector.load %arg5[%c0_13, %c0_14] : memref<1x768xf32, #tpu.memory_space<vmem>>, vector<1x768xf32>
    %30 = vector.broadcast %29 : vector<1x768xf32> to vector<32x768xf32>
    %31 = arith.addf %28, %30 : vector<32x768xf32>
    %32 = vector.extract_strided_slice %31 {offsets = [0, 0], sizes = [32, 256], strides = [1, 1]} : vector<32x768xf32> to vector<32x256xf32>
    %cst_15 = arith.constant 0.0883883461 : f32
    %33 = vector.broadcast %cst_15 : f32 to vector<32x256xf32>
    %34 = arith.mulf %32, %33 : vector<32x256xf32>
    %35 = arith.truncf %34 : vector<32x256xf32> to vector<32x256xbf16>
    %36 = vector.shape_cast %35 : vector<32x256xbf16> to vector<2x16x256xbf16>
    %37 = vector.extract_strided_slice %31 {offsets = [0, 256], sizes = [32, 256], strides = [1, 1]} : vector<32x768xf32> to vector<32x256xf32>
    %38 = arith.truncf %37 : vector<32x256xf32> to vector<32x256xbf16>
    %39 = vector.shape_cast %38 : vector<32x256xbf16> to vector<2x16x256xbf16>
    %40 = vector.extract_strided_slice %31 {offsets = [0, 512], sizes = [32, 256], strides = [1, 1]} : vector<32x768xf32> to vector<32x256xf32>
    %41 = arith.truncf %40 : vector<32x256xf32> to vector<32x256xbf16>
    %42 = vector.shape_cast %41 : vector<32x256xbf16> to vector<2x16x256xbf16>
    %43 = vector.extract_strided_slice %36 {offsets = [0, 0, 0], sizes = [2, 16, 128], strides = [1, 1, 1]} : vector<2x16x256xbf16> to vector<2x16x128xbf16>
    %44 = vector.extract_strided_slice %39 {offsets = [0, 0, 0], sizes = [2, 16, 128], strides = [1, 1, 1]} : vector<2x16x256xbf16> to vector<2x16x128xbf16>
    %45 = vector.extract_strided_slice %42 {offsets = [0, 0, 0], sizes = [2, 16, 128], strides = [1, 1, 1]} : vector<2x16x256xbf16> to vector<2x16x128xbf16>
    "tpu.trace_start"() <{level = 10 : i32, message = "bqd,bkd->bqk"}> : () -> ()
    %cst_16 = arith.constant dense<0.000000e+00> : vector<2x16x16xf32>
    %46 = tpu.matmul %43, %44, %cst_16 {dimension_numbers = #tpu.dot_dimension_numbers<[2], [2], [1], [1], [0, 0, 0, 1, 1, 1], [0], [0]>} : vector<2x16x128xbf16>, vector<2x16x128xbf16>, vector<2x16x16xf32> -> vector<2x16x16xf32>
    "tpu.trace_stop"() : () -> ()
    %cst_17 = arith.constant dense<0xFF800000> : vector<2x16xf32>
    %47 = vector.multi_reduction <maximumf>, %46, %cst_17 [2] : vector<2x16x16xf32> to vector<2x16xf32>
    %48 = vector.shape_cast %47 : vector<2x16xf32> to vector<2x16x1xf32>
    %49 = vector.broadcast %48 : vector<2x16x1xf32> to vector<2x16x16xf32>
    %50 = arith.subf %46, %49 : vector<2x16x16xf32>
    %51 = math.exp %50 : vector<2x16x16xf32>
    %cst_18 = arith.constant dense<0.000000e+00> : vector<2x16xf32>
    %52 = vector.multi_reduction <add>, %51, %cst_18 [2] : vector<2x16x16xf32> to vector<2x16xf32>
    %53 = vector.shape_cast %52 : vector<2x16xf32> to vector<2x16x1xf32>
    %54 = tpu.reciprocal %53 {approx = true} : vector<2x16x1xf32> -> vector<2x16x1xf32>
    %55 = vector.broadcast %54 : vector<2x16x1xf32> to vector<2x16x16xf32>
    %56 = arith.mulf %51, %55 : vector<2x16x16xf32>
    %57 = arith.truncf %56 : vector<2x16x16xf32> to vector<2x16x16xbf16>
    "tpu.trace_start"() <{level = 10 : i32, message = "bqk,bkd->bqd"}> : () -> ()
    %cst_19 = arith.constant dense<0.000000e+00> : vector<2x16x128xf32>
    %58 = tpu.matmul %57, %45, %cst_19 {dimension_numbers = #tpu.dot_dimension_numbers<[2], [1], [1], [2], [0, 0, 0, 1, 1, 2], [0], [0]>} : vector<2x16x16xbf16>, vector<2x16x128xbf16>, vector<2x16x128xf32> -> vector<2x16x128xf32>
    "tpu.trace_stop"() : () -> ()
    %59 = vector.extract_strided_slice %36 {offsets = [0, 0, 128], sizes = [2, 16, 128], strides = [1, 1, 1]} : vector<2x16x256xbf16> to vector<2x16x128xbf16>
    %60 = vector.extract_strided_slice %39 {offsets = [0, 0, 128], sizes = [2, 16, 128], strides = [1, 1, 1]} : vector<2x16x256xbf16> to vector<2x16x128xbf16>
    %61 = vector.extract_strided_slice %42 {offsets = [0, 0, 128], sizes = [2, 16, 128], strides = [1, 1, 1]} : vector<2x16x256xbf16> to vector<2x16x128xbf16>
    "tpu.trace_start"() <{level = 10 : i32, message = "bqd,bkd->bqk"}> : () -> ()
    %cst_20 = arith.constant dense<0.000000e+00> : vector<2x16x16xf32>
    %62 = tpu.matmul %59, %60, %cst_20 {dimension_numbers = #tpu.dot_dimension_numbers<[2], [2], [1], [1], [0, 0, 0, 1, 1, 1], [0], [0]>} : vector<2x16x128xbf16>, vector<2x16x128xbf16>, vector<2x16x16xf32> -> vector<2x16x16xf32>
    "tpu.trace_stop"() : () -> ()
    %cst_21 = arith.constant dense<0xFF800000> : vector<2x16xf32>
    %63 = vector.multi_reduction <maximumf>, %62, %cst_21 [2] : vector<2x16x16xf32> to vector<2x16xf32>
    %64 = vector.shape_cast %63 : vector<2x16xf32> to vector<2x16x1xf32>
    %65 = vector.broadcast %64 : vector<2x16x1xf32> to vector<2x16x16xf32>
    %66 = arith.subf %62, %65 : vector<2x16x16xf32>
    %67 = math.exp %66 : vector<2x16x16xf32>
    %cst_22 = arith.constant dense<0.000000e+00> : vector<2x16xf32>
    %68 = vector.multi_reduction <add>, %67, %cst_22 [2] : vector<2x16x16xf32> to vector<2x16xf32>
    %69 = vector.shape_cast %68 : vector<2x16xf32> to vector<2x16x1xf32>
    %70 = tpu.reciprocal %69 {approx = true} : vector<2x16x1xf32> -> vector<2x16x1xf32>
    %71 = vector.broadcast %70 : vector<2x16x1xf32> to vector<2x16x16xf32>
    %72 = arith.mulf %67, %71 : vector<2x16x16xf32>
    %73 = arith.truncf %72 : vector<2x16x16xf32> to vector<2x16x16xbf16>
    "tpu.trace_start"() <{level = 10 : i32, message = "bqk,bkd->bqd"}> : () -> ()
    %cst_23 = arith.constant dense<0.000000e+00> : vector<2x16x128xf32>
    %74 = tpu.matmul %73, %61, %cst_23 {dimension_numbers = #tpu.dot_dimension_numbers<[2], [1], [1], [2], [0, 0, 0, 1, 1, 2], [0], [0]>} : vector<2x16x16xbf16>, vector<2x16x128xbf16>, vector<2x16x128xf32> -> vector<2x16x128xf32>
    "tpu.trace_stop"() : () -> ()
    %75 = tpu.concatenate %58, %74 in 2 : vector<2x16x128xf32>, vector<2x16x128xf32> -> vector<2x16x256xf32>
    %76 = vector.shape_cast %75 : vector<2x16x256xf32> to vector<32x256xf32>
    %77 = arith.truncf %76 : vector<32x256xf32> to vector<32x256xbf16>
    %c0_24 = arith.constant 0 : index
    %c0_25 = arith.constant 0 : index
    %78 = vector.load %arg6[%c0_24, %c0_25] : memref<256x256xbf16, #tpu.memory_space<vmem>>, vector<256x256xbf16>
    %cst_26 = arith.constant dense<0.000000e+00> : vector<32x256xf32>
    %79 = tpu.matmul %77, %78, %cst_26 {dimension_numbers = #tpu.dot_dimension_numbers<[1], [0], [0], [1], [0, 0, 1, 1], [], []>} : vector<32x256xbf16>, vector<256x256xbf16>, vector<32x256xf32> -> vector<32x256xf32>
    %c0_27 = arith.constant 0 : index
    %c0_28 = arith.constant 0 : index
    %80 = vector.load %arg7[%c0_27, %c0_28] : memref<1x256xf32, #tpu.memory_space<vmem>>, vector<1x256xf32>
    %81 = vector.broadcast %80 : vector<1x256xf32> to vector<32x256xf32>
    %82 = arith.addf %79, %81 : vector<32x256xf32>
    %83 = arith.addf %1, %82 : vector<32x256xf32>
    %c0_29 = arith.constant 0 : index
    %c0_30 = arith.constant 0 : index
    %84 = vector.load %arg8[%c0_29, %c0_30] : memref<1x256xf32, #tpu.memory_space<vmem>>, vector<1x256xf32>
    %c0_31 = arith.constant 0 : index
    %c0_32 = arith.constant 0 : index
    %85 = vector.load %arg9[%c0_31, %c0_32] : memref<1x256xf32, #tpu.memory_space<vmem>>, vector<1x256xf32>
    %cst_33 = arith.constant dense<0.000000e+00> : vector<32xf32>
    %86 = vector.multi_reduction <add>, %83, %cst_33 [1] : vector<32x256xf32> to vector<32xf32>
    %87 = vector.shape_cast %86 : vector<32xf32> to vector<32x1xf32>
    %cst_34 = arith.constant 2.560000e+02 : f32
    %88 = vector.broadcast %cst_34 : f32 to vector<32x1xf32>
    %89 = arith.divf %87, %88 : vector<32x1xf32>
    %90 = vector.broadcast %89 : vector<32x1xf32> to vector<32x256xf32>
    %91 = arith.subf %83, %90 : vector<32x256xf32>
    %92 = arith.mulf %91, %91 : vector<32x256xf32>
    %cst_35 = arith.constant dense<0.000000e+00> : vector<32xf32>
    %93 = vector.multi_reduction <add>, %92, %cst_35 [1] : vector<32x256xf32> to vector<32xf32>
    %94 = vector.shape_cast %93 : vector<32xf32> to vector<32x1xf32>
    %cst_36 = arith.constant 2.560000e+02 : f32
    %95 = vector.broadcast %cst_36 : f32 to vector<32x1xf32>
    %96 = arith.divf %94, %95 : vector<32x1xf32>
    %97 = vector.broadcast %89 : vector<32x1xf32> to vector<32x256xf32>
    %98 = arith.subf %83, %97 : vector<32x256xf32>
    %cst_37 = arith.constant 9.99999997E-7 : f32
    %99 = vector.broadcast %cst_37 : f32 to vector<32x1xf32>
    %100 = arith.addf %96, %99 : vector<32x1xf32>
    %101 = math.rsqrt %100 : vector<32x1xf32>
    %102 = vector.broadcast %101 : vector<32x1xf32> to vector<32x256xf32>
    %103 = arith.mulf %98, %102 : vector<32x256xf32>
    %104 = vector.broadcast %84 : vector<1x256xf32> to vector<32x256xf32>
    %105 = arith.mulf %103, %104 : vector<32x256xf32>
    %106 = vector.broadcast %85 : vector<1x256xf32> to vector<32x256xf32>
    %107 = arith.addf %105, %106 : vector<32x256xf32>
    %108 = arith.truncf %107 : vector<32x256xf32> to vector<32x256xbf16>
    %c0_38 = arith.constant 0 : index
    %c0_39 = arith.constant 0 : index
    %109 = vector.load %arg10[%c0_38, %c0_39] : memref<256x512xbf16, #tpu.memory_space<vmem>>, vector<256x512xbf16>
    %cst_40 = arith.constant dense<0.000000e+00> : vector<32x512xf32>
    %110 = tpu.matmul %108, %109, %cst_40 {dimension_numbers = #tpu.dot_dimension_numbers<[1], [0], [0], [1], [0, 0, 1, 1], [], []>} : vector<32x256xbf16>, vector<256x512xbf16>, vector<32x512xf32> -> vector<32x512xf32>
    %c0_41 = arith.constant 0 : index
    %c0_42 = arith.constant 0 : index
    %111 = vector.load %arg11[%c0_41, %c0_42] : memref<1x512xf32, #tpu.memory_space<vmem>>, vector<1x512xf32>
    %112 = vector.broadcast %111 : vector<1x512xf32> to vector<32x512xf32>
    %113 = arith.addf %110, %112 : vector<32x512xf32>
    %cst_43 = arith.constant 5.000000e-01 : f32
    %114 = vector.broadcast %cst_43 : f32 to vector<32x512xf32>
    %115 = arith.mulf %114, %113 : vector<32x512xf32>
    %cst_44 = arith.constant 0.707106769 : f32
    %116 = vector.broadcast %cst_44 : f32 to vector<32x512xf32>
    %117 = arith.mulf %113, %116 : vector<32x512xf32>
    %cst_45 = arith.constant 0.000000e+00 : f32
    %118 = vector.broadcast %cst_45 : f32 to vector<32x512xf32>
    %119 = arith.cmpf oge, %117, %118 : vector<32x512xf32>
    %cst_46 = arith.constant 1.000000e+00 : f32
    %cst_47 = arith.constant -1.000000e+00 : f32
    %120 = vector.broadcast %cst_46 : f32 to vector<32x512xf32>
    %121 = vector.broadcast %cst_47 : f32 to vector<32x512xf32>
    %122 = arith.select %119, %120, %121 : vector<32x512xi1>, vector<32x512xf32>
    %123 = math.absf %117 : vector<32x512xf32>
    %cst_48 = arith.constant 0.327591091 : f32
    %124 = vector.broadcast %cst_48 : f32 to vector<32x512xf32>
    %125 = arith.mulf %124, %123 : vector<32x512xf32>
    %cst_49 = arith.constant 1.000000e+00 : f32
    %126 = vector.broadcast %cst_49 : f32 to vector<32x512xf32>
    %127 = arith.addf %126, %125 : vector<32x512xf32>
    %cst_50 = arith.constant 1.000000e+00 : f32
    %128 = vector.broadcast %cst_50 : f32 to vector<32x512xf32>
    %129 = arith.divf %128, %127 : vector<32x512xf32>
    %cst_51 = arith.constant 1.06140542 : f32
    %130 = vector.broadcast %cst_51 : f32 to vector<32x512xf32>
    %131 = arith.mulf %130, %129 : vector<32x512xf32>
    %cst_52 = arith.constant -1.45315206 : f32
    %132 = vector.broadcast %cst_52 : f32 to vector<32x512xf32>
    %133 = arith.addf %131, %132 : vector<32x512xf32>
    %134 = arith.mulf %133, %129 : vector<32x512xf32>
    %cst_53 = arith.constant 1.42141378 : f32
    %135 = vector.broadcast %cst_53 : f32 to vector<32x512xf32>
    %136 = arith.addf %134, %135 : vector<32x512xf32>
    %137 = arith.mulf %136, %129 : vector<32x512xf32>
    %cst_54 = arith.constant -0.284496725 : f32
    %138 = vector.broadcast %cst_54 : f32 to vector<32x512xf32>
    %139 = arith.addf %137, %138 : vector<32x512xf32>
    %140 = arith.mulf %139, %129 : vector<32x512xf32>
    %cst_55 = arith.constant 0.254829586 : f32
    %141 = vector.broadcast %cst_55 : f32 to vector<32x512xf32>
    %142 = arith.addf %140, %141 : vector<32x512xf32>
    %143 = arith.mulf %142, %129 : vector<32x512xf32>
    %cst_56 = arith.constant 0.000000e+00 : f32
    %144 = vector.broadcast %cst_56 : f32 to vector<32x512xf32>
    %145 = arith.subf %144, %123 : vector<32x512xf32>
    %146 = arith.mulf %145, %123 : vector<32x512xf32>
    %147 = math.exp %146 : vector<32x512xf32>
    %148 = arith.mulf %143, %147 : vector<32x512xf32>
    %cst_57 = arith.constant 1.000000e+00 : f32
    %149 = vector.broadcast %cst_57 : f32 to vector<32x512xf32>
    %150 = arith.subf %149, %148 : vector<32x512xf32>
    %151 = arith.mulf %122, %150 : vector<32x512xf32>
    %cst_58 = arith.constant 1.000000e+00 : f32
    %152 = vector.broadcast %cst_58 : f32 to vector<32x512xf32>
    %153 = arith.addf %152, %151 : vector<32x512xf32>
    %154 = arith.mulf %115, %153 : vector<32x512xf32>
    %155 = arith.truncf %154 : vector<32x512xf32> to vector<32x512xbf16>
    %c0_59 = arith.constant 0 : index
    %c0_60 = arith.constant 0 : index
    %156 = vector.load %arg12[%c0_59, %c0_60] : memref<512x256xbf16, #tpu.memory_space<vmem>>, vector<512x256xbf16>
    %cst_61 = arith.constant dense<0.000000e+00> : vector<32x256xf32>
    %157 = tpu.matmul %155, %156, %cst_61 {dimension_numbers = #tpu.dot_dimension_numbers<[1], [0], [0], [1], [0, 0, 1, 1], [], []>} : vector<32x512xbf16>, vector<512x256xbf16>, vector<32x256xf32> -> vector<32x256xf32>
    %c0_62 = arith.constant 0 : index
    %c0_63 = arith.constant 0 : index
    %158 = vector.load %arg13[%c0_62, %c0_63] : memref<1x256xf32, #tpu.memory_space<vmem>>, vector<1x256xf32>
    %159 = vector.broadcast %158 : vector<1x256xf32> to vector<32x256xf32>
    %160 = arith.addf %157, %159 : vector<32x256xf32>
    %161 = arith.addf %83, %160 : vector<32x256xf32>
    %162 = vector.shape_cast %161 : vector<32x256xf32> to vector<2x16x256xf32>
    %c0_64 = arith.constant 0 : index
    %c0_65 = arith.constant 0 : index
    %c0_66 = arith.constant 0 : index
    %163 = vector.load %arg14[%c0_64, %c0_65, %c0_66] : memref<2x16x256xf32, #tpu.memory_space<vmem>>, vector<2x16x256xf32>
    tpu.vector_store %arg14[%c0_64, %c0_65, %c0_66], %162 {strides = array<i32>} : memref<2x16x256xf32, #tpu.memory_space<vmem>>, vector<2x16x256xf32>,
    return
  }
  func.func @transform_0(%arg0: i32) -> (i32, i32, i32) {
    %c0_i32 = arith.constant 0 : i32
    %c0_i32_0 = arith.constant 0 : i32
    %c0_i32_1 = arith.constant 0 : i32
    return %arg0, %c0_i32, %c0_i32_0 : i32, i32, i32
  }
  func.func @transform_1(%arg0: i32) -> (i32, i32) {
    %c0_i32 = arith.constant 0 : i32
    %c0_i32_0 = arith.constant 0 : i32
    %c0_i32_1 = arith.constant 0 : i32
    return %c0_i32, %c0_i32_0 : i32, i32
  }
  func.func @transform_2(%arg0: i32) -> (i32, i32) {
    %c0_i32 = arith.constant 0 : i32
    %c0_i32_0 = arith.constant 0 : i32
    %c0_i32_1 = arith.constant 0 : i32
    return %c0_i32, %c0_i32_0 : i32, i32
  }
  func.func @transform_3(%arg0: i32) -> (i32, i32) {
    %c0_i32 = arith.constant 0 : i32
    %c0_i32_0 = arith.constant 0 : i32
    %c0_i32_1 = arith.constant 0 : i32
    return %c0_i32, %c0_i32_0 : i32, i32
  }
  func.func @transform_4(%arg0: i32) -> (i32, i32) {
    %c0_i32 = arith.constant 0 : i32
    %c0_i32_0 = arith.constant 0 : i32
    %c0_i32_1 = arith.constant 0 : i32
    return %c0_i32, %c0_i32_0 : i32, i32
  }
  func.func @transform_5(%arg0: i32) -> (i32, i32) {
    %c0_i32 = arith.constant 0 : i32
    %c0_i32_0 = arith.constant 0 : i32
    %c0_i32_1 = arith.constant 0 : i32
    return %c0_i32, %c0_i32_0 : i32, i32
  }
  func.func @transform_6(%arg0: i32) -> (i32, i32) {
    %c0_i32 = arith.constant 0 : i32
    %c0_i32_0 = arith.constant 0 : i32
    %c0_i32_1 = arith.constant 0 : i32
    return %c0_i32, %c0_i32_0 : i32, i32
  }
  func.func @transform_7(%arg0: i32) -> (i32, i32) {
    %c0_i32 = arith.constant 0 : i32
    %c0_i32_0 = arith.constant 0 : i32
    %c0_i32_1 = arith.constant 0 : i32
    return %c0_i32, %c0_i32_0 : i32, i32
  }
  func.func @transform_8(%arg0: i32) -> (i32, i32) {
    %c0_i32 = arith.constant 0 : i32
    %c0_i32_0 = arith.constant 0 : i32
    %c0_i32_1 = arith.constant 0 : i32
    return %c0_i32, %c0_i32_0 : i32, i32
  }
  func.func @transform_9(%arg0: i32) -> (i32, i32) {
    %c0_i32 = arith.constant 0 : i32
    %c0_i32_0 = arith.constant 0 : i32
    %c0_i32_1 = arith.constant 0 : i32
    return %c0_i32, %c0_i32_0 : i32, i32
  }
  func.func @transform_10(%arg0: i32) -> (i32, i32) {
    %c0_i32 = arith.constant 0 : i32
    %c0_i32_0 = arith.constant 0 : i32
    %c0_i32_1 = arith.constant 0 : i32
    return %c0_i32, %c0_i32_0 : i32, i32
  }
  func.func @transform_11(%arg0: i32) -> (i32, i32) {
    %c0_i32 = arith.constant 0 : i32
    %c0_i32_0 = arith.constant 0 : i32
    %c0_i32_1 = arith.constant 0 : i32
    return %c0_i32, %c0_i32_0 : i32, i32
  }
  func.func @transform_12(%arg0: i32) -> (i32, i32) {
    %c0_i32 = arith.constant 0 : i32
    %c0_i32_0 = arith.constant 0 : i32
    %c0_i32_1 = arith.constant 0 : i32
    return %c0_i32, %c0_i32_0 : i32, i32
  }
  func.func @transform_13(%arg0: i32) -> (i32, i32, i32) {
    %c0_i32 = arith.constant 0 : i32
    %c0_i32_0 = arith.constant 0 : i32
    %c0_i32_1 = arith.constant 0 : i32
    return %arg0, %c0_i32, %c0_i32_0 : i32, i32, i32
  }
}

</mosaic_0001>

<llo_original>
// kernel: tpu_custom_call.1
$region0: #{tpu_custom_call.1}
  #allocation0 [shape = 'u32[]', space=smem, size = 0x4, offset = 0x4, fixed_abs, tag = 'smem constant byte address 0x4 - core index']
  #allocation1 [shape = 'u32[144,128]{1,0:T(1,128)}', space=vmem, size = 0x12000, scoped, tag = 'internal scratch']
  %s0 = inlined_call_operand.hbm [shape: f32[4,16,256], index: 0, kind: input, shape index: {}]
  %s1 = inlined_call_operand.hbm [shape: f32[1,256], index: 1, kind: input, shape index: {}]
  %s2 = inlined_call_operand.hbm [shape: f32[1,256], index: 2, kind: input, shape index: {}]
  %s3 = inlined_call_operand.hbm [shape: bf16[256,768], index: 3, kind: input, shape index: {}]
  %s4 = inlined_call_operand.vmem [shape: f32[1,768], index: 4, kind: input, shape index: {}]
  %s5 = inlined_call_operand.hbm [shape: bf16[256,256], index: 5, kind: input, shape index: {}]
  %s6 = inlined_call_operand.vmem [shape: f32[1,256], index: 6, kind: input, shape index: {}]
  %s7 = inlined_call_operand.vmem [shape: f32[1,256], index: 7, kind: input, shape index: {}]
  %s8 = inlined_call_operand.vmem [shape: f32[1,256], index: 8, kind: input, shape index: {}]
  %s9 = inlined_call_operand.hbm [shape: bf16[256,512], index: 9, kind: input, shape index: {}]
  %s10 = inlined_call_operand.vmem [shape: f32[1,512], index: 10, kind: input, shape index: {}]
  %s11 = inlined_call_operand.hbm [shape: bf16[512,256], index: 11, kind: input, shape index: {}]
  %s12 = inlined_call_operand.vmem [shape: f32[1,256], index: 12, kind: input, shape index: {}]
  %s13 = inlined_call_operand.hbm [shape: f32[4,16,256], index: 13, kind: output, shape index: {}]
  %s14 = sld [smem:[#allocation0]]
  $region113: #{tpu_custom_call.1} parent=0
    _
  %s16 = ssub.s32 1, %s14
  %s17 = scalar_select 0, %s16, %s14
  $region1: #{tpu_custom_call.1} parent=0
    #allocation2 [shape = 'u8[65536]{0}', space=vmem, size = 0x10000, scoped, tag = 'input window, operand 0']
    #allocation3 [shape = 's32[2]{0}', space=sflag, size = 0x8, scoped, tag = 'scoped memory for tpu_custom_call.1']
    #allocation4 [shape = 's32[2]{0}', space=sflag, size = 0x8, scoped, tag = 'scoped memory for tpu_custom_call.1']
    #allocation5 [shape = 'u8[1024]{0}', space=vmem, size = 0x400, scoped, tag = 'input window, operand 1, single buffered']
    #allocation6 [shape = 's32[1]{0}', space=sflag, size = 0x4, scoped, tag = 'scoped memory for tpu_custom_call.1']
    #allocation7 [shape = 'u8[1024]{0}', space=vmem, size = 0x400, scoped, tag = 'input window, operand 2, single buffered']
    #allocation8 [shape = 'u8[393216]{0}', space=vmem, size = 0x60000, scoped, tag = 'input window, operand 3, single buffered']
    #allocation9 [shape = 's32[1]{0}', space=sflag, size = 0x4, scoped, tag = 'scoped memory for tpu_custom_call.1']
    #allocation10 [shape = 'u8[131072]{0}', space=vmem, size = 0x20000, scoped, tag = 'input window, operand 5, single buffered']
    #allocation11 [shape = 'u8[262144]{0}', space=vmem, size = 0x40000, scoped, tag = 'input window, operand 9, single buffered']
    #allocation12 [shape = 's32[1]{0}', space=sflag, size = 0x4, scoped, tag = 'scoped memory for tpu_custom_call.1']
    #allocation13 [shape = 'u8[262144]{0}', space=vmem, size = 0x40000, scoped, tag = 'input window, operand 11, single buffered']
    #allocation14 [shape = 'u8[65536]{0}', space=vmem, size = 0x10000, scoped, tag = 'output window, operand 0']
    %18 = vsyncpa [#allocation3], 0
    %s19 = scalar_lea.sflag [#allocation3], 1
    %20 = vsyncpa %s19, 0
    %21 = vsyncpa [#allocation6], 0
    %22 = vsyncpa [#allocation9], 0
    %23 = vsyncpa [#allocation12], 0
    %24 = vsyncpa [#allocation4], 0
    %s25 = scalar_lea.sflag [#allocation4], 1
    %26 = vsyncpa %s25, 0
    loop: start=0, step=1, limit=4
    $region2: #{tpu_custom_call.1} parent=1 // loop_pre_header
      _
    $region3: #{tpu_custom_call.1} parent=1 // loop_header
      %s28 = sphi 0, %s32
      %p29 = scmp.ge.s32.totalorder %s28, 4
      %s38 = sphi 0, %s40
      %s41 = sphi 0, %s38
      %s42 = sphi 0, %s41
      %s58 = sphi 0, %s42
      %s62 = sphi 0, %s62
      %s64 = sphi 0, %s62
      %s65 = sphi 0, %s64
      %s79 = sphi 0, %s65
      %s83 = sphi 0, %s83
      %s85 = sphi 0, %s83
      %s86 = sphi 0, %s85
      %s100 = sphi 0, %s86
      %s104 = sphi 0, %s104
      %s106 = sphi 0, %s104
      %s107 = sphi 0, %s106
      %s121 = sphi 0, %s107
      %s125 = sphi 0, %s125
      %s127 = sphi 0, %s125
      %s128 = sphi 0, %s127
      %s142 = sphi 0, %s128
      %s146 = sphi 0, %s146
      %s148 = sphi 0, %s146
      %s149 = sphi 0, %s148
      %s163 = sphi 0, %s149
      %s167 = sphi 0, %s167
      %s169 = sphi 0, %s167
      %s170 = sphi 0, %s169
      %s184 = sphi 0, %s170
      %s188 = sphi 0, %s188
      %s190 = sphi 0, %s188
      %s191 = sphi 0, %s190
      %s205 = sphi 0, %s191
      %s209 = sphi 0, %s209
      %s211 = sphi 0, %s209
      %s212 = sphi 0, %s211
      %s226 = sphi 0, %s212
      %s230 = sphi 0, %s230
      %s232 = sphi 0, %s230
      %s233 = sphi 0, %s232
      %s247 = sphi 0, %s233
      %s251 = sphi 0, %s251
      %s253 = sphi 0, %s251
      %s254 = sphi 0, %s253
      %s268 = sphi 0, %s254
      %s272 = sphi 0, %s272
      %s274 = sphi 0, %s272
      %s275 = sphi 0, %s274
      %s289 = sphi 0, %s275
      %s293 = sphi 0, %s293
      %s295 = sphi 0, %s293
      %s296 = sphi 0, %s295
      %s310 = sphi 0, %s296
      %s316 = sphi 0, %s318
      %s319 = sphi 0, %s316
      %s320 = sphi 0, %s319
      %s336 = sphi 0, %s320
    $region4: #{tpu_custom_call.1} parent=1 // loop_header_branch
      %31 = sbr.rel (%p29) target = $region8
    $region5: #{tpu_custom_call.1} parent=1 // loop_body
      %s33 = ssub.s32 %s28, 1
      %s34 = ssub.s32 %s28, 2
      %s35 = sadd.s32 %s28, 1
      %s36 = ssub.s32 %s28, %s35
      %p37 = scmp.eq.s32.totalorder %s36, 0
      %s39 = sadd.s32 %s38, 1
      %s40 = scalar_select %p37, %s38, %s39
      %p43 = pneg %p37
      %p44 = scmp.eq.s32.totalorder %s28, 1
      %p45 = por %p43, %p44
      %p46 = scmp.ne.s32.totalorder %s38, %s41
      %p47 = scmp.eq.s32.totalorder %s28, 0
      %p48 = por %p46, %p47
      %p49 = scmp.ne.s32.totalorder %s38, %s41
      %p50 = scmp.eq.s32.totalorder %s33, 1
      %p51 = por %p49, %p50
      %p52 = scmp.ne.s32.totalorder %s41, %s42
      %p53 = scmp.eq.s32.totalorder %s33, 0
      %p54 = por %p52, %p53
      %p55 = scmp.ne.s32.totalorder %s41, %s42
      %p56 = scmp.eq.s32.totalorder %s34, 1
      %p57 = por %p55, %p56
      %p59 = scmp.ne.s32.totalorder %s42, %s58
      %p60 = scmp.eq.s32.totalorder %s34, 0
      %p61 = por %p59, %p60
      %s63 = sadd.s32 %s62, 1
      %p66 = scmp.eq.s32.totalorder %s28, 1
      %p67 = scmp.ne.s32.totalorder %s62, %s64
      %p68 = scmp.eq.s32.totalorder %s28, 0
      %p69 = por %p67, %p68
      %p70 = scmp.ne.s32.totalorder %s62, %s64
      %p71 = scmp.eq.s32.totalorder %s33, 1
      %p72 = por %p70, %p71
      %p73 = scmp.ne.s32.totalorder %s64, %s65
      %p74 = scmp.eq.s32.totalorder %s33, 0
      %p75 = por %p73, %p74
      %p76 = scmp.ne.s32.totalorder %s64, %s65
      %p77 = scmp.eq.s32.totalorder %s34, 1
      %p78 = por %p76, %p77
      %p80 = scmp.ne.s32.totalorder %s65, %s79
      %p81 = scmp.eq.s32.totalorder %s34, 0
      %p82 = por %p80, %p81
      %s84 = sadd.s32 %s83, 1
      %p87 = scmp.eq.s32.totalorder %s28, 1
      %p88 = scmp.ne.s32.totalorder %s83, %s85
      %p89 = scmp.eq.s32.totalorder %s28, 0
      %p90 = por %p88, %p89
      %p91 = scmp.ne.s32.totalorder %s83, %s85
      %p92 = scmp.eq.s32.totalorder %s33, 1
      %p93 = por %p91, %p92
      %p94 = scmp.ne.s32.totalorder %s85, %s86
      %p95 = scmp.eq.s32.totalorder %s33, 0
      %p96 = por %p94, %p95
      %p97 = scmp.ne.s32.totalorder %s85, %s86
      %p98 = scmp.eq.s32.totalorder %s34, 1
      %p99 = por %p97, %p98
      %p101 = scmp.ne.s32.totalorder %s86, %s100
      %p102 = scmp.eq.s32.totalorder %s34, 0
      %p103 = por %p101, %p102
      %s105 = sadd.s32 %s104, 1
      %p108 = scmp.eq.s32.totalorder %s28, 1
      %p109 = scmp.ne.s32.totalorder %s104, %s106
      %p110 = scmp.eq.s32.totalorder %s28, 0
      %p111 = por %p109, %p110
      %p112 = scmp.ne.s32.totalorder %s104, %s106
      %p113 = scmp.eq.s32.totalorder %s33, 1
      %p114 = por %p112, %p113
      %p115 = scmp.ne.s32.totalorder %s106, %s107
      %p116 = scmp.eq.s32.totalorder %s33, 0
      %p117 = por %p115, %p116
      %p118 = scmp.ne.s32.totalorder %s106, %s107
      %p119 = scmp.eq.s32.totalorder %s34, 1
      %p120 = por %p118, %p119
      %p122 = scmp.ne.s32.totalorder %s107, %s121
      %p123 = scmp.eq.s32.totalorder %s34, 0
      %p124 = por %p122, %p123
      %s126 = sadd.s32 %s125, 1
      %p129 = scmp.eq.s32.totalorder %s28, 1
      %p130 = scmp.ne.s32.totalorder %s125, %s127
      %p131 = scmp.eq.s32.totalorder %s28, 0
      %p132 = por %p130, %p131
      %p133 = scmp.ne.s32.totalorder %s125, %s127
      %p134 = scmp.eq.s32.totalorder %s33, 1
      %p135 = por %p133, %p134
      %p136 = scmp.ne.s32.totalorder %s127, %s128
      %p137 = scmp.eq.s32.totalorder %s33, 0
      %p138 = por %p136, %p137
      %p139 = scmp.ne.s32.totalorder %s127, %s128
      %p140 = scmp.eq.s32.totalorder %s34, 1
      %p141 = por %p139, %p140
      %p143 = scmp.ne.s32.totalorder %s128, %s142
      %p144 = scmp.eq.s32.totalorder %s34, 0
      %p145 = por %p143, %p144
      %s147 = sadd.s32 %s146, 1
      %p150 = scmp.eq.s32.totalorder %s28, 1
      %p151 = scmp.ne.s32.totalorder %s146, %s148
      %p152 = scmp.eq.s32.totalorder %s28, 0
      %p153 = por %p151, %p152
      %p154 = scmp.ne.s32.totalorder %s146, %s148
      %p155 = scmp.eq.s32.totalorder %s33, 1
      %p156 = por %p154, %p155
      %p157 = scmp.ne.s32.totalorder %s148, %s149
      %p158 = scmp.eq.s32.totalorder %s33, 0
      %p159 = por %p157, %p158
      %p160 = scmp.ne.s32.totalorder %s148, %s149
      %p161 = scmp.eq.s32.totalorder %s34, 1
      %p162 = por %p160, %p161
      %p164 = scmp.ne.s32.totalorder %s149, %s163
      %p165 = scmp.eq.s32.totalorder %s34, 0
      %p166 = por %p164, %p165
      %s168 = sadd.s32 %s167, 1
      %p171 = scmp.eq.s32.totalorder %s28, 1
      %p172 = scmp.ne.s32.totalorder %s167, %s169
      %p173 = scmp.eq.s32.totalorder %s28, 0
      %p174 = por %p172, %p173
      %p175 = scmp.ne.s32.totalorder %s167, %s169
      %p176 = scmp.eq.s32.totalorder %s33, 1
      %p177 = por %p175, %p176
      %p178 = scmp.ne.s32.totalorder %s169, %s170
      %p179 = scmp.eq.s32.totalorder %s33, 0
      %p180 = por %p178, %p179
      %p181 = scmp.ne.s32.totalorder %s169, %s170
      %p182 = scmp.eq.s32.totalorder %s34, 1
      %p183 = por %p181, %p182
      %p185 = scmp.ne.s32.totalorder %s170, %s184
      %p186 = scmp.eq.s32.totalorder %s34, 0
      %p187 = por %p185, %p186
      %s189 = sadd.s32 %s188, 1
      %p192 = scmp.eq.s32.totalorder %s28, 1
      %p193 = scmp.ne.s32.totalorder %s188, %s190
      %p194 = scmp.eq.s32.totalorder %s28, 0
      %p195 = por %p193, %p194
      %p196 = scmp.ne.s32.totalorder %s188, %s190
      %p197 = scmp.eq.s32.totalorder %s33, 1
      %p198 = por %p196, %p197
      %p199 = scmp.ne.s32.totalorder %s190, %s191
      %p200 = scmp.eq.s32.totalorder %s33, 0
      %p201 = por %p199, %p200
      %p202 = scmp.ne.s32.totalorder %s190, %s191
      %p203 = scmp.eq.s32.totalorder %s34, 1
      %p204 = por %p202, %p203
      %p206 = scmp.ne.s32.totalorder %s191, %s205
      %p207 = scmp.eq.s32.totalorder %s34, 0
      %p208 = por %p206, %p207
      %s210 = sadd.s32 %s209, 1
      %p213 = scmp.eq.s32.totalorder %s28, 1
      %p214 = scmp.ne.s32.totalorder %s209, %s211
      %p215 = scmp.eq.s32.totalorder %s28, 0
      %p216 = por %p214, %p215
      %p217 = scmp.ne.s32.totalorder %s209, %s211
      %p218 = scmp.eq.s32.totalorder %s33, 1
      %p219 = por %p217, %p218
      %p220 = scmp.ne.s32.totalorder %s211, %s212
      %p221 = scmp.eq.s32.totalorder %s33, 0
      %p222 = por %p220, %p221
      %p223 = scmp.ne.s32.totalorder %s211, %s212
      %p224 = scmp.eq.s32.totalorder %s34, 1
      %p225 = por %p223, %p224
      %p227 = scmp.ne.s32.totalorder %s212, %s226
      %p228 = scmp.eq.s32.totalorder %s34, 0
      %p229 = por %p227, %p228
      %s231 = sadd.s32 %s230, 1
      %p234 = scmp.eq.s32.totalorder %s28, 1
      %p235 = scmp.ne.s32.totalorder %s230, %s232
      %p236 = scmp.eq.s32.totalorder %s28, 0
      %p237 = por %p235, %p236
      %p238 = scmp.ne.s32.totalorder %s230, %s232
      %p239 = scmp.eq.s32.totalorder %s33, 1
      %p240 = por %p238, %p239
      %p241 = scmp.ne.s32.totalorder %s232, %s233
      %p242 = scmp.eq.s32.totalorder %s33, 0
      %p243 = por %p241, %p242
      %p244 = scmp.ne.s32.totalorder %s232, %s233
      %p245 = scmp.eq.s32.totalorder %s34, 1
      %p246 = por %p244, %p245
      %p248 = scmp.ne.s32.totalorder %s233, %s247
      %p249 = scmp.eq.s32.totalorder %s34, 0
      %p250 = por %p248, %p249
      %s252 = sadd.s32 %s251, 1
      %p255 = scmp.eq.s32.totalorder %s28, 1
      %p256 = scmp.ne.s32.totalorder %s251, %s253
      %p257 = scmp.eq.s32.totalorder %s28, 0
      %p258 = por %p256, %p257
      %p259 = scmp.ne.s32.totalorder %s251, %s253
      %p260 = scmp.eq.s32.totalorder %s33, 1
      %p261 = por %p259, %p260
      %p262 = scmp.ne.s32.totalorder %s253, %s254
      %p263 = scmp.eq.s32.totalorder %s33, 0
      %p264 = por %p262, %p263
      %p265 = scmp.ne.s32.totalorder %s253, %s254
      %p266 = scmp.eq.s32.totalorder %s34, 1
      %p267 = por %p265, %p266
      %p269 = scmp.ne.s32.totalorder %s254, %s268
      %p270 = scmp.eq.s32.totalorder %s34, 0
      %p271 = por %p269, %p270
      %s273 = sadd.s32 %s272, 1
      %p276 = scmp.eq.s32.totalorder %s28, 1
      %p277 = scmp.ne.s32.totalorder %s272, %s274
      %p278 = scmp.eq.s32.totalorder %s28, 0
      %p279 = por %p277, %p278
      %p280 = scmp.ne.s32.totalorder %s272, %s274
      %p281 = scmp.eq.s32.totalorder %s33, 1
      %p282 = por %p280, %p281
      %p283 = scmp.ne.s32.totalorder %s274, %s275
      %p284 = scmp.eq.s32.totalorder %s33, 0
      %p285 = por %p283, %p284
      %p286 = scmp.ne.s32.totalorder %s274, %s275
      %p287 = scmp.eq.s32.totalorder %s34, 1
      %p288 = por %p286, %p287
      %p290 = scmp.ne.s32.totalorder %s275, %s289
      %p291 = scmp.eq.s32.totalorder %s34, 0
      %p292 = por %p290, %p291
      %s294 = sadd.s32 %s293, 1
      %p297 = scmp.eq.s32.totalorder %s28, 1
      %p298 = scmp.ne.s32.totalorder %s293, %s295
      %p299 = scmp.eq.s32.totalorder %s28, 0
      %p300 = por %p298, %p299
      %p301 = scmp.ne.s32.totalorder %s293, %s295
      %p302 = scmp.eq.s32.totalorder %s33, 1
      %p303 = por %p301, %p302
      %p304 = scmp.ne.s32.totalorder %s295, %s296
      %p305 = scmp.eq.s32.totalorder %s33, 0
      %p306 = por %p304, %p305
      %p307 = scmp.ne.s32.totalorder %s295, %s296
      %p308 = scmp.eq.s32.totalorder %s34, 1
      %p309 = por %p307, %p308
      %p311 = scmp.ne.s32.totalorder %s296, %s310
      %p312 = scmp.eq.s32.totalorder %s34, 0
      %p313 = por %p311, %p312
      %s314 = ssub.s32 %s28, %s35
      %p315 = scmp.eq.s32.totalorder %s314, 0
      %s317 = sadd.s32 %s316, 1
      %s318 = scalar_select %p315, %s316, %s317
      %p321 = pneg %p315
      %p322 = scmp.eq.s32.totalorder %s28, 1
      %p323 = por %p321, %p322
      %p324 = scmp.ne.s32.totalorder %s316, %s319
      %p325 = scmp.eq.s32.totalorder %s28, 0
      %p326 = por %p324, %p325
      %p327 = scmp.ne.s32.totalorder %s316, %s319
      %p328 = scmp.eq.s32.totalorder %s33, 1
      %p329 = por %p327, %p328
      %p330 = scmp.ne.s32.totalorder %s319, %s320
      %p331 = scmp.eq.s32.totalorder %s33, 0
      %p332 = por %p330, %p331
      %p333 = scmp.ne.s32.totalorder %s319, %s320
      %p334 = scmp.eq.s32.totalorder %s34, 1
      %p335 = por %p333, %p334
      %p337 = scmp.ne.s32.totalorder %s320, %s336
      %p338 = scmp.eq.s32.totalorder %s34, 0
      %p339 = por %p337, %p338
      %p340 = scmp.le.s32.totalorder 1, %s28
      %p341 = scmp.lt.s32.totalorder %s28, 3
      %p342 = pnand %p340, %p341
      %p343 = pneg %p342
      // Predicated region
      $region9: #{tpu_custom_call.1} parent=5 // pred_check
        _
      $region10: #{tpu_custom_call.1} parent=5 // pred_check_branch
        %345 = sbr.rel (%p342) target = $region12
      $region11: #{tpu_custom_call.1} parent=5 // pred_region
        %s346 = ssub.s32 %s28, 1
        // Predicated region
        $region13: #{tpu_custom_call.1} parent=11 // pred_check
          %p347 = pneg %p75
        $region14: #{tpu_custom_call.1} parent=11 // pred_check_branch
          %349 = sbr.rel (%p347) target = $region16
        $region15: #{tpu_custom_call.1} parent=11 // pred_region
          %s351 = ssub.s32 32, 32
          %352 = vsyncadd [#allocation6], %s351
          %s354 = sshll.u32 [#allocation5], 4
          %s355 = int_to_ptr.vmem [resolvable:$true] %s354
          %357 = dma.hbm_to_vmem [thread:$0]  %s1, 32, %s355, [#allocation6]
        $region16: #{tpu_custom_call.1} parent=11 // pred_fallthru
          _
        // Predicated region
        $region17: #{tpu_custom_call.1} parent=11 // pred_check
          %p358 = pneg %p96
        $region18: #{tpu_custom_call.1} parent=11 // pred_check_branch
          %360 = sbr.rel (%p358) target = $region20
        $region19: #{tpu_custom_call.1} parent=11 // pred_region
          %s362 = ssub.s32 32, 32
          %363 = vsyncadd [#allocation6], %s362
          %s365 = sshll.u32 [#allocation7], 4
          %s366 = int_to_ptr.vmem [resolvable:$true] %s365
          %368 = dma.hbm_to_vmem [thread:$0]  %s2, 32, %s366, [#allocation6]
        $region20: #{tpu_custom_call.1} parent=11 // pred_fallthru
          _
        // Predicated region
        $region21: #{tpu_custom_call.1} parent=11 // pred_check
          %p369 = pneg %p117
        $region22: #{tpu_custom_call.1} parent=11 // pred_check_branch
          %371 = sbr.rel (%p369) target = $region24
        $region23: #{tpu_custom_call.1} parent=11 // pred_region
          %s373 = ssub.s32 12288, 12288
          %374 = vsyncadd [#allocation9], %s373
          %s375 = sshll.u32 [#allocation8], 4
          %s376 = int_to_ptr.vmem [resolvable:$true] %s375
          %381 = dma.hbm_to_vmem [thread:$0]  %s3, 12288, %s376, [#allocation9], 384, 384, 24
        $region24: #{tpu_custom_call.1} parent=11 // pred_fallthru
          _
        // Predicated region
        $region25: #{tpu_custom_call.1} parent=11 // pred_check
          %p382 = pneg %p138
        $region26: #{tpu_custom_call.1} parent=11 // pred_check_branch
          %384 = sbr.rel (%p382) target = $region28
        $region27: #{tpu_custom_call.1} parent=11 // pred_region
          _
        $region28: #{tpu_custom_call.1} parent=11 // pred_fallthru
          _
        // Predicated region
        $region29: #{tpu_custom_call.1} parent=11 // pred_check
          %p385 = pneg %p159
        $region30: #{tpu_custom_call.1} parent=11 // pred_check_branch
          %387 = sbr.rel (%p385) target = $region32
        $region31: #{tpu_custom_call.1} parent=11 // pred_region
          %s389 = ssub.s32 4096, 4096
          %390 = vsyncadd [#allocation9], %s389
          %s391 = sshll.u32 [#allocation10], 4
          %s392 = int_to_ptr.vmem [resolvable:$true] %s391
          %397 = dma.hbm_to_vmem [thread:$0]  %s5, 4096, %s392, [#allocation9], 128, 128, 8
        $region32: #{tpu_custom_call.1} parent=11 // pred_fallthru
          _
        // Predicated region
        $region33: #{tpu_custom_call.1} parent=11 // pred_check
          %p398 = pneg %p180
        $region34: #{tpu_custom_call.1} parent=11 // pred_check_branch
          %400 = sbr.rel (%p398) target = $region36
        $region35: #{tpu_custom_call.1} parent=11 // pred_region
          _
        $region36: #{tpu_custom_call.1} parent=11 // pred_fallthru
          _
        // Predicated region
        $region37: #{tpu_custom_call.1} parent=11 // pred_check
          %p401 = pneg %p201
        $region38: #{tpu_custom_call.1} parent=11 // pred_check_branch
          %403 = sbr.rel (%p401) target = $region40
        $region39: #{tpu_custom_call.1} parent=11 // pred_region
          _
        $region40: #{tpu_custom_call.1} parent=11 // pred_fallthru
          _
        // Predicated region
        $region41: #{tpu_custom_call.1} parent=11 // pred_check
          %p404 = pneg %p222
        $region42: #{tpu_custom_call.1} parent=11 // pred_check_branch
          %406 = sbr.rel (%p404) target = $region44
        $region43: #{tpu_custom_call.1} parent=11 // pred_region
          _
        $region44: #{tpu_custom_call.1} parent=11 // pred_fallthru
          _
        // Predicated region
        $region45: #{tpu_custom_call.1} parent=11 // pred_check
          %p407 = pneg %p243
        $region46: #{tpu_custom_call.1} parent=11 // pred_check_branch
          %409 = sbr.rel (%p407) target = $region48
        $region47: #{tpu_custom_call.1} parent=11 // pred_region
          %s411 = ssub.s32 8192, 8192
          %412 = vsyncadd [#allocation12], %s411
          %s413 = sshll.u32 [#allocation11], 4
          %s414 = int_to_ptr.vmem [resolvable:$true] %s413
          %419 = dma.hbm_to_vmem [thread:$0]  %s9, 8192, %s414, [#allocation12], 256, 256, 16
        $region48: #{tpu_custom_call.1} parent=11 // pred_fallthru
          _
        // Predicated region
        $region49: #{tpu_custom_call.1} parent=11 // pred_check
          %p420 = pneg %p264
        $region50: #{tpu_custom_call.1} parent=11 // pred_check_branch
          %422 = sbr.rel (%p420) target = $region52
        $region51: #{tpu_custom_call.1} parent=11 // pred_region
          _
        $region52: #{tpu_custom_call.1} parent=11 // pred_fallthru
          _
        // Predicated region
        $region53: #{tpu_custom_call.1} parent=11 // pred_check
          %p423 = pneg %p285
        $region54: #{tpu_custom_call.1} parent=11 // pred_check_branch
          %425 = sbr.rel (%p423) target = $region56
        $region55: #{tpu_custom_call.1} parent=11 // pred_region
          %s427 = ssub.s32 8192, 8192
          %428 = vsyncadd [#allocation12], %s427
          %s429 = sshll.u32 [#allocation13], 4
          %s430 = int_to_ptr.vmem [resolvable:$true] %s429
          %435 = dma.hbm_to_vmem [thread:$0]  %s11, 8192, %s430, [#allocation12], 128, 128, 8
        $region56: #{tpu_custom_call.1} parent=11 // pred_fallthru
          _
        // Predicated region
        $region57: #{tpu_custom_call.1} parent=11 // pred_check
          %p436 = pneg %p306
        $region58: #{tpu_custom_call.1} parent=11 // pred_check_branch
          %438 = sbr.rel (%p436) target = $region60
        $region59: #{tpu_custom_call.1} parent=11 // pred_region
          _
        $region60: #{tpu_custom_call.1} parent=11 // pred_fallthru
          _
      $region12: #{tpu_custom_call.1} parent=5 // pred_fallthru
        _
      %p439 = scmp.lt.s32.totalorder %s28, 2
      // Predicated region
      $region61: #{tpu_custom_call.1} parent=5 // pred_check
        %p440 = pneg %p439
      $region62: #{tpu_custom_call.1} parent=5 // pred_check_branch
        %442 = sbr.rel (%p440) target = $region64
      $region63: #{tpu_custom_call.1} parent=5 // pred_region
        // Predicated region
        $region65: #{tpu_custom_call.1} parent=63 // pred_check
          %p443 = pneg %p48
        $region66: #{tpu_custom_call.1} parent=63 // pred_check_branch
          %445 = sbr.rel (%p443) target = $region68
        $region67: #{tpu_custom_call.1} parent=63 // pred_region
          %s446 = sand.u32 %s38, 1
          %s447 = scalar_lea.sflag [#allocation3], %s446
          %s448 = sand.u32 %s38, 1
          %s449 = smul.addr %s448, 64
          %s450 = scalar_lea.vmem [#allocation2], %s449
          %s451 = smul.u32 2, %s28
          %s453 = ssub.s32 1024, 1024
          %454 = vsyncadd %s447, %s453
          %s455 = smul.addr %s451, 4
          %s456 = smul.addr %s455, 128
          %s457 = scalar_lea.hbm %s0, %s456
          %s458 = sshll.u32 %s450, 4
          %s459 = int_to_ptr.vmem [resolvable:$true] %s458
          %464 = dma.hbm_to_vmem [thread:$0]  %s457, 1024, %s459, %s447, 256, 256, 16
        $region68: #{tpu_custom_call.1} parent=63 // pred_fallthru
          _
      $region64: #{tpu_custom_call.1} parent=5 // pred_fallthru
        _
      %p465 = scmp.le.s32.totalorder 1, %s28
      %p466 = scmp.lt.s32.totalorder %s28, 3
      %p467 = pnand %p465, %p466
      %p468 = pneg %p467
      // Predicated region
      $region69: #{tpu_custom_call.1} parent=5 // pred_check
        _
      $region70: #{tpu_custom_call.1} parent=5 // pred_check_branch
        %470 = sbr.rel (%p467) target = $region72
      $region71: #{tpu_custom_call.1} parent=5 // pred_region
        %s471 = ssub.s32 %s28, 1
        %s472 = sand.u32 %s41, 1
        %s473 = scalar_lea.sflag [#allocation3], %s472
        %s474 = sand.u32 %s41, 1
        %s475 = smul.addr %s474, 64
        %s476 = scalar_lea.vmem [#allocation2], %s475
        // Predicated region
        $region73: #{tpu_custom_call.1} parent=71 // pred_check
          %p477 = pneg %p54
        $region74: #{tpu_custom_call.1} parent=71 // pred_check_branch
          %479 = sbr.rel (%p477) target = $region76
        $region75: #{tpu_custom_call.1} parent=71 // pred_region
          %480 = dma.done %s473, 1024
        $region76: #{tpu_custom_call.1} parent=71 // pred_fallthru
          _
        // Predicated region
        $region77: #{tpu_custom_call.1} parent=71 // pred_check
          %p481 = pneg %p75
        $region78: #{tpu_custom_call.1} parent=71 // pred_check_branch
          %483 = sbr.rel (%p481) target = $region80
        $region79: #{tpu_custom_call.1} parent=71 // pred_region
          %484 = dma.done [#allocation6], 32
        $region80: #{tpu_custom_call.1} parent=71 // pred_fallthru
          _
        // Predicated region
        $region81: #{tpu_custom_call.1} parent=71 // pred_check
          %p485 = pneg %p96
        $region82: #{tpu_custom_call.1} parent=71 // pred_check_branch
          %487 = sbr.rel (%p485) target = $region84
        $region83: #{tpu_custom_call.1} parent=71 // pred_region
          %488 = dma.done [#allocation6], 32
        $region84: #{tpu_custom_call.1} parent=71 // pred_fallthru
          _
        // Predicated region
        $region85: #{tpu_custom_call.1} parent=71 // pred_check
          %p489 = pneg %p117
        $region86: #{tpu_custom_call.1} parent=71 // pred_check_branch
          %491 = sbr.rel (%p489) target = $region88
        $region87: #{tpu_custom_call.1} parent=71 // pred_region
          %492 = dma.done [#allocation9], 12288
        $region88: #{tpu_custom_call.1} parent=71 // pred_fallthru
          _
        // Predicated region
        $region89: #{tpu_custom_call.1} parent=71 // pred_check
          %p493 = pneg %p159
        $region90: #{tpu_custom_call.1} parent=71 // pred_check_branch
          %495 = sbr.rel (%p493) target = $region92
        $region91: #{tpu_custom_call.1} parent=71 // pred_region
          %496 = dma.done [#allocation9], 4096
        $region92: #{tpu_custom_call.1} parent=71 // pred_fallthru
          _
        // Predicated region
        $region93: #{tpu_custom_call.1} parent=71 // pred_check
          %p497 = pneg %p243
        $region94: #{tpu_custom_call.1} parent=71 // pred_check_branch
          %499 = sbr.rel (%p497) target = $region96
        $region95: #{tpu_custom_call.1} parent=71 // pred_region
          %500 = dma.done [#allocation12], 8192
        $region96: #{tpu_custom_call.1} parent=71 // pred_fallthru
          _
        // Predicated region
        $region97: #{tpu_custom_call.1} parent=71 // pred_check
          %p501 = pneg %p285
        $region98: #{tpu_custom_call.1} parent=71 // pred_check_branch
          %503 = sbr.rel (%p501) target = $region100
        $region99: #{tpu_custom_call.1} parent=71 // pred_region
          %504 = dma.done [#allocation12], 8192
        $region100: #{tpu_custom_call.1} parent=71 // pred_fallthru
          _
        %s505 = sand.u32 %s41, 1
        %s506 = scalar_lea.sflag [#allocation3], %s505
        %s507 = sand.u32 %s41, 1
        %s508 = smul.addr %s507, 64
        %s509 = scalar_lea.vmem [#allocation2], %s508
        %p510 = pneg %p54
        %p511 = pneg %p51
        %p512 = pneg %p75
        %p513 = pneg %p72
        %p514 = pneg %p96
        %p515 = pneg %p93
        %p516 = pneg %p117
        %p517 = pneg %p114
        %p518 = pneg %p138
        %p519 = pneg %p135
        %p520 = pneg %p159
        %p521 = pneg %p156
        %p522 = pneg %p180
        %p523 = pneg %p177
        %p524 = pneg %p201
        %p525 = pneg %p198
        %p526 = pneg %p222
        %p527 = pneg %p219
        %p528 = pneg %p243
        %p529 = pneg %p240
        %p530 = pneg %p264
        %p531 = pneg %p261
        %p532 = pneg %p285
        %p533 = pneg %p282
        %p534 = pneg %p306
        %p535 = pneg %p303
        %p536 = pneg %p332
        %p537 = pneg %p329
        %s538 = sand.u32 %s319, 1
        %s539 = scalar_lea.sflag [#allocation4], %s538
        %s540 = sand.u32 %s319, 1
        %s541 = smul.addr %s540, 64
        %s542 = scalar_lea.vmem [#allocation14], %s541
        %s543 = smul.u32 2, %s33
        %s544 = smul.u32 2, %s33
        %v546 = vld [vmem:[%s476] sm:$0xff]
        %v547 = vld [vmem:[%s476 + $0x8] sm:$0xff]
        %v548 = vld [vmem:[%s476 + $0x10] sm:$0xff]
        %v549 = vld [vmem:[%s476 + $0x18] sm:$0xff]
        %v550 = vld [vmem:[%s476 + $0x20] sm:$0xff]
        %v551 = vld [vmem:[%s476 + $0x28] sm:$0xff]
        %v552 = vld [vmem:[%s476 + $0x30] sm:$0xff]
        %v553 = vld [vmem:[%s476 + $0x38] sm:$0xff]
        %v554 = vld [vmem:[#allocation5] sm:$0x3]
        %v555 = vld [vmem:[#allocation7] sm:$0x3]
        %v556 = vadd.f32 %v546, %v547
        %557 = vadd.xlane.f32.xlu0 %v556
        %v558 = vpop.xlane.xlu0 %557
        %v559 = vadd.f32 %v548, %v549
        %560 = vadd.xlane.f32.xlu0 %v559
        %v561 = vpop.xlane.xlu0 %560
        %v562 = vadd.f32 %v550, %v551
        %563 = vadd.xlane.f32.xlu0 %v562
        %v564 = vpop.xlane.xlu0 %563
        %v565 = vadd.f32 %v552, %v553
        %566 = vadd.xlane.f32.xlu0 %v565
        %v567 = vpop.xlane.xlu0 %566
        %v568 = vrcp.pop 256.0
        %v569 = vmul.f32 %v558, %v568
        %v570 = vmul.f32 %v561, %v568
        %v571 = vmul.f32 %v564, %v568
        %v572 = vmul.f32 %v567, %v568
        %v573 = vsub.f32 %v546, %v569
        %v574 = vsub.f32 %v547, %v569
        %v575 = vsub.f32 %v548, %v570
        %v576 = vsub.f32 %v549, %v570
        %v577 = vsub.f32 %v550, %v571
        %v578 = vsub.f32 %v551, %v571
        %v579 = vsub.f32 %v552, %v572
        %v580 = vsub.f32 %v553, %v572
        %v581 = vmul.f32 %v573, %v573
        %v582 = vmul.f32 %v574, %v574
        %v583 = vmul.f32 %v575, %v575
        %v584 = vmul.f32 %v576, %v576
        %v585 = vmul.f32 %v577, %v577
        %v586 = vmul.f32 %v578, %v578
        %v587 = vmul.f32 %v579, %v579
        %v588 = vmul.f32 %v580, %v580
        %v589 = vadd.f32 %v581, %v582
        %590 = vadd.xlane.f32.xlu0 %v589
        %v591 = vpop.xlane.xlu0 %590
        %v592 = vadd.f32 %v583, %v584
        %593 = vadd.xlane.f32.xlu0 %v592
        %v594 = vpop.xlane.xlu0 %593
        %v595 = vadd.f32 %v585, %v586
        %596 = vadd.xlane.f32.xlu0 %v595
        %v597 = vpop.xlane.xlu0 %596
        %v598 = vadd.f32 %v587, %v588
        %599 = vadd.xlane.f32.xlu0 %v598
        %v600 = vpop.xlane.xlu0 %599
        %v601 = vmul.f32 %v591, %v568
        %v602 = vmul.f32 %v594, %v568
        %v603 = vmul.f32 %v597, %v568
        %v604 = vmul.f32 %v600, %v568
        %v605 = vadd.f32 %v601, 1e-06
        %v606 = vadd.f32 %v602, 1e-06
        %v607 = vadd.f32 %v603, 1e-06
        %v608 = vadd.f32 %v604, 1e-06
        %v609 = vrsqrt.pop %v605
        %v610 = vrsqrt.pop %v606
        %v611 = vrsqrt.pop %v607
        %v612 = vrsqrt.pop %v608
        %v613 = vmul.f32 %v573, %v609
        %v614 = vmul.f32 %v574, %v609
        %v615 = vmul.f32 %v575, %v610
        %v616 = vmul.f32 %v576, %v610
        %v617 = vmul.f32 %v577, %v611
        %v618 = vmul.f32 %v578, %v611
        %v619 = vmul.f32 %v579, %v612
        %v620 = vmul.f32 %v580, %v612
        %v622 = vlaneseq
        %v623 = vshrl.u32 %v622, 7
        %v624 = vsub.s32 0, %v623
        %v625 = vrot.slane %v554, %v624
        %v626 = vlaneseq
        %v627 = vshrl.u32 %v626, 7
        %v628 = vsub.s32 1, %v627
        %v629 = vrot.slane %v554, %v628
        %v632 = vmul.f32 %v613, %v625
        %v633 = vmul.f32 %v614, %v629
        %v634 = vmul.f32 %v615, %v625
        %v635 = vmul.f32 %v616, %v629
        %v636 = vmul.f32 %v617, %v625
        %v637 = vmul.f32 %v618, %v629
        %v638 = vmul.f32 %v619, %v625
        %v639 = vmul.f32 %v620, %v629
        %v641 = vlaneseq
        %v642 = vshrl.u32 %v641, 7
        %v643 = vsub.s32 0, %v642
        %v644 = vrot.slane %v555, %v643
        %v645 = vlaneseq
        %v646 = vshrl.u32 %v645, 7
        %v647 = vsub.s32 1, %v646
        %v648 = vrot.slane %v555, %v647
        %v651 = vadd.f32 %v632, %v644
        %v652 = vadd.f32 %v633, %v648
        %v653 = vadd.f32 %v634, %v644
        %v654 = vadd.f32 %v635, %v648
        %v655 = vadd.f32 %v636, %v644
        %v656 = vadd.f32 %v637, %v648
        %v657 = vadd.f32 %v638, %v644
        %v658 = vadd.f32 %v639, %v648
        %v659 = vpack.c.bf16 %v653, %v651
        %v660 = vpack.c.bf16 %v654, %v652
        %v661 = vpack.c.bf16 %v657, %v655
        %v662 = vpack.c.bf16 %v658, %v656
        %v663 = vld [vmem:[#allocation8] sm:$0xff]
        %v664 = vld [vmem:[#allocation8 + $0x8] sm:$0xff]
        %v665 = vld [vmem:[#allocation8 + $0x10] sm:$0xff]
        %v666 = vld [vmem:[#allocation8 + $0x18] sm:$0xff]
        %v667 = vld [vmem:[#allocation8 + $0x20] sm:$0xff]
        %v668 = vld [vmem:[#allocation8 + $0x28] sm:$0xff]
        %v669 = vld [vmem:[#allocation8 + $0x30] sm:$0xff]
        %v670 = vld [vmem:[#allocation8 + $0x38] sm:$0xff]
        %v671 = vld [vmem:[#allocation8 + $0x40] sm:$0xff]
        %v672 = vld [vmem:[#allocation8 + $0x48] sm:$0xff]
        %v673 = vld [vmem:[#allocation8 + $0x50] sm:$0xff]
        %v674 = vld [vmem:[#allocation8 + $0x58] sm:$0xff]
        %v675 = vld [vmem:[#allocation8 + $0x60] sm:$0xff]
        %v676 = vld [vmem:[#allocation8 + $0x68] sm:$0xff]
        %v677 = vld [vmem:[#allocation8 + $0x70] sm:$0xff]
        %v678 = vld [vmem:[#allocation8 + $0x78] sm:$0xff]
        %v679 = vld [vmem:[#allocation8 + $0x80] sm:$0xff]
        %v680 = vld [vmem:[#allocation8 + $0x88] sm:$0xff]
        %v681 = vld [vmem:[#allocation8 + $0x90] sm:$0xff]
        %v682 = vld [vmem:[#allocation8 + $0x98] sm:$0xff]
        %v683 = vld [vmem:[#allocation8 + $0xa0] sm:$0xff]
        %v684 = vld [vmem:[#allocation8 + $0xa8] sm:$0xff]
        %v685 = vld [vmem:[#allocation8 + $0xb0] sm:$0xff]
        %v686 = vld [vmem:[#allocation8 + $0xb8] sm:$0xff]
        %v687 = vld [vmem:[#allocation8 + $0xc0] sm:$0xff]
        %v688 = vld [vmem:[#allocation8 + $0xc8] sm:$0xff]
        %v689 = vld [vmem:[#allocation8 + $0xd0] sm:$0xff]
        %v690 = vld [vmem:[#allocation8 + $0xd8] sm:$0xff]
        %v691 = vld [vmem:[#allocation8 + $0xe0] sm:$0xff]
        %v692 = vld [vmem:[#allocation8 + $0xe8] sm:$0xff]
        %v693 = vld [vmem:[#allocation8 + $0xf0] sm:$0xff]
        %v694 = vld [vmem:[#allocation8 + $0xf8] sm:$0xff]
        %v695 = vld [vmem:[#allocation8 + $0x100] sm:$0xff]
        %v696 = vld [vmem:[#allocation8 + $0x108] sm:$0xff]
        %v697 = vld [vmem:[#allocation8 + $0x110] sm:$0xff]
        %v698 = vld [vmem:[#allocation8 + $0x118] sm:$0xff]
        %v699 = vld [vmem:[#allocation8 + $0x120] sm:$0xff]
        %v700 = vld [vmem:[#allocation8 + $0x128] sm:$0xff]
        %v701 = vld [vmem:[#allocation8 + $0x130] sm:$0xff]
        %v702 = vld [vmem:[#allocation8 + $0x138] sm:$0xff]
        %v703 = vld [vmem:[#allocation8 + $0x140] sm:$0xff]
        %v704 = vld [vmem:[#allocation8 + $0x148] sm:$0xff]
        %v705 = vld [vmem:[#allocation8 + $0x150] sm:$0xff]
        %v706 = vld [vmem:[#allocation8 + $0x158] sm:$0xff]
        %v707 = vld [vmem:[#allocation8 + $0x160] sm:$0xff]
        %v708 = vld [vmem:[#allocation8 + $0x168] sm:$0xff]
        %v709 = vld [vmem:[#allocation8 + $0x170] sm:$0xff]
        %v710 = vld [vmem:[#allocation8 + $0x178] sm:$0xff]
        %v711 = vld [vmem:[#allocation8 + $0x180] sm:$0xff]
        %v712 = vld [vmem:[#allocation8 + $0x188] sm:$0xff]
        %v713 = vld [vmem:[#allocation8 + $0x190] sm:$0xff]
        %v714 = vld [vmem:[#allocation8 + $0x198] sm:$0xff]
        %v715 = vld [vmem:[#allocation8 + $0x1a0] sm:$0xff]
        %v716 = vld [vmem:[#allocation8 + $0x1a8] sm:$0xff]
        %v717 = vld [vmem:[#allocation8 + $0x1b0] sm:$0xff]
        %v718 = vld [vmem:[#allocation8 + $0x1b8] sm:$0xff]
        %v719 = vld [vmem:[#allocation8 + $0x1c0] sm:$0xff]
        %v720 = vld [vmem:[#allocation8 + $0x1c8] sm:$0xff]
        %v721 = vld [vmem:[#allocation8 + $0x1d0] sm:$0xff]
        %v722 = vld [vmem:[#allocation8 + $0x1d8] sm:$0xff]
        %v723 = vld [vmem:[#allocation8 + $0x1e0] sm:$0xff]
        %v724 = vld [vmem:[#allocation8 + $0x1e8] sm:$0xff]
        %v725 = vld [vmem:[#allocation8 + $0x1f0] sm:$0xff]
        %v726 = vld [vmem:[#allocation8 + $0x1f8] sm:$0xff]
        %v727 = vld [vmem:[#allocation8 + $0x200] sm:$0xff]
        %v728 = vld [vmem:[#allocation8 + $0x208] sm:$0xff]
        %v729 = vld [vmem:[#allocation8 + $0x210] sm:$0xff]
        %v730 = vld [vmem:[#allocation8 + $0x218] sm:$0xff]
        %v731 = vld [vmem:[#allocation8 + $0x220] sm:$0xff]
        %v732 = vld [vmem:[#allocation8 + $0x228] sm:$0xff]
        %v733 = vld [vmem:[#allocation8 + $0x230] sm:$0xff]
        %v734 = vld [vmem:[#allocation8 + $0x238] sm:$0xff]
        %v735 = vld [vmem:[#allocation8 + $0x240] sm:$0xff]
        %v736 = vld [vmem:[#allocation8 + $0x248] sm:$0xff]
        %v737 = vld [vmem:[#allocation8 + $0x250] sm:$0xff]
        %v738 = vld [vmem:[#allocation8 + $0x258] sm:$0xff]
        %v739 = vld [vmem:[#allocation8 + $0x260] sm:$0xff]
        %v740 = vld [vmem:[#allocation8 + $0x268] sm:$0xff]
        %v741 = vld [vmem:[#allocation8 + $0x270] sm:$0xff]
        %v742 = vld [vmem:[#allocation8 + $0x278] sm:$0xff]
        %v743 = vld [vmem:[#allocation8 + $0x280] sm:$0xff]
        %v744 = vld [vmem:[#allocation8 + $0x288] sm:$0xff]
        %v745 = vld [vmem:[#allocation8 + $0x290] sm:$0xff]
        %v746 = vld [vmem:[#allocation8 + $0x298] sm:$0xff]
        %v747 = vld [vmem:[#allocation8 + $0x2a0] sm:$0xff]
        %v748 = vld [vmem:[#allocation8 + $0x2a8] sm:$0xff]
        %v749 = vld [vmem:[#allocation8 + $0x2b0] sm:$0xff]
        %v750 = vld [vmem:[#allocation8 + $0x2b8] sm:$0xff]
        %v751 = vld [vmem:[#allocation8 + $0x2c0] sm:$0xff]
        %v752 = vld [vmem:[#allocation8 + $0x2c8] sm:$0xff]
        %v753 = vld [vmem:[#allocation8 + $0x2d0] sm:$0xff]
        %v754 = vld [vmem:[#allocation8 + $0x2d8] sm:$0xff]
        %v755 = vld [vmem:[#allocation8 + $0x2e0] sm:$0xff]
        %v756 = vld [vmem:[#allocation8 + $0x2e8] sm:$0xff]
        %v757 = vld [vmem:[#allocation8 + $0x2f0] sm:$0xff]
        %v758 = vld [vmem:[#allocation8 + $0x2f8] sm:$0xff]
        %v759 = vld [vmem:[%s4] sm:$0x3f]
        %v761 = vlaneseq
        %v762 = vshrl.u32 %v761, 7
        %v763 = vsub.s32 0, %v762
        %v764 = vrot.slane %v759, %v763
        %v765 = vlaneseq
        %v766 = vshrl.u32 %v765, 7
        %v767 = vsub.s32 1, %v766
        %v768 = vrot.slane %v759, %v767
        %v769 = vlaneseq
        %v770 = vshrl.u32 %v769, 7
        %v771 = vsub.s32 2, %v770
        %v772 = vrot.slane %v759, %v771
        %v773 = vlaneseq
        %v774 = vshrl.u32 %v773, 7
        %v775 = vsub.s32 3, %v774
        %v776 = vrot.slane %v759, %v775
        %v777 = vlaneseq
        %v778 = vshrl.u32 %v777, 7
        %v779 = vsub.s32 4, %v778
        %v780 = vrot.slane %v759, %v779
        %v781 = vlaneseq
        %v782 = vshrl.u32 %v781, 7
        %v783 = vsub.s32 5, %v782
        %v784 = vrot.slane %v759, %v783
        %v887 = vunpack.c.l.b16 %v663
        %v888 = vunpack.c.h.b16 %v663
        %v889 = vunpack.c.l.b16 %v664
        %v890 = vunpack.c.h.b16 %v664
        %v891 = vunpack.c.l.b16 %v665
        %v892 = vunpack.c.h.b16 %v665
        %v893 = vunpack.c.l.b16 %v666
        %v894 = vunpack.c.h.b16 %v666
        %v895 = vunpack.c.l.b16 %v667
        %v896 = vunpack.c.h.b16 %v667
        %v897 = vunpack.c.l.b16 %v668
        %v898 = vunpack.c.h.b16 %v668
        %v899 = vunpack.c.l.b16 %v669
        %v900 = vunpack.c.h.b16 %v669
        %v901 = vunpack.c.l.b16 %v670
        %v902 = vunpack.c.h.b16 %v670
        %v903 = vunpack.c.l.b16 %v671
        %v904 = vunpack.c.h.b16 %v671
        %v905 = vunpack.c.l.b16 %v672
        %v906 = vunpack.c.h.b16 %v672
        %v907 = vunpack.c.l.b16 %v673
        %v908 = vunpack.c.h.b16 %v673
        %v909 = vunpack.c.l.b16 %v674
        %v910 = vunpack.c.h.b16 %v674
        %v911 = vunpack.c.l.b16 %v675
        %v912 = vunpack.c.h.b16 %v675
        %v913 = vunpack.c.l.b16 %v676
        %v914 = vunpack.c.h.b16 %v676
        %v915 = vunpack.c.l.b16 %v677
        %v916 = vunpack.c.h.b16 %v677
        %v917 = vunpack.c.l.b16 %v678
        %v918 = vunpack.c.h.b16 %v678
        %v919 = vunpack.c.l.b16 %v679
        %v920 = vunpack.c.h.b16 %v679
        %v921 = vunpack.c.l.b16 %v680
        %v922 = vunpack.c.h.b16 %v680
        %v923 = vunpack.c.l.b16 %v681
        %v924 = vunpack.c.h.b16 %v681
        %v925 = vunpack.c.l.b16 %v682
        %v926 = vunpack.c.h.b16 %v682
        %v927 = vunpack.c.l.b16 %v683
        %v928 = vunpack.c.h.b16 %v683
        %v929 = vunpack.c.l.b16 %v684
        %v930 = vunpack.c.h.b16 %v684
        %v931 = vunpack.c.l.b16 %v685
        %v932 = vunpack.c.h.b16 %v685
        %v933 = vunpack.c.l.b16 %v686
        %v934 = vunpack.c.h.b16 %v686
        %v935 = vunpack.c.l.b16 %v687
        %v936 = vunpack.c.h.b16 %v687
        %v937 = vunpack.c.l.b16 %v688
        %v938 = vunpack.c.h.b16 %v688
        %v939 = vunpack.c.l.b16 %v689
        %v940 = vunpack.c.h.b16 %v689
        %v941 = vunpack.c.l.b16 %v690
        %v942 = vunpack.c.h.b16 %v690
        %v943 = vunpack.c.l.b16 %v691
        %v944 = vunpack.c.h.b16 %v691
        %v945 = vunpack.c.l.b16 %v692
        %v946 = vunpack.c.h.b16 %v692
        %v947 = vunpack.c.l.b16 %v693
        %v948 = vunpack.c.h.b16 %v693
        %v949 = vunpack.c.l.b16 %v694
        %v950 = vunpack.c.h.b16 %v694
        %v951 = vunpack.c.l.b16 %v695
        %v952 = vunpack.c.h.b16 %v695
        %v953 = vunpack.c.l.b16 %v696
        %v954 = vunpack.c.h.b16 %v696
        %v955 = vunpack.c.l.b16 %v697
        %v956 = vunpack.c.h.b16 %v697
        %v957 = vunpack.c.l.b16 %v698
        %v958 = vunpack.c.h.b16 %v698
        %v959 = vunpack.c.l.b16 %v699
        %v960 = vunpack.c.h.b16 %v699
        %v961 = vunpack.c.l.b16 %v700
        %v962 = vunpack.c.h.b16 %v700
        %v963 = vunpack.c.l.b16 %v701
        %v964 = vunpack.c.h.b16 %v701
        %v965 = vunpack.c.l.b16 %v702
        %v966 = vunpack.c.h.b16 %v702
        %v967 = vunpack.c.l.b16 %v703
        %v968 = vunpack.c.h.b16 %v703
        %v969 = vunpack.c.l.b16 %v704
        %v970 = vunpack.c.h.b16 %v704
        %v971 = vunpack.c.l.b16 %v705
        %v972 = vunpack.c.h.b16 %v705
        %v973 = vunpack.c.l.b16 %v706
        %v974 = vunpack.c.h.b16 %v706
        %v975 = vunpack.c.l.b16 %v707
        %v976 = vunpack.c.h.b16 %v707
        %v977 = vunpack.c.l.b16 %v708
        %v978 = vunpack.c.h.b16 %v708
        %v979 = vunpack.c.l.b16 %v709
        %v980 = vunpack.c.h.b16 %v709
        %v981 = vunpack.c.l.b16 %v710
        %v982 = vunpack.c.h.b16 %v710
        %v983 = vunpack.c.l.b16 %v711
        %v984 = vunpack.c.h.b16 %v711
        %v985 = vunpack.c.l.b16 %v712
        %v986 = vunpack.c.h.b16 %v712
        %v987 = vunpack.c.l.b16 %v713
        %v988 = vunpack.c.h.b16 %v713
        %v989 = vunpack.c.l.b16 %v714
        %v990 = vunpack.c.h.b16 %v714
        %v991 = vunpack.c.l.b16 %v715
        %v992 = vunpack.c.h.b16 %v715
        %v993 = vunpack.c.l.b16 %v716
        %v994 = vunpack.c.h.b16 %v716
        %v995 = vunpack.c.l.b16 %v717
        %v996 = vunpack.c.h.b16 %v717
        %v997 = vunpack.c.l.b16 %v718
        %v998 = vunpack.c.h.b16 %v718
        %v999 = vunpack.c.l.b16 %v719
        %v1000 = vunpack.c.h.b16 %v719
        %v1001 = vunpack.c.l.b16 %v720
        %v1002 = vunpack.c.h.b16 %v720
        %v1003 = vunpack.c.l.b16 %v721
        %v1004 = vunpack.c.h.b16 %v721
        %v1005 = vunpack.c.l.b16 %v722
        %v1006 = vunpack.c.h.b16 %v722
        %v1007 = vunpack.c.l.b16 %v723
        %v1008 = vunpack.c.h.b16 %v723
        %v1009 = vunpack.c.l.b16 %v724
        %v1010 = vunpack.c.h.b16 %v724
        %v1011 = vunpack.c.l.b16 %v725
        %v1012 = vunpack.c.h.b16 %v725
        %v1013 = vunpack.c.l.b16 %v726
        %v1014 = vunpack.c.h.b16 %v726
        %v1015 = vunpack.c.l.b16 %v727
        %v1016 = vunpack.c.h.b16 %v727
        %v1017 = vunpack.c.l.b16 %v728
        %v1018 = vunpack.c.h.b16 %v728
        %v1019 = vunpack.c.l.b16 %v729
        %v1020 = vunpack.c.h.b16 %v729
        %v1021 = vunpack.c.l.b16 %v730
        %v1022 = vunpack.c.h.b16 %v730
        %v1023 = vunpack.c.l.b16 %v731
        %v1024 = vunpack.c.h.b16 %v731
        %v1025 = vunpack.c.l.b16 %v732
        %v1026 = vunpack.c.h.b16 %v732
        %v1027 = vunpack.c.l.b16 %v733
        %v1028 = vunpack.c.h.b16 %v733
        %v1029 = vunpack.c.l.b16 %v734
        %v1030 = vunpack.c.h.b16 %v734
        %v1031 = vunpack.c.l.b16 %v735
        %v1032 = vunpack.c.h.b16 %v735
        %v1033 = vunpack.c.l.b16 %v736
        %v1034 = vunpack.c.h.b16 %v736
        %v1035 = vunpack.c.l.b16 %v737
        %v1036 = vunpack.c.h.b16 %v737
        %v1037 = vunpack.c.l.b16 %v738
        %v1038 = vunpack.c.h.b16 %v738
        %v1039 = vunpack.c.l.b16 %v739
        %v1040 = vunpack.c.h.b16 %v739
        %v1041 = vunpack.c.l.b16 %v740
        %v1042 = vunpack.c.h.b16 %v740
        %v1043 = vunpack.c.l.b16 %v741
        %v1044 = vunpack.c.h.b16 %v741
        %v1045 = vunpack.c.l.b16 %v742
        %v1046 = vunpack.c.h.b16 %v742
        %v1047 = vunpack.c.l.b16 %v743
        %v1048 = vunpack.c.h.b16 %v743
        %v1049 = vunpack.c.l.b16 %v744
        %v1050 = vunpack.c.h.b16 %v744
        %v1051 = vunpack.c.l.b16 %v745
        %v1052 = vunpack.c.h.b16 %v745
        %v1053 = vunpack.c.l.b16 %v746
        %v1054 = vunpack.c.h.b16 %v746
        %v1055 = vunpack.c.l.b16 %v747
        %v1056 = vunpack.c.h.b16 %v747
        %v1057 = vunpack.c.l.b16 %v748
        %v1058 = vunpack.c.h.b16 %v748
        %v1059 = vunpack.c.l.b16 %v749
        %v1060 = vunpack.c.h.b16 %v749
        %v1061 = vunpack.c.l.b16 %v750
        %v1062 = vunpack.c.h.b16 %v750
        %v1063 = vunpack.c.l.b16 %v751
        %v1064 = vunpack.c.h.b16 %v751
        %v1065 = vunpack.c.l.b16 %v752
        %v1066 = vunpack.c.h.b16 %v752
        %v1067 = vunpack.c.l.b16 %v753
        %v1068 = vunpack.c.h.b16 %v753
        %v1069 = vunpack.c.l.b16 %v754
        %v1070 = vunpack.c.h.b16 %v754
        %v1071 = vunpack.c.l.b16 %v755
        %v1072 = vunpack.c.h.b16 %v755
        %v1073 = vunpack.c.l.b16 %v756
        %v1074 = vunpack.c.h.b16 %v756
        %v1075 = vunpack.c.l.b16 %v757
        %v1076 = vunpack.c.h.b16 %v757
        %v1077 = vunpack.c.l.b16 %v758
        %v1078 = vunpack.c.h.b16 %v758
        %v1079 = vpack.c.b16 %v893, %v887
        %v1080 = vpack.c.b16 %v894, %v888
        %v1081 = vpack.c.b16 %v895, %v889
        %v1082 = vpack.c.b16 %v896, %v890
        %v1083 = vpack.c.b16 %v897, %v891
        %v1084 = vpack.c.b16 %v898, %v892
        %v1085 = vpack.c.b16 %v905, %v899
        %v1086 = vpack.c.b16 %v906, %v900
        %v1087 = vpack.c.b16 %v907, %v901
        %v1088 = vpack.c.b16 %v908, %v902
        %v1089 = vpack.c.b16 %v909, %v903
        %v1090 = vpack.c.b16 %v910, %v904
        %v1091 = vpack.c.b16 %v917, %v911
        %v1092 = vpack.c.b16 %v918, %v912
        %v1093 = vpack.c.b16 %v919, %v913
        %v1094 = vpack.c.b16 %v920, %v914
        %v1095 = vpack.c.b16 %v921, %v915
        %v1096 = vpack.c.b16 %v922, %v916
        %v1097 = vpack.c.b16 %v929, %v923
        %v1098 = vpack.c.b16 %v930, %v924
        %v1099 = vpack.c.b16 %v931, %v925
        %v1100 = vpack.c.b16 %v932, %v926
        %v1101 = vpack.c.b16 %v933, %v927
        %v1102 = vpack.c.b16 %v934, %v928
        %v1103 = vpack.c.b16 %v941, %v935
        %v1104 = vpack.c.b16 %v942, %v936
        %v1105 = vpack.c.b16 %v943, %v937
        %v1106 = vpack.c.b16 %v944, %v938
        %v1107 = vpack.c.b16 %v945, %v939
        %v1108 = vpack.c.b16 %v946, %v940
        %v1109 = vpack.c.b16 %v953, %v947
        %v1110 = vpack.c.b16 %v954, %v948
        %v1111 = vpack.c.b16 %v955, %v949
        %v1112 = vpack.c.b16 %v956, %v950
        %v1113 = vpack.c.b16 %v957, %v951
        %v1114 = vpack.c.b16 %v958, %v952
        %v1115 = vpack.c.b16 %v965, %v959
        %v1116 = vpack.c.b16 %v966, %v960
        %v1117 = vpack.c.b16 %v967, %v961
        %v1118 = vpack.c.b16 %v968, %v962
        %v1119 = vpack.c.b16 %v969, %v963
        %v1120 = vpack.c.b16 %v970, %v964
        %v1121 = vpack.c.b16 %v977, %v971
        %v1122 = vpack.c.b16 %v978, %v972
        %v1123 = vpack.c.b16 %v979, %v973
        %v1124 = vpack.c.b16 %v980, %v974
        %v1125 = vpack.c.b16 %v981, %v975
        %v1126 = vpack.c.b16 %v982, %v976
        %v1127 = vpack.c.b16 %v989, %v983
        %v1128 = vpack.c.b16 %v990, %v984
        %v1129 = vpack.c.b16 %v991, %v985
        %v1130 = vpack.c.b16 %v992, %v986
        %v1131 = vpack.c.b16 %v993, %v987
        %v1132 = vpack.c.b16 %v994, %v988
        %v1133 = vpack.c.b16 %v1001, %v995
        %v1134 = vpack.c.b16 %v1002, %v996
        %v1135 = vpack.c.b16 %v1003, %v997
        %v1136 = vpack.c.b16 %v1004, %v998
        %v1137 = vpack.c.b16 %v1005, %v999
        %v1138 = vpack.c.b16 %v1006, %v1000
        %v1139 = vpack.c.b16 %v1013, %v1007
        %v1140 = vpack.c.b16 %v1014, %v1008
        %v1141 = vpack.c.b16 %v1015, %v1009
        %v1142 = vpack.c.b16 %v1016, %v1010
        %v1143 = vpack.c.b16 %v1017, %v1011
        %v1144 = vpack.c.b16 %v1018, %v1012
        %v1145 = vpack.c.b16 %v1025, %v1019
        %v1146 = vpack.c.b16 %v1026, %v1020
        %v1147 = vpack.c.b16 %v1027, %v1021
        %v1148 = vpack.c.b16 %v1028, %v1022
        %v1149 = vpack.c.b16 %v1029, %v1023
        %v1150 = vpack.c.b16 %v1030, %v1024
        %v1151 = vpack.c.b16 %v1037, %v1031
        %v1152 = vpack.c.b16 %v1038, %v1032
        %v1153 = vpack.c.b16 %v1039, %v1033
        %v1154 = vpack.c.b16 %v1040, %v1034
        %v1155 = vpack.c.b16 %v1041, %v1035
        %v1156 = vpack.c.b16 %v1042, %v1036
        %v1157 = vpack.c.b16 %v1049, %v1043
        %v1158 = vpack.c.b16 %v1050, %v1044
        %v1159 = vpack.c.b16 %v1051, %v1045
        %v1160 = vpack.c.b16 %v1052, %v1046
        %v1161 = vpack.c.b16 %v1053, %v1047
        %v1162 = vpack.c.b16 %v1054, %v1048
        %v1163 = vpack.c.b16 %v1061, %v1055
        %v1164 = vpack.c.b16 %v1062, %v1056
        %v1165 = vpack.c.b16 %v1063, %v1057
        %v1166 = vpack.c.b16 %v1064, %v1058
        %v1167 = vpack.c.b16 %v1065, %v1059
        %v1168 = vpack.c.b16 %v1066, %v1060
        %v1169 = vpack.c.b16 %v1073, %v1067
        %v1170 = vpack.c.b16 %v1074, %v1068
        %v1171 = vpack.c.b16 %v1075, %v1069
        %v1172 = vpack.c.b16 %v1076, %v1070
        %v1173 = vpack.c.b16 %v1077, %v1071
        %v1174 = vpack.c.b16 %v1078, %v1072
        %1271 = vmatprep.subr.bf16.mxu0 %v1080
        %1272 = vmatpush1.bf16.msra.mxu0 %v1079
        %1273 = vmatprep.subr.bf16.mxu0 %v1086
        %1274 = vmatpush1.bf16.msra.mxu0 %v1085
        %1275 = vmatprep.subr.bf16.mxu0 %v1092
        %1276 = vmatpush1.bf16.msra.mxu0 %v1091
        %1277 = vmatprep.subr.bf16.mxu0 %v1098
        %1278 = vmatpush1.bf16.msra.mxu0 %v1097
        %1279 = vmatprep.subr.bf16.mxu0 %v1104
        %1280 = vmatpush1.bf16.msra.mxu0 %v1103
        %1281 = vmatprep.subr.bf16.mxu0 %v1110
        %1282 = vmatpush1.bf16.msra.mxu0 %v1109
        %1283 = vmatprep.subr.bf16.mxu0 %v1116
        %1284 = vmatpush1.bf16.msra.mxu0 %v1115
        %1285 = vmatprep.subr.bf16.mxu0 %v1122
        %1286 = vmatpush1.bf16.msra.mxu0 %v1121
        %1287 = vmatprep.subr.bf16.mxu0 %v1128
        %1288 = vmatpush1.bf16.msra.mxu0 %v1127
        %1289 = vmatprep.subr.bf16.mxu0 %v1134
        %1290 = vmatpush1.bf16.msra.mxu0 %v1133
        %1291 = vmatprep.subr.bf16.mxu0 %v1140
        %1292 = vmatpush1.bf16.msra.mxu0 %v1139
        %1293 = vmatprep.subr.bf16.mxu0 %v1146
        %1294 = vmatpush1.bf16.msra.mxu0 %v1145
        %1295 = vmatprep.subr.bf16.mxu0 %v1152
        %1296 = vmatpush1.bf16.msra.mxu0 %v1151
        %1297 = vmatprep.subr.bf16.mxu0 %v1158
        %1298 = vmatpush1.bf16.msra.mxu0 %v1157
        %1299 = vmatprep.subr.bf16.mxu0 %v1164
        %1300 = vmatpush1.bf16.msra.mxu0 %v1163
        %1301 = vmatprep.subr.bf16.mxu0 %v1170
        %1302 = vmatpush1.bf16.msra.mxu0 %v1169
        %1303 = vmatprep.mubr.bf16.mxu0 %v660
        %1304 = vmatmul.mubr.bf16.gmra.mrb[0].mxu0 %v659
        %v1305 = vpop.f32.mrb[0].mxu0
        %v1306 = vadd.f32 %v764, %v1305
        %v1307 = vpop.f32.mrb[0].mxu0
        %v1308 = vadd.f32 %v768, %v1307
        %v1309 = vpop.f32.mrb[0].mxu0
        %v1310 = vadd.f32 %v764, %v1309
        %v1311 = vpop.f32.mrb[0].mxu0
        %v1312 = vadd.f32 %v768, %v1311
        %1313 = vmatprep.mubr.bf16.mxu0 %v662
        %1314 = vmatmul.mubr.bf16.gmra.mrb[0].mxu0 %v661
        %v1315 = vpop.f32.mrb[0].mxu0
        %v1316 = vadd.f32 %v764, %v1315
        %v1317 = vpop.f32.mrb[0].mxu0
        %v1318 = vadd.f32 %v768, %v1317
        %v1319 = vpop.f32.mrb[0].mxu0
        %v1320 = vadd.f32 %v764, %v1319
        %v1321 = vpop.f32.mrb[0].mxu0
        %v1322 = vadd.f32 %v768, %v1321
        %1323 = vdwg.mxu0
        %1324 = vmatprep.subr.bf16.mxu0 %v1082
        %1325 = vmatpush1.bf16.msra.mxu0 %v1081
        %1326 = vmatprep.subr.bf16.mxu0 %v1088
        %1327 = vmatpush1.bf16.msra.mxu0 %v1087
        %1328 = vmatprep.subr.bf16.mxu0 %v1094
        %1329 = vmatpush1.bf16.msra.mxu0 %v1093
        %1330 = vmatprep.subr.bf16.mxu0 %v1100
        %1331 = vmatpush1.bf16.msra.mxu0 %v1099
        %1332 = vmatprep.subr.bf16.mxu0 %v1106
        %1333 = vmatpush1.bf16.msra.mxu0 %v1105
        %1334 = vmatprep.subr.bf16.mxu0 %v1112
        %1335 = vmatpush1.bf16.msra.mxu0 %v1111
        %1336 = vmatprep.subr.bf16.mxu0 %v1118
        %1337 = vmatpush1.bf16.msra.mxu0 %v1117
        %1338 = vmatprep.subr.bf16.mxu0 %v1124
        %1339 = vmatpush1.bf16.msra.mxu0 %v1123
        %1340 = vmatprep.subr.bf16.mxu0 %v1130
        %1341 = vmatpush1.bf16.msra.mxu0 %v1129
        %1342 = vmatprep.subr.bf16.mxu0 %v1136
        %1343 = vmatpush1.bf16.msra.mxu0 %v1135
        %1344 = vmatprep.subr.bf16.mxu0 %v1142
        %1345 = vmatpush1.bf16.msra.mxu0 %v1141
        %1346 = vmatprep.subr.bf16.mxu0 %v1148
        %1347 = vmatpush1.bf16.msra.mxu0 %v1147
        %1348 = vmatprep.subr.bf16.mxu0 %v1154
        %1349 = vmatpush1.bf16.msra.mxu0 %v1153
        %1350 = vmatprep.subr.bf16.mxu0 %v1160
        %1351 = vmatpush1.bf16.msra.mxu0 %v1159
        %1352 = vmatprep.subr.bf16.mxu0 %v1166
        %1353 = vmatpush1.bf16.msra.mxu0 %v1165
        %1354 = vmatprep.subr.bf16.mxu0 %v1172
        %1355 = vmatpush1.bf16.msra.mxu0 %v1171
        %1356 = vmatprep.mubr.bf16.mxu0 %v660
        %1357 = vmatmul.mubr.bf16.gmra.mrb[0].mxu0 %v659
        %v1358 = vpop.f32.mrb[0].mxu0
        %v1359 = vadd.f32 %v772, %v1358
        %v1360 = vpop.f32.mrb[0].mxu0
        %v1361 = vadd.f32 %v776, %v1360
        %v1362 = vpop.f32.mrb[0].mxu0
        %v1363 = vadd.f32 %v772, %v1362
        %v1364 = vpop.f32.mrb[0].mxu0
        %v1365 = vadd.f32 %v776, %v1364
        %1366 = vmatprep.mubr.bf16.mxu0 %v662
        %1367 = vmatmul.mubr.bf16.gmra.mrb[0].mxu0 %v661
        %v1368 = vpop.f32.mrb[0].mxu0
        %v1369 = vadd.f32 %v772, %v1368
        %v1370 = vpop.f32.mrb[0].mxu0
        %v1371 = vadd.f32 %v776, %v1370
        %v1372 = vpop.f32.mrb[0].mxu0
        %v1373 = vadd.f32 %v772, %v1372
        %v1374 = vpop.f32.mrb[0].mxu0
        %v1375 = vadd.f32 %v776, %v1374
        %1376 = vdwg.mxu0
        %1377 = vmatprep.subr.bf16.mxu0 %v1084
        %1378 = vmatpush1.bf16.msra.mxu0 %v1083
        %1379 = vmatprep.subr.bf16.mxu0 %v1090
        %1380 = vmatpush1.bf16.msra.mxu0 %v1089
        %1381 = vmatprep.subr.bf16.mxu0 %v1096
        %1382 = vmatpush1.bf16.msra.mxu0 %v1095
        %1383 = vmatprep.subr.bf16.mxu0 %v1102
        %1384 = vmatpush1.bf16.msra.mxu0 %v1101
        %1385 = vmatprep.subr.bf16.mxu0 %v1108
        %1386 = vmatpush1.bf16.msra.mxu0 %v1107
        %1387 = vmatprep.subr.bf16.mxu0 %v1114
        %1388 = vmatpush1.bf16.msra.mxu0 %v1113
        %1389 = vmatprep.subr.bf16.mxu0 %v1120
        %1390 = vmatpush1.bf16.msra.mxu0 %v1119
        %1391 = vmatprep.subr.bf16.mxu0 %v1126
        %1392 = vmatpush1.bf16.msra.mxu0 %v1125
        %1393 = vmatprep.subr.bf16.mxu0 %v1132
        %1394 = vmatpush1.bf16.msra.mxu0 %v1131
        %1395 = vmatprep.subr.bf16.mxu0 %v1138
        %1396 = vmatpush1.bf16.msra.mxu0 %v1137
        %1397 = vmatprep.subr.bf16.mxu0 %v1144
        %1398 = vmatpush1.bf16.msra.mxu0 %v1143
        %1399 = vmatprep.subr.bf16.mxu0 %v1150
        %1400 = vmatpush1.bf16.msra.mxu0 %v1149
        %1401 = vmatprep.subr.bf16.mxu0 %v1156
        %1402 = vmatpush1.bf16.msra.mxu0 %v1155
        %1403 = vmatprep.subr.bf16.mxu0 %v1162
        %1404 = vmatpush1.bf16.msra.mxu0 %v1161
        %1405 = vmatprep.subr.bf16.mxu0 %v1168
        %1406 = vmatpush1.bf16.msra.mxu0 %v1167
        %1407 = vmatprep.subr.bf16.mxu0 %v1174
        %1408 = vmatpush1.bf16.msra.mxu0 %v1173
        %1409 = vmatprep.mubr.bf16.mxu0 %v660
        %1410 = vmatmul.mubr.bf16.gmra.mrb[0].mxu0 %v659
        %v1411 = vpop.f32.mrb[0].mxu0
        %v1412 = vadd.f32 %v780, %v1411
        %v1413 = vpop.f32.mrb[0].mxu0
        %v1414 = vadd.f32 %v784, %v1413
        %v1415 = vpop.f32.mrb[0].mxu0
        %v1416 = vadd.f32 %v780, %v1415
        %v1417 = vpop.f32.mrb[0].mxu0
        %v1418 = vadd.f32 %v784, %v1417
        %1419 = vmatprep.mubr.bf16.mxu0 %v662
        %1420 = vmatmul.mubr.bf16.gmra.mrb[0].mxu0 %v661
        %v1421 = vpop.f32.mrb[0].mxu0
        %v1422 = vadd.f32 %v780, %v1421
        %v1423 = vpop.f32.mrb[0].mxu0
        %v1424 = vadd.f32 %v784, %v1423
        %v1425 = vpop.f32.mrb[0].mxu0
        %v1426 = vadd.f32 %v780, %v1425
        %v1427 = vpop.f32.mrb[0].mxu0
        %v1428 = vadd.f32 %v784, %v1427
        %1429 = vdwg.mxu0
        %v1430 = vmul.f32 %v1306, 0.088388346
        %v1431 = vmul.f32 %v1308, 0.088388346
        %v1432 = vmul.f32 %v1310, 0.088388346
        %v1433 = vmul.f32 %v1312, 0.088388346
        %v1434 = vmul.f32 %v1316, 0.088388346
        %v1435 = vmul.f32 %v1318, 0.088388346
        %v1436 = vmul.f32 %v1320, 0.088388346
        %v1437 = vmul.f32 %v1322, 0.088388346
        %v1438 = vpack.c.bf16 %v1432, %v1430
        %v1439 = vpack.c.bf16 %v1433, %v1431
        %v1440 = vpack.c.bf16 %v1436, %v1434
        %v1441 = vpack.c.bf16 %v1437, %v1435
        %v1442 = vpack.c.bf16 %v1363, %v1359
        %v1443 = vpack.c.bf16 %v1365, %v1361
        %v1444 = vpack.c.bf16 %v1373, %v1369
        %v1445 = vpack.c.bf16 %v1375, %v1371
        %v1446 = vpack.c.bf16 %v1416, %v1412
        %v1447 = vpack.c.bf16 %v1418, %v1414
        %v1448 = vpack.c.bf16 %v1426, %v1422
        %v1449 = vpack.c.bf16 %v1428, %v1424
        %1450 = vmatprep.subr.bf16.mxu0 0
        %1451 = vmatpush1.bf16.xpose.msra.mxu0 %v1442
        %1452 = vmatprep.subr.bf16.mxu0 0
        %1453 = vmatpush1.bf16.xpose.msra.mxu0 0
        %1454 = vmatprep.subr.bf16.mxu0 0
        %1455 = vmatpush1.bf16.xpose.msra.mxu0 0
        %1456 = vmatprep.subr.bf16.mxu0 0
        %1457 = vmatpush1.bf16.xpose.msra.mxu0 0
        %1458 = vmatprep.subr.bf16.mxu0 0
        %1459 = vmatpush1.bf16.xpose.msra.mxu0 0
        %1460 = vmatprep.subr.bf16.mxu0 0
        %1461 = vmatpush1.bf16.xpose.msra.mxu0 0
        %1462 = vmatprep.subr.bf16.mxu0 0
        %1463 = vmatpush1.bf16.xpose.msra.mxu0 0
        %1464 = vmatprep.subr.bf16.mxu0 0
        %1465 = vmatpush1.bf16.xpose.msra.mxu0 0
        %1466 = vmatprep.subr.bf16.mxu0 0
        %1467 = vmatpush1.bf16.xpose.msra.mxu0 0
        %1468 = vmatprep.subr.bf16.mxu0 0
        %1469 = vmatpush1.bf16.xpose.msra.mxu0 0
        %1470 = vmatprep.subr.bf16.mxu0 0
        %1471 = vmatpush1.bf16.xpose.msra.mxu0 0
        %1472 = vmatprep.subr.bf16.mxu0 0
        %1473 = vmatpush1.bf16.xpose.msra.mxu0 0
        %1474 = vmatprep.subr.bf16.mxu0 0
        %1475 = vmatpush1.bf16.xpose.msra.mxu0 0
        %1476 = vmatprep.subr.bf16.mxu0 0
        %1477 = vmatpush1.bf16.xpose.msra.mxu0 0
        %1478 = vmatprep.subr.bf16.mxu0 0
        %1479 = vmatpush1.bf16.xpose.msra.mxu0 0
        %1480 = vmatprep.subr.bf16.mxu0 0
        %1481 = vmatpush1.bf16.xpose.msra.mxu0 0
        %1482 = vmatprep.mubr.bf16.mxu0 0
        %1483 = vmatmul.mubr.bf16.gmra.mrb[0].mxu0 %v1438
        %v1484 = vpop.f32.mrb[0].mxu0
        %v1485 = vadd.f32 0.0, %v1484
        %v1486 = vpop.f32.mrb[0].mxu0
        %v1487 = vpop.f32.mrb[0].mxu0
        %v1488 = vadd.f32 0.0, %v1487
        %v1489 = vpop.f32.mrb[0].mxu0
        %1490 = vdwg.mxu0
        %1491 = vmatprep.subr.bf16.mxu0 0
        %1492 = vmatpush1.bf16.xpose.msra.mxu0 %v1444
        %1493 = vmatprep.subr.bf16.mxu0 0
        %1494 = vmatpush1.bf16.xpose.msra.mxu0 0
        %1495 = vmatprep.subr.bf16.mxu0 0
        %1496 = vmatpush1.bf16.xpose.msra.mxu0 0
        %1497 = vmatprep.subr.bf16.mxu0 0
        %1498 = vmatpush1.bf16.xpose.msra.mxu0 0
        %1499 = vmatprep.subr.bf16.mxu0 0
        %1500 = vmatpush1.bf16.xpose.msra.mxu0 0
        %1501 = vmatprep.subr.bf16.mxu0 0
        %1502 = vmatpush1.bf16.xpose.msra.mxu0 0
        %1503 = vmatprep.subr.bf16.mxu0 0
        %1504 = vmatpush1.bf16.xpose.msra.mxu0 0
        %1505 = vmatprep.subr.bf16.mxu0 0
        %1506 = vmatpush1.bf16.xpose.msra.mxu0 0
        %1507 = vmatprep.subr.bf16.mxu0 0
        %1508 = vmatpush1.bf16.xpose.msra.mxu0 0
        %1509 = vmatprep.subr.bf16.mxu0 0
        %1510 = vmatpush1.bf16.xpose.msra.mxu0 0
        %1511 = vmatprep.subr.bf16.mxu0 0
        %1512 = vmatpush1.bf16.xpose.msra.mxu0 0
        %1513 = vmatprep.subr.bf16.mxu0 0
        %1514 = vmatpush1.bf16.xpose.msra.mxu0 0
        %1515 = vmatprep.subr.bf16.mxu0 0
        %1516 = vmatpush1.bf16.xpose.msra.mxu0 0
        %1517 = vmatprep.subr.bf16.mxu0 0
        %1518 = vmatpush1.bf16.xpose.msra.mxu0 0
        %1519 = vmatprep.subr.bf16.mxu0 0
        %1520 = vmatpush1.bf16.xpose.msra.mxu0 0
        %1521 = vmatprep.subr.bf16.mxu0 0
        %1522 = vmatpush1.bf16.xpose.msra.mxu0 0
        %1523 = vmatprep.mubr.bf16.mxu0 0
        %1524 = vmatmul.mubr.bf16.gmra.mrb[0].mxu0 %v1440
        %v1525 = vpop.f32.mrb[0].mxu0
        %v1526 = vadd.f32 0.0, %v1525
        %v1527 = vpop.f32.mrb[0].mxu0
        %v1528 = vpop.f32.mrb[0].mxu0
        %v1529 = vadd.f32 0.0, %v1528
        %v1530 = vpop.f32.mrb[0].mxu0
        %1531 = vdwg.mxu0
        %vm1532 = vcmask 130048
        %v1533 = vsel %vm1532, %v1485, -inf
        %1534 = vmax.xlane.f32.xlu0 %v1533
        %v1535 = vpop.xlane.xlu0 %1534
        %v1536 = vsel %vm1532, %v1488, -inf
        %1537 = vmax.xlane.f32.xlu0 %v1536
        %v1538 = vpop.xlane.xlu0 %1537
        %v1539 = vsel %vm1532, %v1526, -inf
        %1540 = vmax.xlane.f32.xlu0 %v1539
        %v1541 = vpop.xlane.xlu0 %1540
        %v1542 = vsel %vm1532, %v1529, -inf
        %1543 = vmax.xlane.f32.xlu0 %v1542
        %v1544 = vpop.xlane.xlu0 %1543
        %v1545 = vsub.f32 %v1485, %v1535
        %v1546 = vsub.f32 %v1488, %v1538
        %v1547 = vsub.f32 %v1526, %v1541
        %v1548 = vsub.f32 %v1529, %v1544
        %v1549 = vmul.f32 %v1545, 1.442695
        %v1550 = vpow.pop %v1549
        %v1551 = vmul.f32 %v1546, 1.442695
        %v1552 = vpow.pop %v1551
        %v1553 = vmul.f32 %v1547, 1.442695
        %v1554 = vpow.pop %v1553
        %v1555 = vmul.f32 %v1548, 1.442695
        %v1556 = vpow.pop %v1555
        %v1557 = vsel %vm1532, %v1550, 0.0
        %1558 = vadd.xlane.f32.xlu0 %v1557
        %v1559 = vpop.xlane.xlu0 %1558
        %v1560 = vsel %vm1532, %v1552, 0.0
        %1561 = vadd.xlane.f32.xlu0 %v1560
        %v1562 = vpop.xlane.xlu0 %1561
        %v1563 = vsel %vm1532, %v1554, 0.0
        %1564 = vadd.xlane.f32.xlu0 %v1563
        %v1565 = vpop.xlane.xlu0 %1564
        %v1566 = vsel %vm1532, %v1556, 0.0
        %1567 = vadd.xlane.f32.xlu0 %v1566
        %v1568 = vpop.xlane.xlu0 %1567
        %v1569 = vrcp.pop %v1559
        %v1570 = vrcp.pop %v1562
        %v1571 = vrcp.pop %v1565
        %v1572 = vrcp.pop %v1568
        %v1573 = vmul.f32 %v1550, %v1569
        %v1574 = vmul.f32 %v1552, %v1570
        %v1575 = vmul.f32 %v1554, %v1571
        %v1576 = vmul.f32 %v1556, %v1572
        %v1577 = vpack.c.bf16 %v1574, %v1573
        %v1578 = vpack.c.bf16 %v1576, %v1575
        %v1580 = vsel %vm1532, %v1577, 0
        %1582 = vmatprep.subr.bf16.mxu0 0
        %1583 = vmatpush1.bf16.msra.mxu0 %v1446
        %1584 = vmatprep.subr.bf16.mxu0 0
        %1585 = vmatpush1.bf16.msra.mxu0 0
        %1586 = vmatprep.subr.bf16.mxu0 0
        %1587 = vmatpush1.bf16.msra.mxu0 0
        %1588 = vmatprep.subr.bf16.mxu0 0
        %1589 = vmatpush1.bf16.msra.mxu0 0
        %1590 = vmatprep.subr.bf16.mxu0 0
        %1591 = vmatpush1.bf16.msra.mxu0 0
        %1592 = vmatprep.subr.bf16.mxu0 0
        %1593 = vmatpush1.bf16.msra.mxu0 0
        %1594 = vmatprep.subr.bf16.mxu0 0
        %1595 = vmatpush1.bf16.msra.mxu0 0
        %1596 = vmatprep.subr.bf16.mxu0 0
        %1597 = vmatpush1.bf16.msra.mxu0 0
        %1598 = vmatprep.subr.bf16.mxu0 0
        %1599 = vmatpush1.bf16.msra.mxu0 0
        %1600 = vmatprep.subr.bf16.mxu0 0
        %1601 = vmatpush1.bf16.msra.mxu0 0
        %1602 = vmatprep.subr.bf16.mxu0 0
        %1603 = vmatpush1.bf16.msra.mxu0 0
        %1604 = vmatprep.subr.bf16.mxu0 0
        %1605 = vmatpush1.bf16.msra.mxu0 0
        %1606 = vmatprep.subr.bf16.mxu0 0
        %1607 = vmatpush1.bf16.msra.mxu0 0
        %1608 = vmatprep.subr.bf16.mxu0 0
        %1609 = vmatpush1.bf16.msra.mxu0 0
        %1610 = vmatprep.subr.bf16.mxu0 0
        %1611 = vmatpush1.bf16.msra.mxu0 0
        %1612 = vmatprep.subr.bf16.mxu0 0
        %1613 = vmatpush1.bf16.msra.mxu0 0
        %1614 = vmatprep.mubr.bf16.mxu0 0
        %1615 = vmatmul.mubr.bf16.gmra.mrb[0].mxu0 %v1580
        %v1616 = vpop.f32.mrb[0].mxu0
        %v1617 = vadd.f32 0.0, %v1616
        %v1618 = vpop.f32.mrb[0].mxu0
        %v1619 = vpop.f32.mrb[0].mxu0
        %v1620 = vadd.f32 0.0, %v1619
        %v1621 = vpop.f32.mrb[0].mxu0
        %1622 = vdwg.mxu0
        %v1624 = vsel %vm1532, %v1578, 0
        %1626 = vmatprep.subr.bf16.mxu0 0
        %1627 = vmatpush1.bf16.msra.mxu0 %v1448
        %1628 = vmatprep.subr.bf16.mxu0 0
        %1629 = vmatpush1.bf16.msra.mxu0 0
        %1630 = vmatprep.subr.bf16.mxu0 0
        %1631 = vmatpush1.bf16.msra.mxu0 0
        %1632 = vmatprep.subr.bf16.mxu0 0
        %1633 = vmatpush1.bf16.msra.mxu0 0
        %1634 = vmatprep.subr.bf16.mxu0 0
        %1635 = vmatpush1.bf16.msra.mxu0 0
        %1636 = vmatprep.subr.bf16.mxu0 0
        %1637 = vmatpush1.bf16.msra.mxu0 0
        %1638 = vmatprep.subr.bf16.mxu0 0
        %1639 = vmatpush1.bf16.msra.mxu0 0
        %1640 = vmatprep.subr.bf16.mxu0 0
        %1641 = vmatpush1.bf16.msra.mxu0 0
        %1642 = vmatprep.subr.bf16.mxu0 0
        %1643 = vmatpush1.bf16.msra.mxu0 0
        %1644 = vmatprep.subr.bf16.mxu0 0
        %1645 = vmatpush1.bf16.msra.mxu0 0
        %1646 = vmatprep.subr.bf16.mxu0 0
        %1647 = vmatpush1.bf16.msra.mxu0 0
        %1648 = vmatprep.subr.bf16.mxu0 0
        %1649 = vmatpush1.bf16.msra.mxu0 0
        %1650 = vmatprep.subr.bf16.mxu0 0
        %1651 = vmatpush1.bf16.msra.mxu0 0
        %1652 = vmatprep.subr.bf16.mxu0 0
        %1653 = vmatpush1.bf16.msra.mxu0 0
        %1654 = vmatprep.subr.bf16.mxu0 0
        %1655 = vmatpush1.bf16.msra.mxu0 0
        %1656 = vmatprep.subr.bf16.mxu0 0
        %1657 = vmatpush1.bf16.msra.mxu0 0
        %1658 = vmatprep.mubr.bf16.mxu0 0
        %1659 = vmatmul.mubr.bf16.gmra.mrb[0].mxu0 %v1624
        %v1660 = vpop.f32.mrb[0].mxu0
        %v1661 = vadd.f32 0.0, %v1660
        %v1662 = vpop.f32.mrb[0].mxu0
        %v1663 = vpop.f32.mrb[0].mxu0
        %v1664 = vadd.f32 0.0, %v1663
        %v1665 = vpop.f32.mrb[0].mxu0
        %1666 = vdwg.mxu0
        %1667 = vmatprep.subr.bf16.mxu0 0
        %1668 = vmatpush1.bf16.xpose.msra.mxu0 %v1443
        %1669 = vmatprep.subr.bf16.mxu0 0
        %1670 = vmatpush1.bf16.xpose.msra.mxu0 0
        %1671 = vmatprep.subr.bf16.mxu0 0
        %1672 = vmatpush1.bf16.xpose.msra.mxu0 0
        %1673 = vmatprep.subr.bf16.mxu0 0
        %1674 = vmatpush1.bf16.xpose.msra.mxu0 0
        %1675 = vmatprep.subr.bf16.mxu0 0
        %1676 = vmatpush1.bf16.xpose.msra.mxu0 0
        %1677 = vmatprep.subr.bf16.mxu0 0
        %1678 = vmatpush1.bf16.xpose.msra.mxu0 0
        %1679 = vmatprep.subr.bf16.mxu0 0
        %1680 = vmatpush1.bf16.xpose.msra.mxu0 0
        %1681 = vmatprep.subr.bf16.mxu0 0
        %1682 = vmatpush1.bf16.xpose.msra.mxu0 0
        %1683 = vmatprep.subr.bf16.mxu0 0
        %1684 = vmatpush1.bf16.xpose.msra.mxu0 0
        %1685 = vmatprep.subr.bf16.mxu0 0
        %1686 = vmatpush1.bf16.xpose.msra.mxu0 0
        %1687 = vmatprep.subr.bf16.mxu0 0
        %1688 = vmatpush1.bf16.xpose.msra.mxu0 0
        %1689 = vmatprep.subr.bf16.mxu0 0
        %1690 = vmatpush1.bf16.xpose.msra.mxu0 0
        %1691 = vmatprep.subr.bf16.mxu0 0
        %1692 = vmatpush1.bf16.xpose.msra.mxu0 0
        %1693 = vmatprep.subr.bf16.mxu0 0
        %1694 = vmatpush1.bf16.xpose.msra.mxu0 0
        %1695 = vmatprep.subr.bf16.mxu0 0
        %1696 = vmatpush1.bf16.xpose.msra.mxu0 0
        %1697 = vmatprep.subr.bf16.mxu0 0
        %1698 = vmatpush1.bf16.xpose.msra.mxu0 0
        %1699 = vmatprep.mubr.bf16.mxu0 0
        %1700 = vmatmul.mubr.bf16.gmra.mrb[0].mxu0 %v1439
        %v1701 = vpop.f32.mrb[0].mxu0
        %v1702 = vadd.f32 0.0, %v1701
        %v1703 = vpop.f32.mrb[0].mxu0
        %v1704 = vpop.f32.mrb[0].mxu0
        %v1705 = vadd.f32 0.0, %v1704
        %v1706 = vpop.f32.mrb[0].mxu0
        %1707 = vdwg.mxu0
        %1708 = vmatprep.subr.bf16.mxu0 0
        %1709 = vmatpush1.bf16.xpose.msra.mxu0 %v1445
        %1710 = vmatprep.subr.bf16.mxu0 0
        %1711 = vmatpush1.bf16.xpose.msra.mxu0 0
        %1712 = vmatprep.subr.bf16.mxu0 0
        %1713 = vmatpush1.bf16.xpose.msra.mxu0 0
        %1714 = vmatprep.subr.bf16.mxu0 0
        %1715 = vmatpush1.bf16.xpose.msra.mxu0 0
        %1716 = vmatprep.subr.bf16.mxu0 0
        %1717 = vmatpush1.bf16.xpose.msra.mxu0 0
        %1718 = vmatprep.subr.bf16.mxu0 0
        %1719 = vmatpush1.bf16.xpose.msra.mxu0 0
        %1720 = vmatprep.subr.bf16.mxu0 0
        %1721 = vmatpush1.bf16.xpose.msra.mxu0 0
        %1722 = vmatprep.subr.bf16.mxu0 0
        %1723 = vmatpush1.bf16.xpose.msra.mxu0 0
        %1724 = vmatprep.subr.bf16.mxu0 0
        %1725 = vmatpush1.bf16.xpose.msra.mxu0 0
        %1726 = vmatprep.subr.bf16.mxu0 0
        %1727 = vmatpush1.bf16.xpose.msra.mxu0 0
        %1728 = vmatprep.subr.bf16.mxu0 0
        %1729 = vmatpush1.bf16.xpose.msra.mxu0 0
        %1730 = vmatprep.subr.bf16.mxu0 0
        %1731 = vmatpush1.bf16.xpose.msra.mxu0 0
        %1732 = vmatprep.subr.bf16.mxu0 0
        %1733 = vmatpush1.bf16.xpose.msra.mxu0 0
        %1734 = vmatprep.subr.bf16.mxu0 0
        %1735 = vmatpush1.bf16.xpose.msra.mxu0 0
        %1736 = vmatprep.subr.bf16.mxu0 0
        %1737 = vmatpush1.bf16.xpose.msra.mxu0 0
        %1738 = vmatprep.subr.bf16.mxu0 0
        %1739 = vmatpush1.bf16.xpose.msra.mxu0 0
        %1740 = vmatprep.mubr.bf16.mxu0 0
        %1741 = vmatmul.mubr.bf16.gmra.mrb[0].mxu0 %v1441
        %v1742 = vpop.f32.mrb[0].mxu0
        %v1743 = vadd.f32 0.0, %v1742
        %v1744 = vpop.f32.mrb[0].mxu0
        %v1745 = vpop.f32.mrb[0].mxu0
        %v1746 = vadd.f32 0.0, %v1745
        %v1747 = vpop.f32.mrb[0].mxu0
        %1748 = vdwg.mxu0
        %v1749 = vsel %vm1532, %v1702, -inf
        %1750 = vmax.xlane.f32.xlu0 %v1749
        %v1751 = vpop.xlane.xlu0 %1750
        %v1752 = vsel %vm1532, %v1705, -inf
        %1753 = vmax.xlane.f32.xlu0 %v1752
        %v1754 = vpop.xlane.xlu0 %1753
        %v1755 = vsel %vm1532, %v1743, -inf
        %1756 = vmax.xlane.f32.xlu0 %v1755
        %v1757 = vpop.xlane.xlu0 %1756
        %v1758 = vsel %vm1532, %v1746, -inf
        %1759 = vmax.xlane.f32.xlu0 %v1758
        %v1760 = vpop.xlane.xlu0 %1759
        %v1761 = vsub.f32 %v1702, %v1751
        %v1762 = vsub.f32 %v1705, %v1754
        %v1763 = vsub.f32 %v1743, %v1757
        %v1764 = vsub.f32 %v1746, %v1760
        %v1765 = vmul.f32 %v1761, 1.442695
        %v1766 = vpow.pop %v1765
        %v1767 = vmul.f32 %v1762, 1.442695
        %v1768 = vpow.pop %v1767
        %v1769 = vmul.f32 %v1763, 1.442695
        %v1770 = vpow.pop %v1769
        %v1771 = vmul.f32 %v1764, 1.442695
        %v1772 = vpow.pop %v1771
        %v1773 = vsel %vm1532, %v1766, 0.0
        %1774 = vadd.xlane.f32.xlu0 %v1773
        %v1775 = vpop.xlane.xlu0 %1774
        %v1776 = vsel %vm1532, %v1768, 0.0
        %1777 = vadd.xlane.f32.xlu0 %v1776
        %v1778 = vpop.xlane.xlu0 %1777
        %v1779 = vsel %vm1532, %v1770, 0.0
        %1780 = vadd.xlane.f32.xlu0 %v1779
        %v1781 = vpop.xlane.xlu0 %1780
        %v1782 = vsel %vm1532, %v1772, 0.0
        %1783 = vadd.xlane.f32.xlu0 %v1782
        %v1784 = vpop.xlane.xlu0 %1783
        %v1785 = vrcp.pop %v1775
        %v1786 = vrcp.pop %v1778
        %v1787 = vrcp.pop %v1781
        %v1788 = vrcp.pop %v1784
        %v1789 = vmul.f32 %v1766, %v1785
        %v1790 = vmul.f32 %v1768, %v1786
        %v1791 = vmul.f32 %v1770, %v1787
        %v1792 = vmul.f32 %v1772, %v1788
        %v1793 = vpack.c.bf16 %v1790, %v1789
        %v1794 = vpack.c.bf16 %v1792, %v1791
        %v1796 = vsel %vm1532, %v1793, 0
        %1798 = vmatprep.subr.bf16.mxu0 0
        %1799 = vmatpush1.bf16.msra.mxu0 %v1447
        %1800 = vmatprep.subr.bf16.mxu0 0
        %1801 = vmatpush1.bf16.msra.mxu0 0
        %1802 = vmatprep.subr.bf16.mxu0 0
        %1803 = vmatpush1.bf16.msra.mxu0 0
        %1804 = vmatprep.subr.bf16.mxu0 0
        %1805 = vmatpush1.bf16.msra.mxu0 0
        %1806 = vmatprep.subr.bf16.mxu0 0
        %1807 = vmatpush1.bf16.msra.mxu0 0
        %1808 = vmatprep.subr.bf16.mxu0 0
        %1809 = vmatpush1.bf16.msra.mxu0 0
        %1810 = vmatprep.subr.bf16.mxu0 0
        %1811 = vmatpush1.bf16.msra.mxu0 0
        %1812 = vmatprep.subr.bf16.mxu0 0
        %1813 = vmatpush1.bf16.msra.mxu0 0
        %1814 = vmatprep.subr.bf16.mxu0 0
        %1815 = vmatpush1.bf16.msra.mxu0 0
        %1816 = vmatprep.subr.bf16.mxu0 0
        %1817 = vmatpush1.bf16.msra.mxu0 0
        %1818 = vmatprep.subr.bf16.mxu0 0
        %1819 = vmatpush1.bf16.msra.mxu0 0
        %1820 = vmatprep.subr.bf16.mxu0 0
        %1821 = vmatpush1.bf16.msra.mxu0 0
        %1822 = vmatprep.subr.bf16.mxu0 0
        %1823 = vmatpush1.bf16.msra.mxu0 0
        %1824 = vmatprep.subr.bf16.mxu0 0
        %1825 = vmatpush1.bf16.msra.mxu0 0
        %1826 = vmatprep.subr.bf16.mxu0 0
        %1827 = vmatpush1.bf16.msra.mxu0 0
        %1828 = vmatprep.subr.bf16.mxu0 0
        %1829 = vmatpush1.bf16.msra.mxu0 0
        %1830 = vmatprep.mubr.bf16.mxu0 0
        %1831 = vmatmul.mubr.bf16.gmra.mrb[0].mxu0 %v1796
        %v1832 = vpop.f32.mrb[0].mxu0
        %v1833 = vadd.f32 0.0, %v1832
        %v1834 = vpop.f32.mrb[0].mxu0
        %v1835 = vpop.f32.mrb[0].mxu0
        %v1836 = vadd.f32 0.0, %v1835
        %v1837 = vpop.f32.mrb[0].mxu0
        %1838 = vdwg.mxu0
        %v1840 = vsel %vm1532, %v1794, 0
        %1842 = vmatprep.subr.bf16.mxu0 0
        %1843 = vmatpush1.bf16.msra.mxu0 %v1449
        %1844 = vmatprep.subr.bf16.mxu0 0
        %1845 = vmatpush1.bf16.msra.mxu0 0
        %1846 = vmatprep.subr.bf16.mxu0 0
        %1847 = vmatpush1.bf16.msra.mxu0 0
        %1848 = vmatprep.subr.bf16.mxu0 0
        %1849 = vmatpush1.bf16.msra.mxu0 0
        %1850 = vmatprep.subr.bf16.mxu0 0
        %1851 = vmatpush1.bf16.msra.mxu0 0
        %1852 = vmatprep.subr.bf16.mxu0 0
        %1853 = vmatpush1.bf16.msra.mxu0 0
        %1854 = vmatprep.subr.bf16.mxu0 0
        %1855 = vmatpush1.bf16.msra.mxu0 0
        %1856 = vmatprep.subr.bf16.mxu0 0
        %1857 = vmatpush1.bf16.msra.mxu0 0
        %1858 = vmatprep.subr.bf16.mxu0 0
        %1859 = vmatpush1.bf16.msra.mxu0 0
        %1860 = vmatprep.subr.bf16.mxu0 0
        %1861 = vmatpush1.bf16.msra.mxu0 0
        %1862 = vmatprep.subr.bf16.mxu0 0
        %1863 = vmatpush1.bf16.msra.mxu0 0
        %1864 = vmatprep.subr.bf16.mxu0 0
        %1865 = vmatpush1.bf16.msra.mxu0 0
        %1866 = vmatprep.subr.bf16.mxu0 0
        %1867 = vmatpush1.bf16.msra.mxu0 0
        %1868 = vmatprep.subr.bf16.mxu0 0
        %1869 = vmatpush1.bf16.msra.mxu0 0
        %1870 = vmatprep.subr.bf16.mxu0 0
        %1871 = vmatpush1.bf16.msra.mxu0 0
        %1872 = vmatprep.subr.bf16.mxu0 0
        %1873 = vmatpush1.bf16.msra.mxu0 0
        %1874 = vmatprep.mubr.bf16.mxu0 0
        %1875 = vmatmul.mubr.bf16.gmra.mrb[0].mxu0 %v1840
        %v1876 = vpop.f32.mrb[0].mxu0
        %v1877 = vadd.f32 0.0, %v1876
        %v1878 = vpop.f32.mrb[0].mxu0
        %v1879 = vpop.f32.mrb[0].mxu0
        %v1880 = vadd.f32 0.0, %v1879
        %v1881 = vpop.f32.mrb[0].mxu0
        %1882 = vdwg.mxu0
        %v1883 = vpack.c.bf16 %v1620, %v1617
        %v1884 = vpack.c.bf16 %v1836, %v1833
        %v1885 = vpack.c.bf16 %v1664, %v1661
        %v1886 = vpack.c.bf16 %v1880, %v1877
        %v1887 = vld [vmem:[#allocation10] sm:$0xff]
        %v1888 = vld [vmem:[#allocation10 + $0x8] sm:$0xff]
        %v1889 = vld [vmem:[#allocation10 + $0x10] sm:$0xff]
        %v1890 = vld [vmem:[#allocation10 + $0x18] sm:$0xff]
        %v1891 = vld [vmem:[#allocation10 + $0x20] sm:$0xff]
        %v1892 = vld [vmem:[#allocation10 + $0x28] sm:$0xff]
        %v1893 = vld [vmem:[#allocation10 + $0x30] sm:$0xff]
        %v1894 = vld [vmem:[#allocation10 + $0x38] sm:$0xff]
        %v1895 = vld [vmem:[#allocation10 + $0x40] sm:$0xff]
        %v1896 = vld [vmem:[#allocation10 + $0x48] sm:$0xff]
        %v1897 = vld [vmem:[#allocation10 + $0x50] sm:$0xff]
        %v1898 = vld [vmem:[#allocation10 + $0x58] sm:$0xff]
        %v1899 = vld [vmem:[#allocation10 + $0x60] sm:$0xff]
        %v1900 = vld [vmem:[#allocation10 + $0x68] sm:$0xff]
        %v1901 = vld [vmem:[#allocation10 + $0x70] sm:$0xff]
        %v1902 = vld [vmem:[#allocation10 + $0x78] sm:$0xff]
        %v1903 = vld [vmem:[#allocation10 + $0x80] sm:$0xff]
        %v1904 = vld [vmem:[#allocation10 + $0x88] sm:$0xff]
        %v1905 = vld [vmem:[#allocation10 + $0x90] sm:$0xff]
        %v1906 = vld [vmem:[#allocation10 + $0x98] sm:$0xff]
        %v1907 = vld [vmem:[#allocation10 + $0xa0] sm:$0xff]
        %v1908 = vld [vmem:[#allocation10 + $0xa8] sm:$0xff]
        %v1909 = vld [vmem:[#allocation10 + $0xb0] sm:$0xff]
        %v1910 = vld [vmem:[#allocation10 + $0xb8] sm:$0xff]
        %v1911 = vld [vmem:[#allocation10 + $0xc0] sm:$0xff]
        %v1912 = vld [vmem:[#allocation10 + $0xc8] sm:$0xff]
        %v1913 = vld [vmem:[#allocation10 + $0xd0] sm:$0xff]
        %v1914 = vld [vmem:[#allocation10 + $0xd8] sm:$0xff]
        %v1915 = vld [vmem:[#allocation10 + $0xe0] sm:$0xff]
        %v1916 = vld [vmem:[#allocation10 + $0xe8] sm:$0xff]
        %v1917 = vld [vmem:[#allocation10 + $0xf0] sm:$0xff]
        %v1918 = vld [vmem:[#allocation10 + $0xf8] sm:$0xff]
        %v1919 = vld [vmem:[%s6] sm:$0x3]
        %v1921 = vlaneseq
        %v1922 = vshrl.u32 %v1921, 7
        %v1923 = vsub.s32 0, %v1922
        %v1924 = vrot.slane %v1919, %v1923
        %v1925 = vlaneseq
        %v1926 = vshrl.u32 %v1925, 7
        %v1927 = vsub.s32 1, %v1926
        %v1928 = vrot.slane %v1919, %v1927
        %v1963 = vunpack.c.l.b16 %v1887
        %v1964 = vunpack.c.h.b16 %v1887
        %v1965 = vunpack.c.l.b16 %v1888
        %v1966 = vunpack.c.h.b16 %v1888
        %v1967 = vunpack.c.l.b16 %v1889
        %v1968 = vunpack.c.h.b16 %v1889
        %v1969 = vunpack.c.l.b16 %v1890
        %v1970 = vunpack.c.h.b16 %v1890
        %v1971 = vunpack.c.l.b16 %v1891
        %v1972 = vunpack.c.h.b16 %v1891
        %v1973 = vunpack.c.l.b16 %v1892
        %v1974 = vunpack.c.h.b16 %v1892
        %v1975 = vunpack.c.l.b16 %v1893
        %v1976 = vunpack.c.h.b16 %v1893
        %v1977 = vunpack.c.l.b16 %v1894
        %v1978 = vunpack.c.h.b16 %v1894
        %v1979 = vunpack.c.l.b16 %v1895
        %v1980 = vunpack.c.h.b16 %v1895
        %v1981 = vunpack.c.l.b16 %v1896
        %v1982 = vunpack.c.h.b16 %v1896
        %v1983 = vunpack.c.l.b16 %v1897
        %v1984 = vunpack.c.h.b16 %v1897
        %v1985 = vunpack.c.l.b16 %v1898
        %v1986 = vunpack.c.h.b16 %v1898
        %v1987 = vunpack.c.l.b16 %v1899
        %v1988 = vunpack.c.h.b16 %v1899
        %v1989 = vunpack.c.l.b16 %v1900
        %v1990 = vunpack.c.h.b16 %v1900
        %v1991 = vunpack.c.l.b16 %v1901
        %v1992 = vunpack.c.h.b16 %v1901
        %v1993 = vunpack.c.l.b16 %v1902
        %v1994 = vunpack.c.h.b16 %v1902
        %v1995 = vunpack.c.l.b16 %v1903
        %v1996 = vunpack.c.h.b16 %v1903
        %v1997 = vunpack.c.l.b16 %v1904
        %v1998 = vunpack.c.h.b16 %v1904
        %v1999 = vunpack.c.l.b16 %v1905
        %v2000 = vunpack.c.h.b16 %v1905
        %v2001 = vunpack.c.l.b16 %v1906
        %v2002 = vunpack.c.h.b16 %v1906
        %v2003 = vunpack.c.l.b16 %v1907
        %v2004 = vunpack.c.h.b16 %v1907
        %v2005 = vunpack.c.l.b16 %v1908
        %v2006 = vunpack.c.h.b16 %v1908
        %v2007 = vunpack.c.l.b16 %v1909
        %v2008 = vunpack.c.h.b16 %v1909
        %v2009 = vunpack.c.l.b16 %v1910
        %v2010 = vunpack.c.h.b16 %v1910
        %v2011 = vunpack.c.l.b16 %v1911
        %v2012 = vunpack.c.h.b16 %v1911
        %v2013 = vunpack.c.l.b16 %v1912
        %v2014 = vunpack.c.h.b16 %v1912
        %v2015 = vunpack.c.l.b16 %v1913
        %v2016 = vunpack.c.h.b16 %v1913
        %v2017 = vunpack.c.l.b16 %v1914
        %v2018 = vunpack.c.h.b16 %v1914
        %v2019 = vunpack.c.l.b16 %v1915
        %v2020 = vunpack.c.h.b16 %v1915
        %v2021 = vunpack.c.l.b16 %v1916
        %v2022 = vunpack.c.h.b16 %v1916
        %v2023 = vunpack.c.l.b16 %v1917
        %v2024 = vunpack.c.h.b16 %v1917
        %v2025 = vunpack.c.l.b16 %v1918
        %v2026 = vunpack.c.h.b16 %v1918
        %v2027 = vpack.c.b16 %v1965, %v1963
        %v2028 = vpack.c.b16 %v1966, %v1964
        %v2029 = vpack.c.b16 %v1969, %v1967
        %v2030 = vpack.c.b16 %v1970, %v1968
        %v2031 = vpack.c.b16 %v1973, %v1971
        %v2032 = vpack.c.b16 %v1974, %v1972
        %v2033 = vpack.c.b16 %v1977, %v1975
        %v2034 = vpack.c.b16 %v1978, %v1976
        %v2035 = vpack.c.b16 %v1981, %v1979
        %v2036 = vpack.c.b16 %v1982, %v1980
        %v2037 = vpack.c.b16 %v1985, %v1983
        %v2038 = vpack.c.b16 %v1986, %v1984
        %v2039 = vpack.c.b16 %v1989, %v1987
        %v2040 = vpack.c.b16 %v1990, %v1988
        %v2041 = vpack.c.b16 %v1993, %v1991
        %v2042 = vpack.c.b16 %v1994, %v1992
        %v2043 = vpack.c.b16 %v1997, %v1995
        %v2044 = vpack.c.b16 %v1998, %v1996
        %v2045 = vpack.c.b16 %v2001, %v1999
        %v2046 = vpack.c.b16 %v2002, %v2000
        %v2047 = vpack.c.b16 %v2005, %v2003
        %v2048 = vpack.c.b16 %v2006, %v2004
        %v2049 = vpack.c.b16 %v2009, %v2007
        %v2050 = vpack.c.b16 %v2010, %v2008
        %v2051 = vpack.c.b16 %v2013, %v2011
        %v2052 = vpack.c.b16 %v2014, %v2012
        %v2053 = vpack.c.b16 %v2017, %v2015
        %v2054 = vpack.c.b16 %v2018, %v2016
        %v2055 = vpack.c.b16 %v2021, %v2019
        %v2056 = vpack.c.b16 %v2022, %v2020
        %v2057 = vpack.c.b16 %v2025, %v2023
        %v2058 = vpack.c.b16 %v2026, %v2024
        %2091 = vmatprep.subr.bf16.mxu0 %v2028
        %2092 = vmatpush1.bf16.msra.mxu0 %v2027
        %2093 = vmatprep.subr.bf16.mxu0 %v2030
        %2094 = vmatpush1.bf16.msra.mxu0 %v2029
        %2095 = vmatprep.subr.bf16.mxu0 %v2032
        %2096 = vmatpush1.bf16.msra.mxu0 %v2031
        %2097 = vmatprep.subr.bf16.mxu0 %v2034
        %2098 = vmatpush1.bf16.msra.mxu0 %v2033
        %2099 = vmatprep.subr.bf16.mxu0 %v2036
        %2100 = vmatpush1.bf16.msra.mxu0 %v2035
        %2101 = vmatprep.subr.bf16.mxu0 %v2038
        %2102 = vmatpush1.bf16.msra.mxu0 %v2037
        %2103 = vmatprep.subr.bf16.mxu0 %v2040
        %2104 = vmatpush1.bf16.msra.mxu0 %v2039
        %2105 = vmatprep.subr.bf16.mxu0 %v2042
        %2106 = vmatpush1.bf16.msra.mxu0 %v2041
        %2107 = vmatprep.subr.bf16.mxu0 %v2044
        %2108 = vmatpush1.bf16.msra.mxu0 %v2043
        %2109 = vmatprep.subr.bf16.mxu0 %v2046
        %2110 = vmatpush1.bf16.msra.mxu0 %v2045
        %2111 = vmatprep.subr.bf16.mxu0 %v2048
        %2112 = vmatpush1.bf16.msra.mxu0 %v2047
        %2113 = vmatprep.subr.bf16.mxu0 %v2050
        %2114 = vmatpush1.bf16.msra.mxu0 %v2049
        %2115 = vmatprep.subr.bf16.mxu0 %v2052
        %2116 = vmatpush1.bf16.msra.mxu0 %v2051
        %2117 = vmatprep.subr.bf16.mxu0 %v2054
        %2118 = vmatpush1.bf16.msra.mxu0 %v2053
        %2119 = vmatprep.subr.bf16.mxu0 %v2056
        %2120 = vmatpush1.bf16.msra.mxu0 %v2055
        %2121 = vmatprep.subr.bf16.mxu0 %v2058
        %2122 = vmatpush1.bf16.msra.mxu0 %v2057
        %2123 = vmatprep.mubr.bf16.mxu0 %v1884
        %2124 = vmatmul.mubr.bf16.gmra.mrb[0].mxu0 %v1883
        %v2125 = vpop.f32.mrb[0].mxu0
        %v2126 = vadd.f32 %v1924, %v2125
        %v2127 = vpop.f32.mrb[0].mxu0
        %v2128 = vadd.f32 %v1928, %v2127
        %v2129 = vpop.f32.mrb[0].mxu0
        %v2130 = vadd.f32 %v1924, %v2129
        %v2131 = vpop.f32.mrb[0].mxu0
        %v2132 = vadd.f32 %v1928, %v2131
        %2133 = vmatprep.mubr.bf16.mxu0 %v1886
        %2134 = vmatmul.mubr.bf16.gmra.mrb[0].mxu0 %v1885
        %v2135 = vpop.f32.mrb[0].mxu0
        %v2136 = vadd.f32 %v1924, %v2135
        %v2137 = vpop.f32.mrb[0].mxu0
        %v2138 = vadd.f32 %v1928, %v2137
        %v2139 = vpop.f32.mrb[0].mxu0
        %v2140 = vadd.f32 %v1924, %v2139
        %v2141 = vpop.f32.mrb[0].mxu0
        %v2142 = vadd.f32 %v1928, %v2141
        %2143 = vdwg.mxu0
        %v2144 = vadd.f32 %v546, %v2126
        %v2145 = vadd.f32 %v547, %v2128
        %v2146 = vadd.f32 %v548, %v2130
        %v2147 = vadd.f32 %v549, %v2132
        %v2148 = vadd.f32 %v550, %v2136
        %v2149 = vadd.f32 %v551, %v2138
        %v2150 = vadd.f32 %v552, %v2140
        %v2151 = vadd.f32 %v553, %v2142
        %v2152 = vld [vmem:[%s7] sm:$0x3]
        %v2153 = vld [vmem:[%s8] sm:$0x3]
        %v2154 = vadd.f32 %v2144, %v2145
        %2155 = vadd.xlane.f32.xlu0 %v2154
        %v2156 = vpop.xlane.xlu0 %2155
        %v2157 = vadd.f32 %v2146, %v2147
        %2158 = vadd.xlane.f32.xlu0 %v2157
        %v2159 = vpop.xlane.xlu0 %2158
        %v2160 = vadd.f32 %v2148, %v2149
        %2161 = vadd.xlane.f32.xlu0 %v2160
        %v2162 = vpop.xlane.xlu0 %2161
        %v2163 = vadd.f32 %v2150, %v2151
        %2164 = vadd.xlane.f32.xlu0 %v2163
        %v2165 = vpop.xlane.xlu0 %2164
        %v2166 = vmul.f32 %v2156, %v568
        %v2167 = vmul.f32 %v2159, %v568
        %v2168 = vmul.f32 %v2162, %v568
        %v2169 = vmul.f32 %v2165, %v568
        %v2170 = vsub.f32 %v2144, %v2166
        %v2171 = vsub.f32 %v2145, %v2166
        %v2172 = vsub.f32 %v2146, %v2167
        %v2173 = vsub.f32 %v2147, %v2167
        %v2174 = vsub.f32 %v2148, %v2168
        %v2175 = vsub.f32 %v2149, %v2168
        %v2176 = vsub.f32 %v2150, %v2169
        %v2177 = vsub.f32 %v2151, %v2169
        %v2178 = vmul.f32 %v2170, %v2170
        %v2179 = vmul.f32 %v2171, %v2171
        %v2180 = vmul.f32 %v2172, %v2172
        %v2181 = vmul.f32 %v2173, %v2173
        %v2182 = vmul.f32 %v2174, %v2174
        %v2183 = vmul.f32 %v2175, %v2175
        %v2184 = vmul.f32 %v2176, %v2176
        %v2185 = vmul.f32 %v2177, %v2177
        %v2186 = vadd.f32 %v2178, %v2179
        %2187 = vadd.xlane.f32.xlu0 %v2186
        %v2188 = vpop.xlane.xlu0 %2187
        %v2189 = vadd.f32 %v2180, %v2181
        %2190 = vadd.xlane.f32.xlu0 %v2189
        %v2191 = vpop.xlane.xlu0 %2190
        %v2192 = vadd.f32 %v2182, %v2183
        %2193 = vadd.xlane.f32.xlu0 %v2192
        %v2194 = vpop.xlane.xlu0 %2193
        %v2195 = vadd.f32 %v2184, %v2185
        %2196 = vadd.xlane.f32.xlu0 %v2195
        %v2197 = vpop.xlane.xlu0 %2196
        %v2198 = vmul.f32 %v2188, %v568
        %v2199 = vmul.f32 %v2191, %v568
        %v2200 = vmul.f32 %v2194, %v568
        %v2201 = vmul.f32 %v2197, %v568
        %v2202 = vadd.f32 %v2198, 1e-06
        %v2203 = vadd.f32 %v2199, 1e-06
        %v2204 = vadd.f32 %v2200, 1e-06
        %v2205 = vadd.f32 %v2201, 1e-06
        %v2206 = vrsqrt.pop %v2202
        %v2207 = vrsqrt.pop %v2203
        %v2208 = vrsqrt.pop %v2204
        %v2209 = vrsqrt.pop %v2205
        %v2210 = vmul.f32 %v2170, %v2206
        %v2211 = vmul.f32 %v2171, %v2206
        %v2212 = vmul.f32 %v2172, %v2207
        %v2213 = vmul.f32 %v2173, %v2207
        %v2214 = vmul.f32 %v2174, %v2208
        %v2215 = vmul.f32 %v2175, %v2208
        %v2216 = vmul.f32 %v2176, %v2209
        %v2217 = vmul.f32 %v2177, %v2209
        %v2219 = vlaneseq
        %v2220 = vshrl.u32 %v2219, 7
        %v2221 = vsub.s32 0, %v2220
        %v2222 = vrot.slane %v2152, %v2221
        %v2223 = vlaneseq
        %v2224 = vshrl.u32 %v2223, 7
        %v2225 = vsub.s32 1, %v2224
        %v2226 = vrot.slane %v2152, %v2225
        %v2229 = vmul.f32 %v2210, %v2222
        %v2230 = vmul.f32 %v2211, %v2226
        %v2231 = vmul.f32 %v2212, %v2222
        %v2232 = vmul.f32 %v2213, %v2226
        %v2233 = vmul.f32 %v2214, %v2222
        %v2234 = vmul.f32 %v2215, %v2226
        %v2235 = vmul.f32 %v2216, %v2222
        %v2236 = vmul.f32 %v2217, %v2226
        %v2238 = vlaneseq
        %v2239 = vshrl.u32 %v2238, 7
        %v2240 = vsub.s32 0, %v2239
        %v2241 = vrot.slane %v2153, %v2240
        %v2242 = vlaneseq
        %v2243 = vshrl.u32 %v2242, 7
        %v2244 = vsub.s32 1, %v2243
        %v2245 = vrot.slane %v2153, %v2244
        %v2248 = vadd.f32 %v2229, %v2241
        %v2249 = vadd.f32 %v2230, %v2245
        %v2250 = vadd.f32 %v2231, %v2241
        %v2251 = vadd.f32 %v2232, %v2245
        %v2252 = vadd.f32 %v2233, %v2241
        %v2253 = vadd.f32 %v2234, %v2245
        %v2254 = vadd.f32 %v2235, %v2241
        %v2255 = vadd.f32 %v2236, %v2245
        %v2256 = vpack.c.bf16 %v2250, %v2248
        %v2257 = vpack.c.bf16 %v2251, %v2249
        %v2258 = vpack.c.bf16 %v2254, %v2252
        %v2259 = vpack.c.bf16 %v2255, %v2253
        %v2260 = vld [vmem:[#allocation11] sm:$0xff]
        %v2261 = vld [vmem:[#allocation11 + $0x8] sm:$0xff]
        %v2262 = vld [vmem:[#allocation11 + $0x10] sm:$0xff]
        %v2263 = vld [vmem:[#allocation11 + $0x18] sm:$0xff]
        %v2264 = vld [vmem:[#allocation11 + $0x20] sm:$0xff]
        %v2265 = vld [vmem:[#allocation11 + $0x28] sm:$0xff]
        %v2266 = vld [vmem:[#allocation11 + $0x30] sm:$0xff]
        %v2267 = vld [vmem:[#allocation11 + $0x38] sm:$0xff]
        %v2268 = vld [vmem:[#allocation11 + $0x40] sm:$0xff]
        %v2269 = vld [vmem:[#allocation11 + $0x48] sm:$0xff]
        %v2270 = vld [vmem:[#allocation11 + $0x50] sm:$0xff]
        %v2271 = vld [vmem:[#allocation11 + $0x58] sm:$0xff]
        %v2272 = vld [vmem:[#allocation11 + $0x60] sm:$0xff]
        %v2273 = vld [vmem:[#allocation11 + $0x68] sm:$0xff]
        %v2274 = vld [vmem:[#allocation11 + $0x70] sm:$0xff]
        %v2275 = vld [vmem:[#allocation11 + $0x78] sm:$0xff]
        %v2276 = vld [vmem:[#allocation11 + $0x80] sm:$0xff]
        %v2277 = vld [vmem:[#allocation11 + $0x88] sm:$0xff]
        %v2278 = vld [vmem:[#allocation11 + $0x90] sm:$0xff]
        %v2279 = vld [vmem:[#allocation11 + $0x98] sm:$0xff]
        %v2280 = vld [vmem:[#allocation11 + $0xa0] sm:$0xff]
        %v2281 = vld [vmem:[#allocation11 + $0xa8] sm:$0xff]
        %v2282 = vld [vmem:[#allocation11 + $0xb0] sm:$0xff]
        %v2283 = vld [vmem:[#allocation11 + $0xb8] sm:$0xff]
        %v2284 = vld [vmem:[#allocation11 + $0xc0] sm:$0xff]
        %v2285 = vld [vmem:[#allocation11 + $0xc8] sm:$0xff]
        %v2286 = vld [vmem:[#allocation11 + $0xd0] sm:$0xff]
        %v2287 = vld [vmem:[#allocation11 + $0xd8] sm:$0xff]
        %v2288 = vld [vmem:[#allocation11 + $0xe0] sm:$0xff]
        %v2289 = vld [vmem:[#allocation11 + $0xe8] sm:$0xff]
        %v2290 = vld [vmem:[#allocation11 + $0xf0] sm:$0xff]
        %v2291 = vld [vmem:[#allocation11 + $0xf8] sm:$0xff]
        %v2292 = vld [vmem:[#allocation11 + $0x100] sm:$0xff]
        %v2293 = vld [vmem:[#allocation11 + $0x108] sm:$0xff]
        %v2294 = vld [vmem:[#allocation11 + $0x110] sm:$0xff]
        %v2295 = vld [vmem:[#allocation11 + $0x118] sm:$0xff]
        %v2296 = vld [vmem:[#allocation11 + $0x120] sm:$0xff]
        %v2297 = vld [vmem:[#allocation11 + $0x128] sm:$0xff]
        %v2298 = vld [vmem:[#allocation11 + $0x130] sm:$0xff]
        %v2299 = vld [vmem:[#allocation11 + $0x138] sm:$0xff]
        %v2300 = vld [vmem:[#allocation11 + $0x140] sm:$0xff]
        %v2301 = vld [vmem:[#allocation11 + $0x148] sm:$0xff]
        %v2302 = vld [vmem:[#allocation11 + $0x150] sm:$0xff]
        %v2303 = vld [vmem:[#allocation11 + $0x158] sm:$0xff]
        %v2304 = vld [vmem:[#allocation11 + $0x160] sm:$0xff]
        %v2305 = vld [vmem:[#allocation11 + $0x168] sm:$0xff]
        %v2306 = vld [vmem:[#allocation11 + $0x170] sm:$0xff]
        %v2307 = vld [vmem:[#allocation11 + $0x178] sm:$0xff]
        %v2308 = vld [vmem:[#allocation11 + $0x180] sm:$0xff]
        %v2309 = vld [vmem:[#allocation11 + $0x188] sm:$0xff]
        %v2310 = vld [vmem:[#allocation11 + $0x190] sm:$0xff]
        %v2311 = vld [vmem:[#allocation11 + $0x198] sm:$0xff]
        %v2312 = vld [vmem:[#allocation11 + $0x1a0] sm:$0xff]
        %v2313 = vld [vmem:[#allocation11 + $0x1a8] sm:$0xff]
        %v2314 = vld [vmem:[#allocation11 + $0x1b0] sm:$0xff]
        %v2315 = vld [vmem:[#allocation11 + $0x1b8] sm:$0xff]
        %v2316 = vld [vmem:[#allocation11 + $0x1c0] sm:$0xff]
        %v2317 = vld [vmem:[#allocation11 + $0x1c8] sm:$0xff]
        %v2318 = vld [vmem:[#allocation11 + $0x1d0] sm:$0xff]
        %v2319 = vld [vmem:[#allocation11 + $0x1d8] sm:$0xff]
        %v2320 = vld [vmem:[#allocation11 + $0x1e0] sm:$0xff]
        %v2321 = vld [vmem:[#allocation11 + $0x1e8] sm:$0xff]
        %v2322 = vld [vmem:[#allocation11 + $0x1f0] sm:$0xff]
        %v2323 = vld [vmem:[#allocation11 + $0x1f8] sm:$0xff]
        %v2324 = vld [vmem:[%s10] sm:$0xf]
        %v2326 = vlaneseq
        %v2327 = vshrl.u32 %v2326, 7
        %v2328 = vsub.s32 0, %v2327
        %v2329 = vrot.slane %v2324, %v2328
        %v2330 = vlaneseq
        %v2331 = vshrl.u32 %v2330, 7
        %v2332 = vsub.s32 1, %v2331
        %v2333 = vrot.slane %v2324, %v2332
        %v2334 = vlaneseq
        %v2335 = vshrl.u32 %v2334, 7
        %v2336 = vsub.s32 2, %v2335
        %v2337 = vrot.slane %v2324, %v2336
        %v2338 = vlaneseq
        %v2339 = vshrl.u32 %v2338, 7
        %v2340 = vsub.s32 3, %v2339
        %v2341 = vrot.slane %v2324, %v2340
        %v2410 = vunpack.c.l.b16 %v2260
        %v2411 = vunpack.c.h.b16 %v2260
        %v2412 = vunpack.c.l.b16 %v2261
        %v2413 = vunpack.c.h.b16 %v2261
        %v2414 = vunpack.c.l.b16 %v2262
        %v2415 = vunpack.c.h.b16 %v2262
        %v2416 = vunpack.c.l.b16 %v2263
        %v2417 = vunpack.c.h.b16 %v2263
        %v2418 = vunpack.c.l.b16 %v2264
        %v2419 = vunpack.c.h.b16 %v2264
        %v2420 = vunpack.c.l.b16 %v2265
        %v2421 = vunpack.c.h.b16 %v2265
        %v2422 = vunpack.c.l.b16 %v2266
        %v2423 = vunpack.c.h.b16 %v2266
        %v2424 = vunpack.c.l.b16 %v2267
        %v2425 = vunpack.c.h.b16 %v2267
        %v2426 = vunpack.c.l.b16 %v2268
        %v2427 = vunpack.c.h.b16 %v2268
        %v2428 = vunpack.c.l.b16 %v2269
        %v2429 = vunpack.c.h.b16 %v2269
        %v2430 = vunpack.c.l.b16 %v2270
        %v2431 = vunpack.c.h.b16 %v2270
        %v2432 = vunpack.c.l.b16 %v2271
        %v2433 = vunpack.c.h.b16 %v2271
        %v2434 = vunpack.c.l.b16 %v2272
        %v2435 = vunpack.c.h.b16 %v2272
        %v2436 = vunpack.c.l.b16 %v2273
        %v2437 = vunpack.c.h.b16 %v2273
        %v2438 = vunpack.c.l.b16 %v2274
        %v2439 = vunpack.c.h.b16 %v2274
        %v2440 = vunpack.c.l.b16 %v2275
        %v2441 = vunpack.c.h.b16 %v2275
        %v2442 = vunpack.c.l.b16 %v2276
        %v2443 = vunpack.c.h.b16 %v2276
        %v2444 = vunpack.c.l.b16 %v2277
        %v2445 = vunpack.c.h.b16 %v2277
        %v2446 = vunpack.c.l.b16 %v2278
        %v2447 = vunpack.c.h.b16 %v2278
        %v2448 = vunpack.c.l.b16 %v2279
        %v2449 = vunpack.c.h.b16 %v2279
        %v2450 = vunpack.c.l.b16 %v2280
        %v2451 = vunpack.c.h.b16 %v2280
        %v2452 = vunpack.c.l.b16 %v2281
        %v2453 = vunpack.c.h.b16 %v2281
        %v2454 = vunpack.c.l.b16 %v2282
        %v2455 = vunpack.c.h.b16 %v2282
        %v2456 = vunpack.c.l.b16 %v2283
        %v2457 = vunpack.c.h.b16 %v2283
        %v2458 = vunpack.c.l.b16 %v2284
        %v2459 = vunpack.c.h.b16 %v2284
        %v2460 = vunpack.c.l.b16 %v2285
        %v2461 = vunpack.c.h.b16 %v2285
        %v2462 = vunpack.c.l.b16 %v2286
        %v2463 = vunpack.c.h.b16 %v2286
        %v2464 = vunpack.c.l.b16 %v2287
        %v2465 = vunpack.c.h.b16 %v2287
        %v2466 = vunpack.c.l.b16 %v2288
        %v2467 = vunpack.c.h.b16 %v2288
        %v2468 = vunpack.c.l.b16 %v2289
        %v2469 = vunpack.c.h.b16 %v2289
        %v2470 = vunpack.c.l.b16 %v2290
        %v2471 = vunpack.c.h.b16 %v2290
        %v2472 = vunpack.c.l.b16 %v2291
        %v2473 = vunpack.c.h.b16 %v2291
        %v2474 = vunpack.c.l.b16 %v2292
        %v2475 = vunpack.c.h.b16 %v2292
        %v2476 = vunpack.c.l.b16 %v2293
        %v2477 = vunpack.c.h.b16 %v2293
        %v2478 = vunpack.c.l.b16 %v2294
        %v2479 = vunpack.c.h.b16 %v2294
        %v2480 = vunpack.c.l.b16 %v2295
        %v2481 = vunpack.c.h.b16 %v2295
        %v2482 = vunpack.c.l.b16 %v2296
        %v2483 = vunpack.c.h.b16 %v2296
        %v2484 = vunpack.c.l.b16 %v2297
        %v2485 = vunpack.c.h.b16 %v2297
        %v2486 = vunpack.c.l.b16 %v2298
        %v2487 = vunpack.c.h.b16 %v2298
        %v2488 = vunpack.c.l.b16 %v2299
        %v2489 = vunpack.c.h.b16 %v2299
        %v2490 = vunpack.c.l.b16 %v2300
        %v2491 = vunpack.c.h.b16 %v2300
        %v2492 = vunpack.c.l.b16 %v2301
        %v2493 = vunpack.c.h.b16 %v2301
        %v2494 = vunpack.c.l.b16 %v2302
        %v2495 = vunpack.c.h.b16 %v2302
        %v2496 = vunpack.c.l.b16 %v2303
        %v2497 = vunpack.c.h.b16 %v2303
        %v2498 = vunpack.c.l.b16 %v2304
        %v2499 = vunpack.c.h.b16 %v2304
        %v2500 = vunpack.c.l.b16 %v2305
        %v2501 = vunpack.c.h.b16 %v2305
        %v2502 = vunpack.c.l.b16 %v2306
        %v2503 = vunpack.c.h.b16 %v2306
        %v2504 = vunpack.c.l.b16 %v2307
        %v2505 = vunpack.c.h.b16 %v2307
        %v2506 = vunpack.c.l.b16 %v2308
        %v2507 = vunpack.c.h.b16 %v2308
        %v2508 = vunpack.c.l.b16 %v2309
        %v2509 = vunpack.c.h.b16 %v2309
        %v2510 = vunpack.c.l.b16 %v2310
        %v2511 = vunpack.c.h.b16 %v2310
        %v2512 = vunpack.c.l.b16 %v2311
        %v2513 = vunpack.c.h.b16 %v2311
        %v2514 = vunpack.c.l.b16 %v2312
        %v2515 = vunpack.c.h.b16 %v2312
        %v2516 = vunpack.c.l.b16 %v2313
        %v2517 = vunpack.c.h.b16 %v2313
        %v2518 = vunpack.c.l.b16 %v2314
        %v2519 = vunpack.c.h.b16 %v2314
        %v2520 = vunpack.c.l.b16 %v2315
        %v2521 = vunpack.c.h.b16 %v2315
        %v2522 = vunpack.c.l.b16 %v2316
        %v2523 = vunpack.c.h.b16 %v2316
        %v2524 = vunpack.c.l.b16 %v2317
        %v2525 = vunpack.c.h.b16 %v2317
        %v2526 = vunpack.c.l.b16 %v2318
        %v2527 = vunpack.c.h.b16 %v2318
        %v2528 = vunpack.c.l.b16 %v2319
        %v2529 = vunpack.c.h.b16 %v2319
        %v2530 = vunpack.c.l.b16 %v2320
        %v2531 = vunpack.c.h.b16 %v2320
        %v2532 = vunpack.c.l.b16 %v2321
        %v2533 = vunpack.c.h.b16 %v2321
        %v2534 = vunpack.c.l.b16 %v2322
        %v2535 = vunpack.c.h.b16 %v2322
        %v2536 = vunpack.c.l.b16 %v2323
        %v2537 = vunpack.c.h.b16 %v2323
        %v2538 = vpack.c.b16 %v2414, %v2410
        %v2539 = vpack.c.b16 %v2415, %v2411
        %v2540 = vpack.c.b16 %v2416, %v2412
        %v2541 = vpack.c.b16 %v2417, %v2413
        %v2542 = vpack.c.b16 %v2422, %v2418
        %v2543 = vpack.c.b16 %v2423, %v2419
        %v2544 = vpack.c.b16 %v2424, %v2420
        %v2545 = vpack.c.b16 %v2425, %v2421
        %v2546 = vpack.c.b16 %v2430, %v2426
        %v2547 = vpack.c.b16 %v2431, %v2427
        %v2548 = vpack.c.b16 %v2432, %v2428
        %v2549 = vpack.c.b16 %v2433, %v2429
        %v2550 = vpack.c.b16 %v2438, %v2434
        %v2551 = vpack.c.b16 %v2439, %v2435
        %v2552 = vpack.c.b16 %v2440, %v2436
        %v2553 = vpack.c.b16 %v2441, %v2437
        %v2554 = vpack.c.b16 %v2446, %v2442
        %v2555 = vpack.c.b16 %v2447, %v2443
        %v2556 = vpack.c.b16 %v2448, %v2444
        %v2557 = vpack.c.b16 %v2449, %v2445
        %v2558 = vpack.c.b16 %v2454, %v2450
        %v2559 = vpack.c.b16 %v2455, %v2451
        %v2560 = vpack.c.b16 %v2456, %v2452
        %v2561 = vpack.c.b16 %v2457, %v2453
        %v2562 = vpack.c.b16 %v2462, %v2458
        %v2563 = vpack.c.b16 %v2463, %v2459
        %v2564 = vpack.c.b16 %v2464, %v2460
        %v2565 = vpack.c.b16 %v2465, %v2461
        %v2566 = vpack.c.b16 %v2470, %v2466
        %v2567 = vpack.c.b16 %v2471, %v2467
        %v2568 = vpack.c.b16 %v2472, %v2468
        %v2569 = vpack.c.b16 %v2473, %v2469
        %v2570 = vpack.c.b16 %v2478, %v2474
        %v2571 = vpack.c.b16 %v2479, %v2475
        %v2572 = vpack.c.b16 %v2480, %v2476
        %v2573 = vpack.c.b16 %v2481, %v2477
        %v2574 = vpack.c.b16 %v2486, %v2482
        %v2575 = vpack.c.b16 %v2487, %v2483
        %v2576 = vpack.c.b16 %v2488, %v2484
        %v2577 = vpack.c.b16 %v2489, %v2485
        %v2578 = vpack.c.b16 %v2494, %v2490
        %v2579 = vpack.c.b16 %v2495, %v2491
        %v2580 = vpack.c.b16 %v2496, %v2492
        %v2581 = vpack.c.b16 %v2497, %v2493
        %v2582 = vpack.c.b16 %v2502, %v2498
        %v2583 = vpack.c.b16 %v2503, %v2499
        %v2584 = vpack.c.b16 %v2504, %v2500
        %v2585 = vpack.c.b16 %v2505, %v2501
        %v2586 = vpack.c.b16 %v2510, %v2506
        %v2587 = vpack.c.b16 %v2511, %v2507
        %v2588 = vpack.c.b16 %v2512, %v2508
        %v2589 = vpack.c.b16 %v2513, %v2509
        %v2590 = vpack.c.b16 %v2518, %v2514
        %v2591 = vpack.c.b16 %v2519, %v2515
        %v2592 = vpack.c.b16 %v2520, %v2516
        %v2593 = vpack.c.b16 %v2521, %v2517
        %v2594 = vpack.c.b16 %v2526, %v2522
        %v2595 = vpack.c.b16 %v2527, %v2523
        %v2596 = vpack.c.b16 %v2528, %v2524
        %v2597 = vpack.c.b16 %v2529, %v2525
        %v2598 = vpack.c.b16 %v2534, %v2530
        %v2599 = vpack.c.b16 %v2535, %v2531
        %v2600 = vpack.c.b16 %v2536, %v2532
        %v2601 = vpack.c.b16 %v2537, %v2533
        %2666 = vmatprep.subr.bf16.mxu0 %v2539
        %2667 = vmatpush1.bf16.msra.mxu0 %v2538
        %2668 = vmatprep.subr.bf16.mxu0 %v2543
        %2669 = vmatpush1.bf16.msra.mxu0 %v2542
        %2670 = vmatprep.subr.bf16.mxu0 %v2547
        %2671 = vmatpush1.bf16.msra.mxu0 %v2546
        %2672 = vmatprep.subr.bf16.mxu0 %v2551
        %2673 = vmatpush1.bf16.msra.mxu0 %v2550
        %2674 = vmatprep.subr.bf16.mxu0 %v2555
        %2675 = vmatpush1.bf16.msra.mxu0 %v2554
        %2676 = vmatprep.subr.bf16.mxu0 %v2559
        %2677 = vmatpush1.bf16.msra.mxu0 %v2558
        %2678 = vmatprep.subr.bf16.mxu0 %v2563
        %2679 = vmatpush1.bf16.msra.mxu0 %v2562
        %2680 = vmatprep.subr.bf16.mxu0 %v2567
        %2681 = vmatpush1.bf16.msra.mxu0 %v2566
        %2682 = vmatprep.subr.bf16.mxu0 %v2571
        %2683 = vmatpush1.bf16.msra.mxu0 %v2570
        %2684 = vmatprep.subr.bf16.mxu0 %v2575
        %2685 = vmatpush1.bf16.msra.mxu0 %v2574
        %2686 = vmatprep.subr.bf16.mxu0 %v2579
        %2687 = vmatpush1.bf16.msra.mxu0 %v2578
        %2688 = vmatprep.subr.bf16.mxu0 %v2583
        %2689 = vmatpush1.bf16.msra.mxu0 %v2582
        %2690 = vmatprep.subr.bf16.mxu0 %v2587
        %2691 = vmatpush1.bf16.msra.mxu0 %v2586
        %2692 = vmatprep.subr.bf16.mxu0 %v2591
        %2693 = vmatpush1.bf16.msra.mxu0 %v2590
        %2694 = vmatprep.subr.bf16.mxu0 %v2595
        %2695 = vmatpush1.bf16.msra.mxu0 %v2594
        %2696 = vmatprep.subr.bf16.mxu0 %v2599
        %2697 = vmatpush1.bf16.msra.mxu0 %v2598
        %2698 = vmatprep.mubr.bf16.mxu0 %v2257
        %2699 = vmatmul.mubr.bf16.gmra.mrb[0].mxu0 %v2256
        %v2700 = vpop.f32.mrb[0].mxu0
        %v2701 = vadd.f32 %v2329, %v2700
        %v2702 = vpop.f32.mrb[0].mxu0
        %v2703 = vadd.f32 %v2333, %v2702
        %v2704 = vpop.f32.mrb[0].mxu0
        %v2705 = vadd.f32 %v2329, %v2704
        %v2706 = vpop.f32.mrb[0].mxu0
        %v2707 = vadd.f32 %v2333, %v2706
        %2708 = vmatprep.mubr.bf16.mxu0 %v2259
        %2709 = vmatmul.mubr.bf16.gmra.mrb[0].mxu0 %v2258
        %v2710 = vpop.f32.mrb[0].mxu0
        %v2711 = vadd.f32 %v2329, %v2710
        %v2712 = vpop.f32.mrb[0].mxu0
        %v2713 = vadd.f32 %v2333, %v2712
        %v2714 = vpop.f32.mrb[0].mxu0
        %v2715 = vadd.f32 %v2329, %v2714
        %v2716 = vpop.f32.mrb[0].mxu0
        %v2717 = vadd.f32 %v2333, %v2716
        %2718 = vdwg.mxu0
        %2719 = vmatprep.subr.bf16.mxu0 %v2541
        %2720 = vmatpush1.bf16.msra.mxu0 %v2540
        %2721 = vmatprep.subr.bf16.mxu0 %v2545
        %2722 = vmatpush1.bf16.msra.mxu0 %v2544
        %2723 = vmatprep.subr.bf16.mxu0 %v2549
        %2724 = vmatpush1.bf16.msra.mxu0 %v2548
        %2725 = vmatprep.subr.bf16.mxu0 %v2553
        %2726 = vmatpush1.bf16.msra.mxu0 %v2552
        %2727 = vmatprep.subr.bf16.mxu0 %v2557
        %2728 = vmatpush1.bf16.msra.mxu0 %v2556
        %2729 = vmatprep.subr.bf16.mxu0 %v2561
        %2730 = vmatpush1.bf16.msra.mxu0 %v2560
        %2731 = vmatprep.subr.bf16.mxu0 %v2565
        %2732 = vmatpush1.bf16.msra.mxu0 %v2564
        %2733 = vmatprep.subr.bf16.mxu0 %v2569
        %2734 = vmatpush1.bf16.msra.mxu0 %v2568
        %2735 = vmatprep.subr.bf16.mxu0 %v2573
        %2736 = vmatpush1.bf16.msra.mxu0 %v2572
        %2737 = vmatprep.subr.bf16.mxu0 %v2577
        %2738 = vmatpush1.bf16.msra.mxu0 %v2576
        %2739 = vmatprep.subr.bf16.mxu0 %v2581
        %2740 = vmatpush1.bf16.msra.mxu0 %v2580
        %2741 = vmatprep.subr.bf16.mxu0 %v2585
        %2742 = vmatpush1.bf16.msra.mxu0 %v2584
        %2743 = vmatprep.subr.bf16.mxu0 %v2589
        %2744 = vmatpush1.bf16.msra.mxu0 %v2588
        %2745 = vmatprep.subr.bf16.mxu0 %v2593
        %2746 = vmatpush1.bf16.msra.mxu0 %v2592
        %2747 = vmatprep.subr.bf16.mxu0 %v2597
        %2748 = vmatpush1.bf16.msra.mxu0 %v2596
        %2749 = vmatprep.subr.bf16.mxu0 %v2601
        %2750 = vmatpush1.bf16.msra.mxu0 %v2600
        %2751 = vmatprep.mubr.bf16.mxu0 %v2257
        %2752 = vmatmul.mubr.bf16.gmra.mrb[0].mxu0 %v2256
        %v2753 = vpop.f32.mrb[0].mxu0
        %v2754 = vadd.f32 %v2337, %v2753
        %v2755 = vpop.f32.mrb[0].mxu0
        %v2756 = vadd.f32 %v2341, %v2755
        %v2757 = vpop.f32.mrb[0].mxu0
        %v2758 = vadd.f32 %v2337, %v2757
        %v2759 = vpop.f32.mrb[0].mxu0
        %v2760 = vadd.f32 %v2341, %v2759
        %2761 = vmatprep.mubr.bf16.mxu0 %v2259
        %2762 = vmatmul.mubr.bf16.gmra.mrb[0].mxu0 %v2258
        %v2763 = vpop.f32.mrb[0].mxu0
        %v2764 = vadd.f32 %v2337, %v2763
        %v2765 = vpop.f32.mrb[0].mxu0
        %v2766 = vadd.f32 %v2341, %v2765
        %v2767 = vpop.f32.mrb[0].mxu0
        %v2768 = vadd.f32 %v2337, %v2767
        %v2769 = vpop.f32.mrb[0].mxu0
        %v2770 = vadd.f32 %v2341, %v2769
        %2771 = vdwg.mxu0
        %v2772 = vmul.f32 %v2701, 0.5
        %v2773 = vmul.f32 %v2703, 0.5
        %v2774 = vmul.f32 %v2754, 0.5
        %v2775 = vmul.f32 %v2756, 0.5
        %v2776 = vmul.f32 %v2705, 0.5
        %v2777 = vmul.f32 %v2707, 0.5
        %v2778 = vmul.f32 %v2758, 0.5
        %v2779 = vmul.f32 %v2760, 0.5
        %v2780 = vmul.f32 %v2711, 0.5
        %v2781 = vmul.f32 %v2713, 0.5
        %v2782 = vmul.f32 %v2764, 0.5
        %v2783 = vmul.f32 %v2766, 0.5
        %v2784 = vmul.f32 %v2715, 0.5
        %v2785 = vmul.f32 %v2717, 0.5
        %v2786 = vmul.f32 %v2768, 0.5
        %v2787 = vmul.f32 %v2770, 0.5
        %v2788 = vmul.f32 %v2701, 0.70710677
        %v2789 = vmul.f32 %v2703, 0.70710677
        %v2790 = vmul.f32 %v2754, 0.70710677
        %v2791 = vmul.f32 %v2756, 0.70710677
        %v2792 = vmul.f32 %v2705, 0.70710677
        %v2793 = vmul.f32 %v2707, 0.70710677
        %v2794 = vmul.f32 %v2758, 0.70710677
        %v2795 = vmul.f32 %v2760, 0.70710677
        %v2796 = vmul.f32 %v2711, 0.70710677
        %v2797 = vmul.f32 %v2713, 0.70710677
        %v2798 = vmul.f32 %v2764, 0.70710677
        %v2799 = vmul.f32 %v2766, 0.70710677
        %v2800 = vmul.f32 %v2715, 0.70710677
        %v2801 = vmul.f32 %v2717, 0.70710677
        %v2802 = vmul.f32 %v2768, 0.70710677
        %v2803 = vmul.f32 %v2770, 0.70710677
        %vm2804 = vcmp.ge.f32.partialorder %v2788, 0.0
        %vm2805 = vcmp.ge.f32.partialorder %v2789, 0.0
        %vm2806 = vcmp.ge.f32.partialorder %v2790, 0.0
        %vm2807 = vcmp.ge.f32.partialorder %v2791, 0.0
        %vm2808 = vcmp.ge.f32.partialorder %v2792, 0.0
        %vm2809 = vcmp.ge.f32.partialorder %v2793, 0.0
        %vm2810 = vcmp.ge.f32.partialorder %v2794, 0.0
        %vm2811 = vcmp.ge.f32.partialorder %v2795, 0.0
        %vm2812 = vcmp.ge.f32.partialorder %v2796, 0.0
        %vm2813 = vcmp.ge.f32.partialorder %v2797, 0.0
        %vm2814 = vcmp.ge.f32.partialorder %v2798, 0.0
        %vm2815 = vcmp.ge.f32.partialorder %v2799, 0.0
        %vm2816 = vcmp.ge.f32.partialorder %v2800, 0.0
        %vm2817 = vcmp.ge.f32.partialorder %v2801, 0.0
        %vm2818 = vcmp.ge.f32.partialorder %v2802, 0.0
        %vm2819 = vcmp.ge.f32.partialorder %v2803, 0.0
        %v2820 = vsel %vm2804, 1.0, -1.0
        %v2821 = vsel %vm2805, 1.0, -1.0
        %v2822 = vsel %vm2806, 1.0, -1.0
        %v2823 = vsel %vm2807, 1.0, -1.0
        %v2824 = vsel %vm2808, 1.0, -1.0
        %v2825 = vsel %vm2809, 1.0, -1.0
        %v2826 = vsel %vm2810, 1.0, -1.0
        %v2827 = vsel %vm2811, 1.0, -1.0
        %v2828 = vsel %vm2812, 1.0, -1.0
        %v2829 = vsel %vm2813, 1.0, -1.0
        %v2830 = vsel %vm2814, 1.0, -1.0
        %v2831 = vsel %vm2815, 1.0, -1.0
        %v2832 = vsel %vm2816, 1.0, -1.0
        %v2833 = vsel %vm2817, 1.0, -1.0
        %v2834 = vsel %vm2818, 1.0, -1.0
        %v2835 = vsel %vm2819, 1.0, -1.0
        %v2836 = vand.u32 2147483647, %v2788
        %v2837 = vand.u32 2147483647, %v2789
        %v2838 = vand.u32 2147483647, %v2790
        %v2839 = vand.u32 2147483647, %v2791
        %v2840 = vand.u32 2147483647, %v2792
        %v2841 = vand.u32 2147483647, %v2793
        %v2842 = vand.u32 2147483647, %v2794
        %v2843 = vand.u32 2147483647, %v2795
        %v2844 = vand.u32 2147483647, %v2796
        %v2845 = vand.u32 2147483647, %v2797
        %v2846 = vand.u32 2147483647, %v2798
        %v2847 = vand.u32 2147483647, %v2799
        %v2848 = vand.u32 2147483647, %v2800
        %v2849 = vand.u32 2147483647, %v2801
        %v2850 = vand.u32 2147483647, %v2802
        %v2851 = vand.u32 2147483647, %v2803
        %v2852 = vmul.f32 %v2836, 0.3275911
        %v2853 = vmul.f32 %v2837, 0.3275911
        %v2854 = vmul.f32 %v2838, 0.3275911
        %v2855 = vmul.f32 %v2839, 0.3275911
        %v2856 = vmul.f32 %v2840, 0.3275911
        %v2857 = vmul.f32 %v2841, 0.3275911
        %v2858 = vmul.f32 %v2842, 0.3275911
        %v2859 = vmul.f32 %v2843, 0.3275911
        %v2860 = vmul.f32 %v2844, 0.3275911
        %v2861 = vmul.f32 %v2845, 0.3275911
        %v2862 = vmul.f32 %v2846, 0.3275911
        %v2863 = vmul.f32 %v2847, 0.3275911
        %v2864 = vmul.f32 %v2848, 0.3275911
        %v2865 = vmul.f32 %v2849, 0.3275911
        %v2866 = vmul.f32 %v2850, 0.3275911
        %v2867 = vmul.f32 %v2851, 0.3275911
        %v2868 = vadd.f32 %v2852, 1.0
        %v2869 = vadd.f32 %v2853, 1.0
        %v2870 = vadd.f32 %v2854, 1.0
        %v2871 = vadd.f32 %v2855, 1.0
        %v2872 = vadd.f32 %v2856, 1.0
        %v2873 = vadd.f32 %v2857, 1.0
        %v2874 = vadd.f32 %v2858, 1.0
        %v2875 = vadd.f32 %v2859, 1.0
        %v2876 = vadd.f32 %v2860, 1.0
        %v2877 = vadd.f32 %v2861, 1.0
        %v2878 = vadd.f32 %v2862, 1.0
        %v2879 = vadd.f32 %v2863, 1.0
        %v2880 = vadd.f32 %v2864, 1.0
        %v2881 = vadd.f32 %v2865, 1.0
        %v2882 = vadd.f32 %v2866, 1.0
        %v2883 = vadd.f32 %v2867, 1.0
        %v2884 = vrcp.pop %v2868
        %v2885 = vmul.f32 1.0, %v2884
        %v2886 = vrcp.pop %v2869
        %v2887 = vmul.f32 1.0, %v2886
        %v2888 = vrcp.pop %v2870
        %v2889 = vmul.f32 1.0, %v2888
        %v2890 = vrcp.pop %v2871
        %v2891 = vmul.f32 1.0, %v2890
        %v2892 = vrcp.pop %v2872
        %v2893 = vmul.f32 1.0, %v2892
        %v2894 = vrcp.pop %v2873
        %v2895 = vmul.f32 1.0, %v2894
        %v2896 = vrcp.pop %v2874
        %v2897 = vmul.f32 1.0, %v2896
        %v2898 = vrcp.pop %v2875
        %v2899 = vmul.f32 1.0, %v2898
        %v2900 = vrcp.pop %v2876
        %v2901 = vmul.f32 1.0, %v2900
        %v2902 = vrcp.pop %v2877
        %v2903 = vmul.f32 1.0, %v2902
        %v2904 = vrcp.pop %v2878
        %v2905 = vmul.f32 1.0, %v2904
        %v2906 = vrcp.pop %v2879
        %v2907 = vmul.f32 1.0, %v2906
        %v2908 = vrcp.pop %v2880
        %v2909 = vmul.f32 1.0, %v2908
        %v2910 = vrcp.pop %v2881
        %v2911 = vmul.f32 1.0, %v2910
        %v2912 = vrcp.pop %v2882
        %v2913 = vmul.f32 1.0, %v2912
        %v2914 = vrcp.pop %v2883
        %v2915 = vmul.f32 1.0, %v2914
        %v2916 = vmul.f32 %v2885, 1.0614054
        %v2917 = vmul.f32 %v2887, 1.0614054
        %v2918 = vmul.f32 %v2889, 1.0614054
        %v2919 = vmul.f32 %v2891, 1.0614054
        %v2920 = vmul.f32 %v2893, 1.0614054
        %v2921 = vmul.f32 %v2895, 1.0614054
        %v2922 = vmul.f32 %v2897, 1.0614054
        %v2923 = vmul.f32 %v2899, 1.0614054
        %v2924 = vmul.f32 %v2901, 1.0614054
        %v2925 = vmul.f32 %v2903, 1.0614054
        %v2926 = vmul.f32 %v2905, 1.0614054
        %v2927 = vmul.f32 %v2907, 1.0614054
        %v2928 = vmul.f32 %v2909, 1.0614054
        %v2929 = vmul.f32 %v2911, 1.0614054
        %v2930 = vmul.f32 %v2913, 1.0614054
        %v2931 = vmul.f32 %v2915, 1.0614054
        %v2932 = vadd.f32 %v2916, -1.4531521
        %v2933 = vadd.f32 %v2917, -1.4531521
        %v2934 = vadd.f32 %v2918, -1.4531521
        %v2935 = vadd.f32 %v2919, -1.4531521
        %v2936 = vadd.f32 %v2920, -1.4531521
        %v2937 = vadd.f32 %v2921, -1.4531521
        %v2938 = vadd.f32 %v2922, -1.4531521
        %v2939 = vadd.f32 %v2923, -1.4531521
        %v2940 = vadd.f32 %v2924, -1.4531521
        %v2941 = vadd.f32 %v2925, -1.4531521
        %v2942 = vadd.f32 %v2926, -1.4531521
        %v2943 = vadd.f32 %v2927, -1.4531521
        %v2944 = vadd.f32 %v2928, -1.4531521
        %v2945 = vadd.f32 %v2929, -1.4531521
        %v2946 = vadd.f32 %v2930, -1.4531521
        %v2947 = vadd.f32 %v2931, -1.4531521
        %v2948 = vmul.f32 %v2932, %v2885
        %v2949 = vmul.f32 %v2933, %v2887
        %v2950 = vmul.f32 %v2934, %v2889
        %v2951 = vmul.f32 %v2935, %v2891
        %v2952 = vmul.f32 %v2936, %v2893
        %v2953 = vmul.f32 %v2937, %v2895
        %v2954 = vmul.f32 %v2938, %v2897
        %v2955 = vmul.f32 %v2939, %v2899
        %v2956 = vmul.f32 %v2940, %v2901
        %v2957 = vmul.f32 %v2941, %v2903
        %v2958 = vmul.f32 %v2942, %v2905
        %v2959 = vmul.f32 %v2943, %v2907
        %v2960 = vmul.f32 %v2944, %v2909
        %v2961 = vmul.f32 %v2945, %v2911
        %v2962 = vmul.f32 %v2946, %v2913
        %v2963 = vmul.f32 %v2947, %v2915
        %v2964 = vadd.f32 %v2948, 1.4214138
        %v2965 = vadd.f32 %v2949, 1.4214138
        %v2966 = vadd.f32 %v2950, 1.4214138
        %v2967 = vadd.f32 %v2951, 1.4214138
        %v2968 = vadd.f32 %v2952, 1.4214138
        %v2969 = vadd.f32 %v2953, 1.4214138
        %v2970 = vadd.f32 %v2954, 1.4214138
        %v2971 = vadd.f32 %v2955, 1.4214138
        %v2972 = vadd.f32 %v2956, 1.4214138
        %v2973 = vadd.f32 %v2957, 1.4214138
        %v2974 = vadd.f32 %v2958, 1.4214138
        %v2975 = vadd.f32 %v2959, 1.4214138
        %v2976 = vadd.f32 %v2960, 1.4214138
        %v2977 = vadd.f32 %v2961, 1.4214138
        %v2978 = vadd.f32 %v2962, 1.4214138
        %v2979 = vadd.f32 %v2963, 1.4214138
        %v2980 = vmul.f32 %v2964, %v2885
        %v2981 = vmul.f32 %v2965, %v2887
        %v2982 = vmul.f32 %v2966, %v2889
        %v2983 = vmul.f32 %v2967, %v2891
        %v2984 = vmul.f32 %v2968, %v2893
        %v2985 = vmul.f32 %v2969, %v2895
        %v2986 = vmul.f32 %v2970, %v2897
        %v2987 = vmul.f32 %v2971, %v2899
        %v2988 = vmul.f32 %v2972, %v2901
        %v2989 = vmul.f32 %v2973, %v2903
        %v2990 = vmul.f32 %v2974, %v2905
        %v2991 = vmul.f32 %v2975, %v2907
        %v2992 = vmul.f32 %v2976, %v2909
        %v2993 = vmul.f32 %v2977, %v2911
        %v2994 = vmul.f32 %v2978, %v2913
        %v2995 = vmul.f32 %v2979, %v2915
        %v2996 = vadd.f32 %v2980, -0.28449672
        %v2997 = vadd.f32 %v2981, -0.28449672
        %v2998 = vadd.f32 %v2982, -0.28449672
        %v2999 = vadd.f32 %v2983, -0.28449672
        %v3000 = vadd.f32 %v2984, -0.28449672
        %v3001 = vadd.f32 %v2985, -0.28449672
        %v3002 = vadd.f32 %v2986, -0.28449672
        %v3003 = vadd.f32 %v2987, -0.28449672
        %v3004 = vadd.f32 %v2988, -0.28449672
        %v3005 = vadd.f32 %v2989, -0.28449672
        %v3006 = vadd.f32 %v2990, -0.28449672
        %v3007 = vadd.f32 %v2991, -0.28449672
        %v3008 = vadd.f32 %v2992, -0.28449672
        %v3009 = vadd.f32 %v2993, -0.28449672
        %v3010 = vadd.f32 %v2994, -0.28449672
        %v3011 = vadd.f32 %v2995, -0.28449672
        %v3012 = vmul.f32 %v2996, %v2885
        %v3013 = vmul.f32 %v2997, %v2887
        %v3014 = vmul.f32 %v2998, %v2889
        %v3015 = vmul.f32 %v2999, %v2891
        %v3016 = vmul.f32 %v3000, %v2893
        %v3017 = vmul.f32 %v3001, %v2895
        %v3018 = vmul.f32 %v3002, %v2897
        %v3019 = vmul.f32 %v3003, %v2899
        %v3020 = vmul.f32 %v3004, %v2901
        %v3021 = vmul.f32 %v3005, %v2903
        %v3022 = vmul.f32 %v3006, %v2905
        %v3023 = vmul.f32 %v3007, %v2907
        %v3024 = vmul.f32 %v3008, %v2909
        %v3025 = vmul.f32 %v3009, %v2911
        %v3026 = vmul.f32 %v3010, %v2913
        %v3027 = vmul.f32 %v3011, %v2915
        %v3028 = vadd.f32 %v3012, 0.2548296
        %v3029 = vadd.f32 %v3013, 0.2548296
        %v3030 = vadd.f32 %v3014, 0.2548296
        %v3031 = vadd.f32 %v3015, 0.2548296
        %v3032 = vadd.f32 %v3016, 0.2548296
        %v3033 = vadd.f32 %v3017, 0.2548296
        %v3034 = vadd.f32 %v3018, 0.2548296
        %v3035 = vadd.f32 %v3019, 0.2548296
        %v3036 = vadd.f32 %v3020, 0.2548296
        %v3037 = vadd.f32 %v3021, 0.2548296
        %v3038 = vadd.f32 %v3022, 0.2548296
        %v3039 = vadd.f32 %v3023, 0.2548296
        %v3040 = vadd.f32 %v3024, 0.2548296
        %v3041 = vadd.f32 %v3025, 0.2548296
        %v3042 = vadd.f32 %v3026, 0.2548296
        %v3043 = vadd.f32 %v3027, 0.2548296
        %v3044 = vmul.f32 %v3028, %v2885
        %v3045 = vmul.f32 %v3029, %v2887
        %v3046 = vmul.f32 %v3030, %v2889
        %v3047 = vmul.f32 %v3031, %v2891
        %v3048 = vmul.f32 %v3032, %v2893
        %v3049 = vmul.f32 %v3033, %v2895
        %v3050 = vmul.f32 %v3034, %v2897
        %v3051 = vmul.f32 %v3035, %v2899
        %v3052 = vmul.f32 %v3036, %v2901
        %v3053 = vmul.f32 %v3037, %v2903
        %v3054 = vmul.f32 %v3038, %v2905
        %v3055 = vmul.f32 %v3039, %v2907
        %v3056 = vmul.f32 %v3040, %v2909
        %v3057 = vmul.f32 %v3041, %v2911
        %v3058 = vmul.f32 %v3042, %v2913
        %v3059 = vmul.f32 %v3043, %v2915
        %v3060 = vsub.f32 0.0, %v2836
        %v3061 = vsub.f32 0.0, %v2837
        %v3062 = vsub.f32 0.0, %v2838
        %v3063 = vsub.f32 0.0, %v2839
        %v3064 = vsub.f32 0.0, %v2840
        %v3065 = vsub.f32 0.0, %v2841
        %v3066 = vsub.f32 0.0, %v2842
        %v3067 = vsub.f32 0.0, %v2843
        %v3068 = vsub.f32 0.0, %v2844
        %v3069 = vsub.f32 0.0, %v2845
        %v3070 = vsub.f32 0.0, %v2846
        %v3071 = vsub.f32 0.0, %v2847
        %v3072 = vsub.f32 0.0, %v2848
        %v3073 = vsub.f32 0.0, %v2849
        %v3074 = vsub.f32 0.0, %v2850
        %v3075 = vsub.f32 0.0, %v2851
        %v3076 = vmul.f32 %v3060, %v2836
        %v3077 = vmul.f32 %v3061, %v2837
        %v3078 = vmul.f32 %v3062, %v2838
        %v3079 = vmul.f32 %v3063, %v2839
        %v3080 = vmul.f32 %v3064, %v2840
        %v3081 = vmul.f32 %v3065, %v2841
        %v3082 = vmul.f32 %v3066, %v2842
        %v3083 = vmul.f32 %v3067, %v2843
        %v3084 = vmul.f32 %v3068, %v2844
        %v3085 = vmul.f32 %v3069, %v2845
        %v3086 = vmul.f32 %v3070, %v2846
        %v3087 = vmul.f32 %v3071, %v2847
        %v3088 = vmul.f32 %v3072, %v2848
        %v3089 = vmul.f32 %v3073, %v2849
        %v3090 = vmul.f32 %v3074, %v2850
        %v3091 = vmul.f32 %v3075, %v2851
        %v3092 = vmul.f32 %v3076, 1.442695
        %v3093 = vpow.pop %v3092
        %v3094 = vmul.f32 %v3077, 1.442695
        %v3095 = vpow.pop %v3094
        %v3096 = vmul.f32 %v3078, 1.442695
        %v3097 = vpow.pop %v3096
        %v3098 = vmul.f32 %v3079, 1.442695
        %v3099 = vpow.pop %v3098
        %v3100 = vmul.f32 %v3080, 1.442695
        %v3101 = vpow.pop %v3100
        %v3102 = vmul.f32 %v3081, 1.442695
        %v3103 = vpow.pop %v3102
        %v3104 = vmul.f32 %v3082, 1.442695
        %v3105 = vpow.pop %v3104
        %v3106 = vmul.f32 %v3083, 1.442695
        %v3107 = vpow.pop %v3106
        %v3108 = vmul.f32 %v3084, 1.442695
        %v3109 = vpow.pop %v3108
        %v3110 = vmul.f32 %v3085, 1.442695
        %v3111 = vpow.pop %v3110
        %v3112 = vmul.f32 %v3086, 1.442695
        %v3113 = vpow.pop %v3112
        %v3114 = vmul.f32 %v3087, 1.442695
        %v3115 = vpow.pop %v3114
        %v3116 = vmul.f32 %v3088, 1.442695
        %v3117 = vpow.pop %v3116
        %v3118 = vmul.f32 %v3089, 1.442695
        %v3119 = vpow.pop %v3118
        %v3120 = vmul.f32 %v3090, 1.442695
        %v3121 = vpow.pop %v3120
        %v3122 = vmul.f32 %v3091, 1.442695
        %v3123 = vpow.pop %v3122
        %v3124 = vmul.f32 %v3044, %v3093
        %v3125 = vmul.f32 %v3045, %v3095
        %v3126 = vmul.f32 %v3046, %v3097
        %v3127 = vmul.f32 %v3047, %v3099
        %v3128 = vmul.f32 %v3048, %v3101
        %v3129 = vmul.f32 %v3049, %v3103
        %v3130 = vmul.f32 %v3050, %v3105
        %v3131 = vmul.f32 %v3051, %v3107
        %v3132 = vmul.f32 %v3052, %v3109
        %v3133 = vmul.f32 %v3053, %v3111
        %v3134 = vmul.f32 %v3054, %v3113
        %v3135 = vmul.f32 %v3055, %v3115
        %v3136 = vmul.f32 %v3056, %v3117
        %v3137 = vmul.f32 %v3057, %v3119
        %v3138 = vmul.f32 %v3058, %v3121
        %v3139 = vmul.f32 %v3059, %v3123
        %v3140 = vsub.f32 1.0, %v3124
        %v3141 = vsub.f32 1.0, %v3125
        %v3142 = vsub.f32 1.0, %v3126
        %v3143 = vsub.f32 1.0, %v3127
        %v3144 = vsub.f32 1.0, %v3128
        %v3145 = vsub.f32 1.0, %v3129
        %v3146 = vsub.f32 1.0, %v3130
        %v3147 = vsub.f32 1.0, %v3131
        %v3148 = vsub.f32 1.0, %v3132
        %v3149 = vsub.f32 1.0, %v3133
        %v3150 = vsub.f32 1.0, %v3134
        %v3151 = vsub.f32 1.0, %v3135
        %v3152 = vsub.f32 1.0, %v3136
        %v3153 = vsub.f32 1.0, %v3137
        %v3154 = vsub.f32 1.0, %v3138
        %v3155 = vsub.f32 1.0, %v3139
        %v3156 = vmul.f32 %v2820, %v3140
        %v3157 = vmul.f32 %v2821, %v3141
        %v3158 = vmul.f32 %v2822, %v3142
        %v3159 = vmul.f32 %v2823, %v3143
        %v3160 = vmul.f32 %v2824, %v3144
        %v3161 = vmul.f32 %v2825, %v3145
        %v3162 = vmul.f32 %v2826, %v3146
        %v3163 = vmul.f32 %v2827, %v3147
        %v3164 = vmul.f32 %v2828, %v3148
        %v3165 = vmul.f32 %v2829, %v3149
        %v3166 = vmul.f32 %v2830, %v3150
        %v3167 = vmul.f32 %v2831, %v3151
        %v3168 = vmul.f32 %v2832, %v3152
        %v3169 = vmul.f32 %v2833, %v3153
        %v3170 = vmul.f32 %v2834, %v3154
        %v3171 = vmul.f32 %v2835, %v3155
        %v3172 = vadd.f32 %v3156, 1.0
        %v3173 = vadd.f32 %v3157, 1.0
        %v3174 = vadd.f32 %v3158, 1.0
        %v3175 = vadd.f32 %v3159, 1.0
        %v3176 = vadd.f32 %v3160, 1.0
        %v3177 = vadd.f32 %v3161, 1.0
        %v3178 = vadd.f32 %v3162, 1.0
        %v3179 = vadd.f32 %v3163, 1.0
        %v3180 = vadd.f32 %v3164, 1.0
        %v3181 = vadd.f32 %v3165, 1.0
        %v3182 = vadd.f32 %v3166, 1.0
        %v3183 = vadd.f32 %v3167, 1.0
        %v3184 = vadd.f32 %v3168, 1.0
        %v3185 = vadd.f32 %v3169, 1.0
        %v3186 = vadd.f32 %v3170, 1.0
        %v3187 = vadd.f32 %v3171, 1.0
        %v3188 = vmul.f32 %v2772, %v3172
        %v3189 = vmul.f32 %v2773, %v3173
        %v3190 = vmul.f32 %v2774, %v3174
        %v3191 = vmul.f32 %v2775, %v3175
        %v3192 = vmul.f32 %v2776, %v3176
        %v3193 = vmul.f32 %v2777, %v3177
        %v3194 = vmul.f32 %v2778, %v3178
        %v3195 = vmul.f32 %v2779, %v3179
        %v3196 = vmul.f32 %v2780, %v3180
        %v3197 = vmul.f32 %v2781, %v3181
        %v3198 = vmul.f32 %v2782, %v3182
        %v3199 = vmul.f32 %v2783, %v3183
        %v3200 = vmul.f32 %v2784, %v3184
        %v3201 = vmul.f32 %v2785, %v3185
        %v3202 = vmul.f32 %v2786, %v3186
        %v3203 = vmul.f32 %v2787, %v3187
        %v3204 = vpack.c.bf16 %v3192, %v3188
        %v3205 = vpack.c.bf16 %v3193, %v3189
        %v3206 = vpack.c.bf16 %v3194, %v3190
        %v3207 = vpack.c.bf16 %v3195, %v3191
        %v3208 = vpack.c.bf16 %v3200, %v3196
        %v3209 = vpack.c.bf16 %v3201, %v3197
        %v3210 = vpack.c.bf16 %v3202, %v3198
        %v3211 = vpack.c.bf16 %v3203, %v3199
        %v3212 = vld [vmem:[#allocation13] sm:$0xff]
        %v3213 = vld [vmem:[#allocation13 + $0x8] sm:$0xff]
        %v3214 = vld [vmem:[#allocation13 + $0x10] sm:$0xff]
        %v3215 = vld [vmem:[#allocation13 + $0x18] sm:$0xff]
        %v3216 = vld [vmem:[#allocation13 + $0x20] sm:$0xff]
        %v3217 = vld [vmem:[#allocation13 + $0x28] sm:$0xff]
        %v3218 = vld [vmem:[#allocation13 + $0x30] sm:$0xff]
        %v3219 = vld [vmem:[#allocation13 + $0x38] sm:$0xff]
        %v3220 = vld [vmem:[#allocation13 + $0x40] sm:$0xff]
        %v3221 = vld [vmem:[#allocation13 + $0x48] sm:$0xff]
        %v3222 = vld [vmem:[#allocation13 + $0x50] sm:$0xff]
        %v3223 = vld [vmem:[#allocation13 + $0x58] sm:$0xff]
        %v3224 = vld [vmem:[#allocation13 + $0x60] sm:$0xff]
        %v3225 = vld [vmem:[#allocation13 + $0x68] sm:$0xff]
        %v3226 = vld [vmem:[#allocation13 + $0x70] sm:$0xff]
        %v3227 = vld [vmem:[#allocation13 + $0x78] sm:$0xff]
        %v3228 = vld [vmem:[#allocation13 + $0x80] sm:$0xff]
        %v3229 = vld [vmem:[#allocation13 + $0x88] sm:$0xff]
        %v3230 = vld [vmem:[#allocation13 + $0x90] sm:$0xff]
        %v3231 = vld [vmem:[#allocation13 + $0x98] sm:$0xff]
        %v3232 = vld [vmem:[#allocation13 + $0xa0] sm:$0xff]
        %v3233 = vld [vmem:[#allocation13 + $0xa8] sm:$0xff]
        %v3234 = vld [vmem:[#allocation13 + $0xb0] sm:$0xff]
        %v3235 = vld [vmem:[#allocation13 + $0xb8] sm:$0xff]
        %v3236 = vld [vmem:[#allocation13 + $0xc0] sm:$0xff]
        %v3237 = vld [vmem:[#allocation13 + $0xc8] sm:$0xff]
        %v3238 = vld [vmem:[#allocation13 + $0xd0] sm:$0xff]
        %v3239 = vld [vmem:[#allocation13 + $0xd8] sm:$0xff]
        %v3240 = vld [vmem:[#allocation13 + $0xe0] sm:$0xff]
        %v3241 = vld [vmem:[#allocation13 + $0xe8] sm:$0xff]
        %v3242 = vld [vmem:[#allocation13 + $0xf0] sm:$0xff]
        %v3243 = vld [vmem:[#allocation13 + $0xf8] sm:$0xff]
        %v3244 = vld [vmem:[#allocation13 + $0x100] sm:$0xff]
        %v3245 = vld [vmem:[#allocation13 + $0x108] sm:$0xff]
        %v3246 = vld [vmem:[#allocation13 + $0x110] sm:$0xff]
        %v3247 = vld [vmem:[#allocation13 + $0x118] sm:$0xff]
        %v3248 = vld [vmem:[#allocation13 + $0x120] sm:$0xff]
        %v3249 = vld [vmem:[#allocation13 + $0x128] sm:$0xff]
        %v3250 = vld [vmem:[#allocation13 + $0x130] sm:$0xff]
        %v3251 = vld [vmem:[#allocation13 + $0x138] sm:$0xff]
        %v3252 = vld [vmem:[#allocation13 + $0x140] sm:$0xff]
        %v3253 = vld [vmem:[#allocation13 + $0x148] sm:$0xff]
        %v3254 = vld [vmem:[#allocation13 + $0x150] sm:$0xff]
        %v3255 = vld [vmem:[#allocation13 + $0x158] sm:$0xff]
        %v3256 = vld [vmem:[#allocation13 + $0x160] sm:$0xff]
        %v3257 = vld [vmem:[#allocation13 + $0x168] sm:$0xff]
        %v3258 = vld [vmem:[#allocation13 + $0x170] sm:$0xff]
        %v3259 = vld [vmem:[#allocation13 + $0x178] sm:$0xff]
        %v3260 = vld [vmem:[#allocation13 + $0x180] sm:$0xff]
        %v3261 = vld [vmem:[#allocation13 + $0x188] sm:$0xff]
        %v3262 = vld [vmem:[#allocation13 + $0x190] sm:$0xff]
        %v3263 = vld [vmem:[#allocation13 + $0x198] sm:$0xff]
        %v3264 = vld [vmem:[#allocation13 + $0x1a0] sm:$0xff]
        %v3265 = vld [vmem:[#allocation13 + $0x1a8] sm:$0xff]
        %v3266 = vld [vmem:[#allocation13 + $0x1b0] sm:$0xff]
        %v3267 = vld [vmem:[#allocation13 + $0x1b8] sm:$0xff]
        %v3268 = vld [vmem:[#allocation13 + $0x1c0] sm:$0xff]
        %v3269 = vld [vmem:[#allocation13 + $0x1c8] sm:$0xff]
        %v3270 = vld [vmem:[#allocation13 + $0x1d0] sm:$0xff]
        %v3271 = vld [vmem:[#allocation13 + $0x1d8] sm:$0xff]
        %v3272 = vld [vmem:[#allocation13 + $0x1e0] sm:$0xff]
        %v3273 = vld [vmem:[#allocation13 + $0x1e8] sm:$0xff]
        %v3274 = vld [vmem:[#allocation13 + $0x1f0] sm:$0xff]
        %v3275 = vld [vmem:[#allocation13 + $0x1f8] sm:$0xff]
        %v3276 = vld [vmem:[%s12] sm:$0x3]
        %v3278 = vlaneseq
        %v3279 = vshrl.u32 %v3278, 7
        %v3280 = vsub.s32 0, %v3279
        %v3281 = vrot.slane %v3276, %v3280
        %v3282 = vlaneseq
        %v3283 = vshrl.u32 %v3282, 7
        %v3284 = vsub.s32 1, %v3283
        %v3285 = vrot.slane %v3276, %v3284
        %v3352 = vunpack.c.l.b16 %v3212
        %v3353 = vunpack.c.h.b16 %v3212
        %v3354 = vunpack.c.l.b16 %v3213
        %v3355 = vunpack.c.h.b16 %v3213
        %v3356 = vunpack.c.l.b16 %v3214
        %v3357 = vunpack.c.h.b16 %v3214
        %v3358 = vunpack.c.l.b16 %v3215
        %v3359 = vunpack.c.h.b16 %v3215
        %v3360 = vunpack.c.l.b16 %v3216
        %v3361 = vunpack.c.h.b16 %v3216
        %v3362 = vunpack.c.l.b16 %v3217
        %v3363 = vunpack.c.h.b16 %v3217
        %v3364 = vunpack.c.l.b16 %v3218
        %v3365 = vunpack.c.h.b16 %v3218
        %v3366 = vunpack.c.l.b16 %v3219
        %v3367 = vunpack.c.h.b16 %v3219
        %v3368 = vunpack.c.l.b16 %v3220
        %v3369 = vunpack.c.h.b16 %v3220
        %v3370 = vunpack.c.l.b16 %v3221
        %v3371 = vunpack.c.h.b16 %v3221
        %v3372 = vunpack.c.l.b16 %v3222
        %v3373 = vunpack.c.h.b16 %v3222
        %v3374 = vunpack.c.l.b16 %v3223
        %v3375 = vunpack.c.h.b16 %v3223
        %v3376 = vunpack.c.l.b16 %v3224
        %v3377 = vunpack.c.h.b16 %v3224
        %v3378 = vunpack.c.l.b16 %v3225
        %v3379 = vunpack.c.h.b16 %v3225
        %v3380 = vunpack.c.l.b16 %v3226
        %v3381 = vunpack.c.h.b16 %v3226
        %v3382 = vunpack.c.l.b16 %v3227
        %v3383 = vunpack.c.h.b16 %v3227
        %v3384 = vunpack.c.l.b16 %v3228
        %v3385 = vunpack.c.h.b16 %v3228
        %v3386 = vunpack.c.l.b16 %v3229
        %v3387 = vunpack.c.h.b16 %v3229
        %v3388 = vunpack.c.l.b16 %v3230
        %v3389 = vunpack.c.h.b16 %v3230
        %v3390 = vunpack.c.l.b16 %v3231
        %v3391 = vunpack.c.h.b16 %v3231
        %v3392 = vunpack.c.l.b16 %v3232
        %v3393 = vunpack.c.h.b16 %v3232
        %v3394 = vunpack.c.l.b16 %v3233
        %v3395 = vunpack.c.h.b16 %v3233
        %v3396 = vunpack.c.l.b16 %v3234
        %v3397 = vunpack.c.h.b16 %v3234
        %v3398 = vunpack.c.l.b16 %v3235
        %v3399 = vunpack.c.h.b16 %v3235
        %v3400 = vunpack.c.l.b16 %v3236
        %v3401 = vunpack.c.h.b16 %v3236
        %v3402 = vunpack.c.l.b16 %v3237
        %v3403 = vunpack.c.h.b16 %v3237
        %v3404 = vunpack.c.l.b16 %v3238
        %v3405 = vunpack.c.h.b16 %v3238
        %v3406 = vunpack.c.l.b16 %v3239
        %v3407 = vunpack.c.h.b16 %v3239
        %v3408 = vunpack.c.l.b16 %v3240
        %v3409 = vunpack.c.h.b16 %v3240
        %v3410 = vunpack.c.l.b16 %v3241
        %v3411 = vunpack.c.h.b16 %v3241
        %v3412 = vunpack.c.l.b16 %v3242
        %v3413 = vunpack.c.h.b16 %v3242
        %v3414 = vunpack.c.l.b16 %v3243
        %v3415 = vunpack.c.h.b16 %v3243
        %v3416 = vunpack.c.l.b16 %v3244
        %v3417 = vunpack.c.h.b16 %v3244
        %v3418 = vunpack.c.l.b16 %v3245
        %v3419 = vunpack.c.h.b16 %v3245
        %v3420 = vunpack.c.l.b16 %v3246
        %v3421 = vunpack.c.h.b16 %v3246
        %v3422 = vunpack.c.l.b16 %v3247
        %v3423 = vunpack.c.h.b16 %v3247
        %v3424 = vunpack.c.l.b16 %v3248
        %v3425 = vunpack.c.h.b16 %v3248
        %v3426 = vunpack.c.l.b16 %v3249
        %v3427 = vunpack.c.h.b16 %v3249
        %v3428 = vunpack.c.l.b16 %v3250
        %v3429 = vunpack.c.h.b16 %v3250
        %v3430 = vunpack.c.l.b16 %v3251
        %v3431 = vunpack.c.h.b16 %v3251
        %v3432 = vunpack.c.l.b16 %v3252
        %v3433 = vunpack.c.h.b16 %v3252
        %v3434 = vunpack.c.l.b16 %v3253
        %v3435 = vunpack.c.h.b16 %v3253
        %v3436 = vunpack.c.l.b16 %v3254
        %v3437 = vunpack.c.h.b16 %v3254
        %v3438 = vunpack.c.l.b16 %v3255
        %v3439 = vunpack.c.h.b16 %v3255
        %v3440 = vunpack.c.l.b16 %v3256
        %v3441 = vunpack.c.h.b16 %v3256
        %v3442 = vunpack.c.l.b16 %v3257
        %v3443 = vunpack.c.h.b16 %v3257
        %v3444 = vunpack.c.l.b16 %v3258
        %v3445 = vunpack.c.h.b16 %v3258
        %v3446 = vunpack.c.l.b16 %v3259
        %v3447 = vunpack.c.h.b16 %v3259
        %v3448 = vunpack.c.l.b16 %v3260
        %v3449 = vunpack.c.h.b16 %v3260
        %v3450 = vunpack.c.l.b16 %v3261
        %v3451 = vunpack.c.h.b16 %v3261
        %v3452 = vunpack.c.l.b16 %v3262
        %v3453 = vunpack.c.h.b16 %v3262
        %v3454 = vunpack.c.l.b16 %v3263
        %v3455 = vunpack.c.h.b16 %v3263
        %v3456 = vunpack.c.l.b16 %v3264
        %v3457 = vunpack.c.h.b16 %v3264
        %v3458 = vunpack.c.l.b16 %v3265
        %v3459 = vunpack.c.h.b16 %v3265
        %v3460 = vunpack.c.l.b16 %v3266
        %v3461 = vunpack.c.h.b16 %v3266
        %v3462 = vunpack.c.l.b16 %v3267
        %v3463 = vunpack.c.h.b16 %v3267
        %v3464 = vunpack.c.l.b16 %v3268
        %v3465 = vunpack.c.h.b16 %v3268
        %v3466 = vunpack.c.l.b16 %v3269
        %v3467 = vunpack.c.h.b16 %v3269
        %v3468 = vunpack.c.l.b16 %v3270
        %v3469 = vunpack.c.h.b16 %v3270
        %v3470 = vunpack.c.l.b16 %v3271
        %v3471 = vunpack.c.h.b16 %v3271
        %v3472 = vunpack.c.l.b16 %v3272
        %v3473 = vunpack.c.h.b16 %v3272
        %v3474 = vunpack.c.l.b16 %v3273
        %v3475 = vunpack.c.h.b16 %v3273
        %v3476 = vunpack.c.l.b16 %v3274
        %v3477 = vunpack.c.h.b16 %v3274
        %v3478 = vunpack.c.l.b16 %v3275
        %v3479 = vunpack.c.h.b16 %v3275
        %v3480 = vpack.c.b16 %v3354, %v3352
        %v3481 = vpack.c.b16 %v3355, %v3353
        %v3482 = vpack.c.b16 %v3358, %v3356
        %v3483 = vpack.c.b16 %v3359, %v3357
        %v3484 = vpack.c.b16 %v3362, %v3360
        %v3485 = vpack.c.b16 %v3363, %v3361
        %v3486 = vpack.c.b16 %v3366, %v3364
        %v3487 = vpack.c.b16 %v3367, %v3365
        %v3488 = vpack.c.b16 %v3370, %v3368
        %v3489 = vpack.c.b16 %v3371, %v3369
        %v3490 = vpack.c.b16 %v3374, %v3372
        %v3491 = vpack.c.b16 %v3375, %v3373
        %v3492 = vpack.c.b16 %v3378, %v3376
        %v3493 = vpack.c.b16 %v3379, %v3377
        %v3494 = vpack.c.b16 %v3382, %v3380
        %v3495 = vpack.c.b16 %v3383, %v3381
        %v3496 = vpack.c.b16 %v3386, %v3384
        %v3497 = vpack.c.b16 %v3387, %v3385
        %v3498 = vpack.c.b16 %v3390, %v3388
        %v3499 = vpack.c.b16 %v3391, %v3389
        %v3500 = vpack.c.b16 %v3394, %v3392
        %v3501 = vpack.c.b16 %v3395, %v3393
        %v3502 = vpack.c.b16 %v3398, %v3396
        %v3503 = vpack.c.b16 %v3399, %v3397
        %v3504 = vpack.c.b16 %v3402, %v3400
        %v3505 = vpack.c.b16 %v3403, %v3401
        %v3506 = vpack.c.b16 %v3406, %v3404
        %v3507 = vpack.c.b16 %v3407, %v3405
        %v3508 = vpack.c.b16 %v3410, %v3408
        %v3509 = vpack.c.b16 %v3411, %v3409
        %v3510 = vpack.c.b16 %v3414, %v3412
        %v3511 = vpack.c.b16 %v3415, %v3413
        %v3512 = vpack.c.b16 %v3418, %v3416
        %v3513 = vpack.c.b16 %v3419, %v3417
        %v3514 = vpack.c.b16 %v3422, %v3420
        %v3515 = vpack.c.b16 %v3423, %v3421
        %v3516 = vpack.c.b16 %v3426, %v3424
        %v3517 = vpack.c.b16 %v3427, %v3425
        %v3518 = vpack.c.b16 %v3430, %v3428
        %v3519 = vpack.c.b16 %v3431, %v3429
        %v3520 = vpack.c.b16 %v3434, %v3432
        %v3521 = vpack.c.b16 %v3435, %v3433
        %v3522 = vpack.c.b16 %v3438, %v3436
        %v3523 = vpack.c.b16 %v3439, %v3437
        %v3524 = vpack.c.b16 %v3442, %v3440
        %v3525 = vpack.c.b16 %v3443, %v3441
        %v3526 = vpack.c.b16 %v3446, %v3444
        %v3527 = vpack.c.b16 %v3447, %v3445
        %v3528 = vpack.c.b16 %v3450, %v3448
        %v3529 = vpack.c.b16 %v3451, %v3449
        %v3530 = vpack.c.b16 %v3454, %v3452
        %v3531 = vpack.c.b16 %v3455, %v3453
        %v3532 = vpack.c.b16 %v3458, %v3456
        %v3533 = vpack.c.b16 %v3459, %v3457
        %v3534 = vpack.c.b16 %v3462, %v3460
        %v3535 = vpack.c.b16 %v3463, %v3461
        %v3536 = vpack.c.b16 %v3466, %v3464
        %v3537 = vpack.c.b16 %v3467, %v3465
        %v3538 = vpack.c.b16 %v3470, %v3468
        %v3539 = vpack.c.b16 %v3471, %v3469
        %v3540 = vpack.c.b16 %v3474, %v3472
        %v3541 = vpack.c.b16 %v3475, %v3473
        %v3542 = vpack.c.b16 %v3478, %v3476
        %v3543 = vpack.c.b16 %v3479, %v3477
        %3608 = vmatprep.subr.bf16.mxu0 %v3481
        %3609 = vmatpush1.bf16.msra.mxu0 %v3480
        %3610 = vmatprep.subr.bf16.mxu0 %v3483
        %3611 = vmatpush1.bf16.msra.mxu0 %v3482
        %3612 = vmatprep.subr.bf16.mxu0 %v3485
        %3613 = vmatpush1.bf16.msra.mxu0 %v3484
        %3614 = vmatprep.subr.bf16.mxu0 %v3487
        %3615 = vmatpush1.bf16.msra.mxu0 %v3486
        %3616 = vmatprep.subr.bf16.mxu0 %v3489
        %3617 = vmatpush1.bf16.msra.mxu0 %v3488
        %3618 = vmatprep.subr.bf16.mxu0 %v3491
        %3619 = vmatpush1.bf16.msra.mxu0 %v3490
        %3620 = vmatprep.subr.bf16.mxu0 %v3493
        %3621 = vmatpush1.bf16.msra.mxu0 %v3492
        %3622 = vmatprep.subr.bf16.mxu0 %v3495
        %3623 = vmatpush1.bf16.msra.mxu0 %v3494
        %3624 = vmatprep.subr.bf16.mxu0 %v3497
        %3625 = vmatpush1.bf16.msra.mxu0 %v3496
        %3626 = vmatprep.subr.bf16.mxu0 %v3499
        %3627 = vmatpush1.bf16.msra.mxu0 %v3498
        %3628 = vmatprep.subr.bf16.mxu0 %v3501
        %3629 = vmatpush1.bf16.msra.mxu0 %v3500
        %3630 = vmatprep.subr.bf16.mxu0 %v3503
        %3631 = vmatpush1.bf16.msra.mxu0 %v3502
        %3632 = vmatprep.subr.bf16.mxu0 %v3505
        %3633 = vmatpush1.bf16.msra.mxu0 %v3504
        %3634 = vmatprep.subr.bf16.mxu0 %v3507
        %3635 = vmatpush1.bf16.msra.mxu0 %v3506
        %3636 = vmatprep.subr.bf16.mxu0 %v3509
        %3637 = vmatpush1.bf16.msra.mxu0 %v3508
        %3638 = vmatprep.subr.bf16.mxu0 %v3511
        %3639 = vmatpush1.bf16.msra.mxu0 %v3510
        %3640 = vmatprep.mubr.bf16.mxu0 %v3205
        %3641 = vmatmul.mubr.bf16.gmra.mrb[0].mxu0 %v3204
        %v3642 = vpop.f32.mrb[0].mxu0
        %v3643 = vadd.f32 %v3281, %v3642
        %v3644 = vpop.f32.mrb[0].mxu0
        %v3645 = vadd.f32 %v3285, %v3644
        %v3646 = vpop.f32.mrb[0].mxu0
        %v3647 = vadd.f32 %v3281, %v3646
        %v3648 = vpop.f32.mrb[0].mxu0
        %v3649 = vadd.f32 %v3285, %v3648
        %3650 = vmatprep.mubr.bf16.mxu0 %v3209
        %3651 = vmatmul.mubr.bf16.gmra.mrb[0].mxu0 %v3208
        %v3652 = vpop.f32.mrb[0].mxu0
        %v3653 = vadd.f32 %v3281, %v3652
        %v3654 = vpop.f32.mrb[0].mxu0
        %v3655 = vadd.f32 %v3285, %v3654
        %v3656 = vpop.f32.mrb[0].mxu0
        %v3657 = vadd.f32 %v3281, %v3656
        %v3658 = vpop.f32.mrb[0].mxu0
        %v3659 = vadd.f32 %v3285, %v3658
        %3660 = vdwg.mxu0
        %3661 = vmatprep.subr.bf16.mxu0 %v3513
        %3662 = vmatpush1.bf16.msra.mxu0 %v3512
        %3663 = vmatprep.subr.bf16.mxu0 %v3515
        %3664 = vmatpush1.bf16.msra.mxu0 %v3514
        %3665 = vmatprep.subr.bf16.mxu0 %v3517
        %3666 = vmatpush1.bf16.msra.mxu0 %v3516
        %3667 = vmatprep.subr.bf16.mxu0 %v3519
        %3668 = vmatpush1.bf16.msra.mxu0 %v3518
        %3669 = vmatprep.subr.bf16.mxu0 %v3521
        %3670 = vmatpush1.bf16.msra.mxu0 %v3520
        %3671 = vmatprep.subr.bf16.mxu0 %v3523
        %3672 = vmatpush1.bf16.msra.mxu0 %v3522
        %3673 = vmatprep.subr.bf16.mxu0 %v3525
        %3674 = vmatpush1.bf16.msra.mxu0 %v3524
        %3675 = vmatprep.subr.bf16.mxu0 %v3527
        %3676 = vmatpush1.bf16.msra.mxu0 %v3526
        %3677 = vmatprep.subr.bf16.mxu0 %v3529
        %3678 = vmatpush1.bf16.msra.mxu0 %v3528
        %3679 = vmatprep.subr.bf16.mxu0 %v3531
        %3680 = vmatpush1.bf16.msra.mxu0 %v3530
        %3681 = vmatprep.subr.bf16.mxu0 %v3533
        %3682 = vmatpush1.bf16.msra.mxu0 %v3532
        %3683 = vmatprep.subr.bf16.mxu0 %v3535
        %3684 = vmatpush1.bf16.msra.mxu0 %v3534
        %3685 = vmatprep.subr.bf16.mxu0 %v3537
        %3686 = vmatpush1.bf16.msra.mxu0 %v3536
        %3687 = vmatprep.subr.bf16.mxu0 %v3539
        %3688 = vmatpush1.bf16.msra.mxu0 %v3538
        %3689 = vmatprep.subr.bf16.mxu0 %v3541
        %3690 = vmatpush1.bf16.msra.mxu0 %v3540
        %3691 = vmatprep.subr.bf16.mxu0 %v3543
        %3692 = vmatpush1.bf16.msra.mxu0 %v3542
        %3693 = vmatprep.mubr.bf16.mxu0 %v3207
        %3694 = vmatmul.mubr.bf16.gmra.mrb[0].mxu0 %v3206
        %v3695 = vpop.f32.mrb[0].mxu0
        %v3696 = vadd.f32 %v3643, %v3695
        %v3697 = vpop.f32.mrb[0].mxu0
        %v3698 = vadd.f32 %v3645, %v3697
        %v3699 = vpop.f32.mrb[0].mxu0
        %v3700 = vadd.f32 %v3647, %v3699
        %v3701 = vpop.f32.mrb[0].mxu0
        %v3702 = vadd.f32 %v3649, %v3701
        %3703 = vmatprep.mubr.bf16.mxu0 %v3211
        %3704 = vmatmul.mubr.bf16.gmra.mrb[0].mxu0 %v3210
        %v3705 = vpop.f32.mrb[0].mxu0
        %v3706 = vadd.f32 %v3653, %v3705
        %v3707 = vpop.f32.mrb[0].mxu0
        %v3708 = vadd.f32 %v3655, %v3707
        %v3709 = vpop.f32.mrb[0].mxu0
        %v3710 = vadd.f32 %v3657, %v3709
        %v3711 = vpop.f32.mrb[0].mxu0
        %v3712 = vadd.f32 %v3659, %v3711
        %3713 = vdwg.mxu0
        %v3714 = vadd.f32 %v2144, %v3696
        %v3715 = vadd.f32 %v2145, %v3698
        %v3716 = vadd.f32 %v2146, %v3700
        %v3717 = vadd.f32 %v2147, %v3702
        %v3718 = vadd.f32 %v2148, %v3706
        %v3719 = vadd.f32 %v2149, %v3708
        %v3720 = vadd.f32 %v2150, %v3710
        %v3721 = vadd.f32 %v2151, %v3712
        %3722 = vst [vmem:[%s542] sm:$0xff] %v3714
        %3723 = vst [vmem:[%s542 + $0x8] sm:$0xff] %v3715
        %3724 = vst [vmem:[%s542 + $0x10] sm:$0xff] %v3716
        %3725 = vst [vmem:[%s542 + $0x18] sm:$0xff] %v3717
        %3726 = vst [vmem:[%s542 + $0x20] sm:$0xff] %v3718
        %3727 = vst [vmem:[%s542 + $0x28] sm:$0xff] %v3719
        %3728 = vst [vmem:[%s542 + $0x30] sm:$0xff] %v3720
        %3729 = vst [vmem:[%s542 + $0x38] sm:$0xff] %v3721
        %s3730 = sand.u32 %s319, 1
        %s3731 = scalar_lea.sflag [#allocation4], %s3730
        %s3732 = sand.u32 %s319, 1
        %s3733 = smul.addr %s3732, 64
        %s3734 = scalar_lea.vmem [#allocation14], %s3733
        // Predicated region
        $region101: #{tpu_custom_call.1} parent=71 // pred_check
          %p3735 = pneg %p329
        $region102: #{tpu_custom_call.1} parent=71 // pred_check_branch
          %3737 = sbr.rel (%p3735) target = $region104
        $region103: #{tpu_custom_call.1} parent=71 // pred_region
          %s3738 = smul.u32 2, %s33
          %s3740 = ssub.s32 1024, 1024
          %3741 = vsyncadd %s3731, %s3740
          %s3742 = smul.addr %s3738, 4
          %s3743 = smul.addr %s3742, 128
          %s3744 = scalar_lea.hbm %s13, %s3743
          %s3745 = sshll.u32 %s3734, 4
          %s3746 = int_to_ptr.vmem [resolvable:$true] %s3745
          %3751 = dma.vmem_to_hbm [thread:$0]  %s3746, 1024, %s3744, %s3731, 256, 256, 16
        $region104: #{tpu_custom_call.1} parent=71 // pred_fallthru
          _
      $region72: #{tpu_custom_call.1} parent=5 // pred_fallthru
        _
      %p3752 = scmp.le.s32.totalorder 2, %s28
      // Predicated region
      $region105: #{tpu_custom_call.1} parent=5 // pred_check
        %p3753 = pneg %p3752
      $region106: #{tpu_custom_call.1} parent=5 // pred_check_branch
        %3755 = sbr.rel (%p3753) target = $region108
      $region107: #{tpu_custom_call.1} parent=5 // pred_region
        %s3756 = ssub.s32 %s28, 2
        // Predicated region
        $region109: #{tpu_custom_call.1} parent=107 // pred_check
          %p3757 = pneg %p335
        $region110: #{tpu_custom_call.1} parent=107 // pred_check_branch
          %3759 = sbr.rel (%p3757) target = $region112
        $region111: #{tpu_custom_call.1} parent=107 // pred_region
          %s3760 = sand.u32 %s320, 1
          %s3761 = scalar_lea.sflag [#allocation4], %s3760
          %s3762 = sand.u32 %s320, 1
          %s3763 = smul.addr %s3762, 64
          %s3764 = scalar_lea.vmem [#allocation14], %s3763
          %3765 = dma.done %s3761, 1024
        $region112: #{tpu_custom_call.1} parent=107 // pred_fallthru
          _
      $region108: #{tpu_custom_call.1} parent=5 // pred_fallthru
        _
    $region6: #{tpu_custom_call.1} parent=1 // loop_footer
      %s32 = sadd.s32 1, %s28
    $region7: #{tpu_custom_call.1} parent=1 // loop_footer_branch
      %27 = sbr.rel target = $region3
    $region8: #{tpu_custom_call.1} parent=1 // loop_exit
      _
    %3766 = vsyncpa [#allocation3], 1
    %s3767 = scalar_lea.sflag [#allocation3], 1
    %3768 = vsyncpa %s3767, 1
    %3769 = vsyncpa [#allocation6], 1
    %3770 = vsyncpa [#allocation9], 1
    %3771 = vsyncpa [#allocation12], 1
    %3772 = vsyncpa [#allocation4], 1
    %s3773 = scalar_lea.sflag [#allocation4], 1
    %3774 = vsyncpa %s3773, 1

</llo_original>
